<compile_context>
chip_gen: v6e
topology: v6e:2x2x1
jax: 0.10.0
libtpu: 0.0.40
codegen_flags: <defaults>
</compile_context>

<pallas_src>
import numpy as np
import jax
import jax.numpy as jnp
from jax import lax
from jax.experimental import pallas as pl
from jax.experimental.pallas import tpu as pltpu


# ----------------------------------------------------------------------------
# Static layer geometry
# ----------------------------------------------------------------------------
def _layer_specs(in_channels, args_channels, additional_layers):
    specs = [(in_channels, args_channels, 5, 2)]          # (Cin, Cout, k, pad)
    for i in range(additional_layers):
        specs.append(((2 ** i) * args_channels,
                      (2 ** (i + 1)) * args_channels, 3, 1))
    return specs


def _layer_cfgs(specs, n, h, w):
    cfgs = []
    for (cin, cout, k, pad) in specs:
        # Invariants the pooling / masking logic relies on (review note):
        # even, power-of-two spatial dims at every layer.
        assert h >= 2 and w >= 2 and h % 2 == 0 and w % 2 == 0
        assert (w & (w - 1)) == 0 and (h & (h - 1)) == 0
        s = h * w
        cfgs.append(dict(
            cin=cin, cout=cout, k=k, pad=pad, H=h, W=w,
            S=s, NS=n * s, m0=pad * w + pad,
            H2=h // 2, W2=w // 2, Sq=(h // 2) * (w // 2),
            NSq=n * (h // 2) * (w // 2),
        ))
        h, w = h // 2, w // 2
    return cfgs


# ----------------------------------------------------------------------------
# Fused kernel: conv + BN(train) + ReLU + maxpool + global-pool for ALL layers
# ----------------------------------------------------------------------------
def _build_kernel(cfgs, n_batch, out_rows, out_lanes):
    n_layers = len(cfgs)
    gp_base = n_batch * cfgs[-1]["Sq"]        # final-map columns come first

    def kernel(*refs):
        x_ref = refs[0]
        w_refs = refs[1:1 + n_layers]
        gamma_ref = refs[1 + n_layers]
        beta_ref = refs[2 + n_layers]
        out_ref = refs[3 + n_layers]
        scratch = refs[4 + n_layers:]          # (pbuf, ybuf, imbuf) per layer

        # one lane-dense (out_rows, 128) output slab; zero once, overlay later
        out_ref[...] = jnp.zeros((out_rows, out_lanes), jnp.float32)

        # ---- stage the packed input into layer 0's conv halo buffer --------
        c0 = cfgs[0]
        pbuf0 = scratch[0]
        pbuf0[:, pl.ds(0, c0["m0"])] = jnp.zeros((c0["cin"], c0["m0"]),
                                                 jnp.float32)
        pbuf0[:, pl.ds(c0["m0"] + c0["NS"], c0["m0"])] = jnp.zeros(
            (c0["cin"], c0["m0"]), jnp.float32)
        pbuf0[:, pl.ds(c0["m0"], c0["NS"])] = x_ref[...]

        ch_off = 0
        for li, c in enumerate(cfgs):
            cin, cout, k, pad = c["cin"], c["cout"], c["k"], c["pad"]
            H, W, S, NS, m0 = c["H"], c["W"], c["S"], c["NS"], c["m0"]
            W2, Sq = c["W2"], c["Sq"]
            pbuf, ybuf, imbuf = scratch[3 * li:3 * li + 3]

            # per-lane (h, w) coordinates of the flattened spatial index
            lane = lax.broadcasted_iota(jnp.int32, (1, NS), 1)
            w_idx = jnp.bitwise_and(lane, W - 1)
            h_idx = jnp.right_shift(jnp.bitwise_and(lane, S - 1),
                                    W.bit_length() - 1)
            h_ok = {oy: jnp.logical_and(h_idx >= -oy, h_idx <= H - 1 - oy)
                    for oy in range(-pad, pad + 1)}
            w_ok = {ox: jnp.logical_and(w_idx >= -ox, w_idx <= W - 1 - ox)
                    for ox in range(-pad, pad + 1)}

            # ---- im2col: one masked, shifted flat view per conv tap --------
            for dy in range(k):
                for dx in range(k):
                    oy, ox = dy - pad, dx - pad
                    win = pbuf[:, pl.ds(m0 + oy * W + ox, NS)]       # (Cin, NS)
                    msk = jnp.logical_and(h_ok[oy], w_ok[ox])        # (1, NS)
                    imbuf[pl.ds((dy * k + dx) * cin, cin), :] = \
                        jnp.where(msk, win, 0.0)

            # ---- conv as a single MXU matmul: (Cout, K) @ (K, NS) ----------
            acc = jnp.dot(w_refs[li][...], imbuf[...],
                          preferred_element_type=jnp.float32)        # (Cout, NS)

            # ---- BatchNorm (training-mode batch stats, one pass) + ReLU ----
            gamma = gamma_ref[pl.ds(ch_off, cout), :]                # (Cout, 1)
            beta = beta_ref[pl.ds(ch_off, cout), :]
            inv_n = 1.0 / NS
            mu = jnp.sum(acc, axis=1, keepdims=True) * inv_n
            ex2 = jnp.sum(acc * acc, axis=1, keepdims=True) * inv_n
            var = jnp.maximum(ex2 - mu * mu, 0.0)                    # biased var
            scale = lax.rsqrt(var + 1e-5) * gamma
            y = jnp.maximum((acc - mu) * scale + beta, 0.0)          # (Cout, NS)

            # ---- stage ReLU output for the 2x2 / stride-2 max pool ---------
            ybuf[:, pl.ds(NS, W + 1)] = jnp.zeros((cout, W + 1), jnp.float32)
            ybuf[:, pl.ds(0, NS)] = y

            # ---- in-kernel one-hot (S, Sq) 2x2-anchor selection matrix -----
            # (replaces the old HBM decimation matrices; built once per layer,
            #  reused for every image: D = I_N (x) D_s)
            colj = lax.broadcasted_iota(jnp.int32, (1, Sq), 1)       # yy*W2+xx
            yy = jnp.right_shift(colj, W2.bit_length() - 1)
            xx = jnp.bitwise_and(colj, W2 - 1)
            src = jnp.left_shift(yy, W.bit_length()) + jnp.left_shift(xx, 1)
            rows = lax.broadcasted_iota(jnp.int32, (S, Sq), 0)
            d_s = jnp.where(rows == src, 1.0, 0.0).astype(jnp.float32)

            # ---- zero the NEXT layer's conv-halo margins (once) ------------
            if li + 1 < n_layers:
                nxt = cfgs[li + 1]
                npbuf = scratch[3 * (li + 1)]
                npbuf[:, pl.ds(0, nxt["m0"])] = jnp.zeros(
                    (nxt["cin"], nxt["m0"]), jnp.float32)
                npbuf[:, pl.ds(nxt["m0"] + nxt["NS"], nxt["m0"])] = jnp.zeros(
                    (nxt["cin"], nxt["m0"]), jnp.float32)

            # ---- per-image: maxpool, anchor-select, global-pool, stage -----
            inv_sq = 1.0 / Sq
            for n in range(n_batch):
                base = n * S
                a01 = jnp.maximum(ybuf[:, pl.ds(base, S)],
                                  ybuf[:, pl.ds(base + 1, S)])
                a23 = jnp.maximum(ybuf[:, pl.ds(base + W, S)],
                                  ybuf[:, pl.ds(base + W + 1, S)])
                seg = jnp.maximum(a01, a23)                          # (Cout, S)
                piece = jnp.dot(seg, d_s,
                                preferred_element_type=jnp.float32)  # (Cout, Sq)

                # GlobalPooling2D: per-image spatial mean (lane reduce)
                gp_col = jnp.sum(piece, axis=1, keepdims=True) * inv_sq
                out_ref[pl.ds(0, cout),
                        pl.ds(gp_base + li * n_batch + n, 1)] = gp_col

                if li + 1 < n_layers:
                    # stage directly into the next layer's halo interior
                    npbuf[:, pl.ds(nxt["m0"] + n * Sq, Sq)] = piece
                else:
                    # final pooled feature map -> output slab columns [0, NSq)
                    out_ref[pl.ds(0, cout), pl.ds(n * Sq, Sq)] = piece

            ch_off += cout

    return kernel


# ----------------------------------------------------------------------------
# Parameters (deterministic; mirrors nn.init.kaiming_uniform_(w), a=0, on the
# conv weights and the default BatchNorm2d affine = ones / zeros).
# ----------------------------------------------------------------------------
def make_lenet_params(key, in_channels=1, args_channels=4, additional_layers=2):
    specs = _layer_specs(in_channels, args_channels, additional_layers)
    ws_packed, ws_oihw = [], []
    for (cin, cout, k, pad) in specs:
        key, sub = jax.random.split(key)
        fan_in = cin * k * k
        bound = float(np.sqrt(6.0 / fan_in))      # kaiming_uniform_, a=0
        w = jax.random.uniform(sub, (cout, cin, k, k), jnp.float32,
                               minval=-bound, maxval=bound)
        ws_oihw.append(w)
        # pack torch (Cout,Cin,k,k) -> (Cout, k*k*Cin), row = (dy*k+dx)*Cin+cin
        ws_packed.append(jnp.transpose(w, (0, 2, 3, 1)).reshape(cout, k * k * cin))
    ctot = sum(s[1] for s in specs)
    return {
        "specs": specs,
        "w": ws_packed,
        "w_oihw": ws_oihw,                       # only used by the pure-JAX ref
        "gamma": jnp.ones((ctot, 1), jnp.float32),
        "beta": jnp.zeros((ctot, 1), jnp.float32),
    }


# ----------------------------------------------------------------------------
# Full forward (output_each_layer=True, linear=None, squeeze_output=True)
# ----------------------------------------------------------------------------
def lenet_forward(x_nchw, params):
    specs = params["specs"]
    x = x_nchw.astype(jnp.float32)
    n, cin0, hh, ww = x.shape
    assert cin0 == specs[0][0]
    cfgs = _layer_cfgs(specs, n, hh, ww)
    n_layers = len(cfgs)
    c_last = cfgs[-1]["cout"]
    h2_last, w2_last = cfgs[-1]["H2"], cfgs[-1]["W2"]
    sq_last = cfgs[-1]["Sq"]
    gp_base = n * sq_last
    used_lanes = gp_base + n_layers * n
    out_lanes = max(128, ((used_lanes + 127) // 128) * 128)
    out_rows = ((c_last + 7) // 8) * 8

    # lane-dense packed input: (Cin, N*H*W), flat index = n*H*W + h*W + w
    x_flat = jnp.transpose(x, (1, 0, 2, 3)).reshape(cin0, n * hh * ww)

    inputs = [x_flat] + list(params["w"]) + [params["gamma"], params["beta"]]

    def full_spec(shape):
        nd = len(shape)
        return pl.BlockSpec(tuple(shape), lambda *_: (0,) * nd)

    scratch_shapes = []
    for c in cfgs:
        scratch_shapes += [
            pltpu.VMEM((c["cin"], c["NS"] + 2 * c["m0"]), jnp.float32),  # conv halo
            pltpu.VMEM((c["cout"], c["NS"] + c["W"] + 1), jnp.float32),  # pool halo
            pltpu.VMEM((c["k"] * c["k"] * c["cin"], c["NS"]), jnp.float32),  # im2col
        ]

    out = pl.pallas_call(
        _build_kernel(cfgs, n, out_rows, out_lanes),
        out_shape=jax.ShapeDtypeStruct((out_rows, out_lanes), jnp.float32),
        grid=(1,),
        in_specs=[full_spec(a.shape) for a in inputs],
        out_specs=full_spec((out_rows, out_lanes)),
        scratch_shapes=scratch_shapes,
        compiler_params=pltpu.CompilerParams(dimension_semantics=("arbitrary",)),
    )(*inputs)

    # unpack the single lane-dense output slab (tiny XLA glue)
    outs = []
    for li, c in enumerate(cfgs):
        cout = c["cout"]
        gp = out[:cout, gp_base + li * n:gp_base + (li + 1) * n].T    # (N, Cout)
        outs.append(gp)
    final = out[:c_last, :gp_base].reshape(c_last, n, h2_last, w2_last)
    final = jnp.transpose(final, (1, 0, 2, 3))                        # (N, C, H, W)
    outs.append(final)
    # squeeze_output=True -> [t.squeeze() for t in tempouts]
    return [jnp.squeeze(t) for t in outs]


# ----------------------------------------------------------------------------
# Pure-JAX reference (same training-mode BN semantics) used as a sanity check
# ----------------------------------------------------------------------------
def _reference_forward(x, params):
    specs = params["specs"]
    outs = []
    out = x.astype(jnp.float32)
    for li, (cin, cout, k, pad) in enumerate(specs):
        w = params["w_oihw"][li]
        conv = lax.conv_general_dilated(
            out, w, window_strides=(1, 1),
            padding=[(pad, pad), (pad, pad)],
            dimension_numbers=("NCHW", "OIHW", "NCHW"))
        mu = jnp.mean(conv, axis=(0, 2, 3), keepdims=True)
        var = jnp.mean((conv - mu) ** 2, axis=(0, 2, 3), keepdims=True)
        y = jnp.maximum((conv - mu) / jnp.sqrt(var + 1e-5), 0.0)
        pooled = lax.reduce_window(y, -jnp.inf, lax.max,
                                   (1, 1, 2, 2), (1, 1, 2, 2), "VALID")
        outs.append(jnp.mean(pooled.reshape(pooled.shape[0],
                                            pooled.shape[1], -1), axis=2))
        out = pooled
    outs.append(out)
    return [jnp.squeeze(t) for t in outs]


if __name__ == "__main__":
    key = jax.random.PRNGKey(0)
    pkey, xkey = jax.random.split(key)

    params = make_lenet_params(pkey, in_channels=1, args_channels=4,
                               additional_layers=2)
    # small input consistent with the module: batch=2, 1 channel, 16x16 image
    x = jax.random.normal(xkey, (2, 1, 16, 16), jnp.float32)

    fwd = jax.jit(lambda inp: lenet_forward(inp, params))
    outs = fwd(x)
    outs = [jax.block_until_ready(o) for o in outs]

    expected_shapes = [(2, 4), (2, 8), (2, 16), (2, 16, 2, 2)]
    assert [tuple(o.shape) for o in outs] == expected_shapes, \
        [tuple(o.shape) for o in outs]
    assert all(bool(jnp.all(jnp.isfinite(o))) for o in outs)

    # cross-check against the pure-JAX reference (loose tol: MXU f32 paths)
    refs = _reference_forward(x, params)
    for got, want in zip(outs, refs):
        np.testing.assert_allclose(np.asarray(got), np.asarray(want),
                                   rtol=5e-2, atol=5e-2)

    print("KERNEL_OK")
</pallas_src>

<mosaic_0001>
module attributes {stable_mosaic.version = 11 : i64} {
  func.func @kernel(%arg0: i32, %arg1: memref<1x512xf32, #tpu.memory_space<vmem>>, %arg2: memref<4x25xf32, #tpu.memory_space<vmem>>, %arg3: memref<8x36xf32, #tpu.memory_space<vmem>>, %arg4: memref<16x72xf32, #tpu.memory_space<vmem>>, %arg5: memref<28x1xf32, #tpu.memory_space<vmem>>, %arg6: memref<28x1xf32, #tpu.memory_space<vmem>>, %arg7: memref<16x128xf32, #tpu.memory_space<vmem>>, %arg8: memref<1x580xf32, #tpu.memory_space<vmem>>, %arg9: memref<4x529xf32, #tpu.memory_space<vmem>>, %arg10: memref<25x512xf32, #tpu.memory_space<vmem>>, %arg11: memref<4x146xf32, #tpu.memory_space<vmem>>, %arg12: memref<8x137xf32, #tpu.memory_space<vmem>>, %arg13: memref<36x128xf32, #tpu.memory_space<vmem>>, %arg14: memref<8x42xf32, #tpu.memory_space<vmem>>, %arg15: memref<16x37xf32, #tpu.memory_space<vmem>>, %arg16: memref<72x32xf32, #tpu.memory_space<vmem>>) attributes {dimension_semantics = [#tpu.dimension_semantics<arbitrary>], iteration_bounds = array<i64: 1>, scalar_prefetch = 0 : i64, scratch_operands = 9 : i64, tpu.core_type = #tpu.core_type<tc>, window_params = [{pipeline_mode = #tpu.pipeline_mode<synchronous>, transform_indices = @transform_0, window_bounds = array<i64: 1, 512>}, {pipeline_mode = #tpu.pipeline_mode<synchronous>, transform_indices = @transform_1, window_bounds = array<i64: 4, 25>}, {pipeline_mode = #tpu.pipeline_mode<synchronous>, transform_indices = @transform_2, window_bounds = array<i64: 8, 36>}, {pipeline_mode = #tpu.pipeline_mode<synchronous>, transform_indices = @transform_3, window_bounds = array<i64: 16, 72>}, {pipeline_mode = #tpu.pipeline_mode<synchronous>, transform_indices = @transform_4, window_bounds = array<i64: 28, 1>}, {pipeline_mode = #tpu.pipeline_mode<synchronous>, transform_indices = @transform_5, window_bounds = array<i64: 28, 1>}, {pipeline_mode = #tpu.pipeline_mode<synchronous>, transform_indices = @transform_6, window_bounds = array<i64: 16, 128>}]} {
    %cst = arith.constant 0.000000e+00 : f32
    %0 = vector.broadcast %cst : f32 to vector<16x128xf32>
    %c0 = arith.constant 0 : index
    %c0_0 = arith.constant 0 : index
    %1 = vector.load %arg7[%c0, %c0_0] : memref<16x128xf32, #tpu.memory_space<vmem>>, vector<16x128xf32>
    tpu.vector_store %arg7[%c0, %c0_0], %0 {strides = array<i32>} : memref<16x128xf32, #tpu.memory_space<vmem>>, vector<16x128xf32>,
    %cst_1 = arith.constant 0.000000e+00 : f32
    %2 = vector.broadcast %cst_1 : f32 to vector<1x34xf32>
    %c0_2 = arith.constant 0 : index
    %c0_3 = arith.constant 0 : index
    %3 = vector.load %arg8[%c0_2, %c0_3] : memref<1x580xf32, #tpu.memory_space<vmem>>, vector<1x34xf32>
    tpu.vector_store %arg8[%c0_2, %c0_3], %2 {strides = array<i32>} : memref<1x580xf32, #tpu.memory_space<vmem>>, vector<1x34xf32>,
    %cst_4 = arith.constant 0.000000e+00 : f32
    %4 = vector.broadcast %cst_4 : f32 to vector<1x34xf32>
    %c0_5 = arith.constant 0 : index
    %c546 = arith.constant 546 : index
    %5 = vector.load %arg8[%c0_5, %c546] : memref<1x580xf32, #tpu.memory_space<vmem>>, vector<1x34xf32>
    tpu.vector_store %arg8[%c0_5, %c546], %4 {strides = array<i32>} : memref<1x580xf32, #tpu.memory_space<vmem>>, vector<1x34xf32>,
    %c0_6 = arith.constant 0 : index
    %c0_7 = arith.constant 0 : index
    %6 = vector.load %arg1[%c0_6, %c0_7] : memref<1x512xf32, #tpu.memory_space<vmem>>, vector<1x512xf32>
    %c0_8 = arith.constant 0 : index
    %c34 = arith.constant 34 : index
    %7 = vector.load %arg8[%c0_8, %c34] : memref<1x580xf32, #tpu.memory_space<vmem>>, vector<1x512xf32>
    tpu.vector_store %arg8[%c0_8, %c34], %6 {strides = array<i32>} : memref<1x580xf32, #tpu.memory_space<vmem>>, vector<1x512xf32>,
    %8 = tpu.iota {dimensions = array<i32: 1>} : vector<1x512xi32>
    %c15_i32 = arith.constant 15 : i32
    %9 = vector.broadcast %c15_i32 : i32 to vector<1x512xi32>
    %10 = arith.andi %8, %9 : vector<1x512xi32>
    %c255_i32 = arith.constant 255 : i32
    %11 = vector.broadcast %c255_i32 : i32 to vector<1x512xi32>
    %12 = arith.andi %8, %11 : vector<1x512xi32>
    %c4_i32 = arith.constant 4 : i32
    %13 = vector.broadcast %c4_i32 : i32 to vector<1x512xi32>
    %14 = arith.shrsi %12, %13 : vector<1x512xi32>
    %c2_i32 = arith.constant 2 : i32
    %15 = vector.broadcast %c2_i32 : i32 to vector<1x512xi32>
    %16 = arith.cmpi sge, %14, %15 : vector<1x512xi32>
    %c17_i32 = arith.constant 17 : i32
    %17 = vector.broadcast %c17_i32 : i32 to vector<1x512xi32>
    %18 = arith.cmpi sle, %14, %17 : vector<1x512xi32>
    %19 = arith.andi %16, %18 : vector<1x512xi1>
    %c1_i32 = arith.constant 1 : i32
    %20 = vector.broadcast %c1_i32 : i32 to vector<1x512xi32>
    %21 = arith.cmpi sge, %14, %20 : vector<1x512xi32>
    %c16_i32 = arith.constant 16 : i32
    %22 = vector.broadcast %c16_i32 : i32 to vector<1x512xi32>
    %23 = arith.cmpi sle, %14, %22 : vector<1x512xi32>
    %24 = arith.andi %21, %23 : vector<1x512xi1>
    %c0_i32 = arith.constant 0 : i32
    %25 = vector.broadcast %c0_i32 : i32 to vector<1x512xi32>
    %26 = arith.cmpi sge, %14, %25 : vector<1x512xi32>
    %c15_i32_9 = arith.constant 15 : i32
    %27 = vector.broadcast %c15_i32_9 : i32 to vector<1x512xi32>
    %28 = arith.cmpi sle, %14, %27 : vector<1x512xi32>
    %29 = arith.andi %26, %28 : vector<1x512xi1>
    %c-1_i32 = arith.constant -1 : i32
    %30 = vector.broadcast %c-1_i32 : i32 to vector<1x512xi32>
    %31 = arith.cmpi sge, %14, %30 : vector<1x512xi32>
    %c14_i32 = arith.constant 14 : i32
    %32 = vector.broadcast %c14_i32 : i32 to vector<1x512xi32>
    %33 = arith.cmpi sle, %14, %32 : vector<1x512xi32>
    %34 = arith.andi %31, %33 : vector<1x512xi1>
    %c-2_i32 = arith.constant -2 : i32
    %35 = vector.broadcast %c-2_i32 : i32 to vector<1x512xi32>
    %36 = arith.cmpi sge, %14, %35 : vector<1x512xi32>
    %c13_i32 = arith.constant 13 : i32
    %37 = vector.broadcast %c13_i32 : i32 to vector<1x512xi32>
    %38 = arith.cmpi sle, %14, %37 : vector<1x512xi32>
    %39 = arith.andi %36, %38 : vector<1x512xi1>
    %c2_i32_10 = arith.constant 2 : i32
    %40 = vector.broadcast %c2_i32_10 : i32 to vector<1x512xi32>
    %41 = arith.cmpi sge, %10, %40 : vector<1x512xi32>
    %c17_i32_11 = arith.constant 17 : i32
    %42 = vector.broadcast %c17_i32_11 : i32 to vector<1x512xi32>
    %43 = arith.cmpi sle, %10, %42 : vector<1x512xi32>
    %44 = arith.andi %41, %43 : vector<1x512xi1>
    %c1_i32_12 = arith.constant 1 : i32
    %45 = vector.broadcast %c1_i32_12 : i32 to vector<1x512xi32>
    %46 = arith.cmpi sge, %10, %45 : vector<1x512xi32>
    %c16_i32_13 = arith.constant 16 : i32
    %47 = vector.broadcast %c16_i32_13 : i32 to vector<1x512xi32>
    %48 = arith.cmpi sle, %10, %47 : vector<1x512xi32>
    %49 = arith.andi %46, %48 : vector<1x512xi1>
    %c0_i32_14 = arith.constant 0 : i32
    %50 = vector.broadcast %c0_i32_14 : i32 to vector<1x512xi32>
    %51 = arith.cmpi sge, %10, %50 : vector<1x512xi32>
    %c15_i32_15 = arith.constant 15 : i32
    %52 = vector.broadcast %c15_i32_15 : i32 to vector<1x512xi32>
    %53 = arith.cmpi sle, %10, %52 : vector<1x512xi32>
    %54 = arith.andi %51, %53 : vector<1x512xi1>
    %c-1_i32_16 = arith.constant -1 : i32
    %55 = vector.broadcast %c-1_i32_16 : i32 to vector<1x512xi32>
    %56 = arith.cmpi sge, %10, %55 : vector<1x512xi32>
    %c14_i32_17 = arith.constant 14 : i32
    %57 = vector.broadcast %c14_i32_17 : i32 to vector<1x512xi32>
    %58 = arith.cmpi sle, %10, %57 : vector<1x512xi32>
    %59 = arith.andi %56, %58 : vector<1x512xi1>
    %c-2_i32_18 = arith.constant -2 : i32
    %60 = vector.broadcast %c-2_i32_18 : i32 to vector<1x512xi32>
    %61 = arith.cmpi sge, %10, %60 : vector<1x512xi32>
    %c13_i32_19 = arith.constant 13 : i32
    %62 = vector.broadcast %c13_i32_19 : i32 to vector<1x512xi32>
    %63 = arith.cmpi sle, %10, %62 : vector<1x512xi32>
    %64 = arith.andi %61, %63 : vector<1x512xi1>
    %c0_20 = arith.constant 0 : index
    %c0_21 = arith.constant 0 : index
    %65 = vector.load %arg8[%c0_20, %c0_21] : memref<1x580xf32, #tpu.memory_space<vmem>>, vector<1x512xf32>
    %66 = arith.andi %19, %44 : vector<1x512xi1>
    %cst_22 = arith.constant 0.000000e+00 : f32
    %67 = vector.broadcast %cst_22 : f32 to vector<1x512xf32>
    %68 = arith.select %66, %65, %67 : vector<1x512xi1>, vector<1x512xf32>
    %c0_23 = arith.constant 0 : index
    %c0_24 = arith.constant 0 : index
    %69 = vector.load %arg10[%c0_23, %c0_24] : memref<25x512xf32, #tpu.memory_space<vmem>>, vector<1x512xf32>
    tpu.vector_store %arg10[%c0_23, %c0_24], %68 {strides = array<i32>} : memref<25x512xf32, #tpu.memory_space<vmem>>, vector<1x512xf32>,
    %c0_25 = arith.constant 0 : index
    %c1 = arith.constant 1 : index
    %70 = vector.load %arg8[%c0_25, %c1] : memref<1x580xf32, #tpu.memory_space<vmem>>, vector<1x512xf32>
    %71 = arith.andi %19, %49 : vector<1x512xi1>
    %cst_26 = arith.constant 0.000000e+00 : f32
    %72 = vector.broadcast %cst_26 : f32 to vector<1x512xf32>
    %73 = arith.select %71, %70, %72 : vector<1x512xi1>, vector<1x512xf32>
    %c1_27 = arith.constant 1 : index
    %c0_28 = arith.constant 0 : index
    %74 = vector.load %arg10[%c1_27, %c0_28] : memref<25x512xf32, #tpu.memory_space<vmem>>, vector<1x512xf32>
    tpu.vector_store %arg10[%c1_27, %c0_28], %73 {strides = array<i32>} : memref<25x512xf32, #tpu.memory_space<vmem>>, vector<1x512xf32>,
    %c0_29 = arith.constant 0 : index
    %c2 = arith.constant 2 : index
    %75 = vector.load %arg8[%c0_29, %c2] : memref<1x580xf32, #tpu.memory_space<vmem>>, vector<1x512xf32>
    %76 = arith.andi %19, %54 : vector<1x512xi1>
    %cst_30 = arith.constant 0.000000e+00 : f32
    %77 = vector.broadcast %cst_30 : f32 to vector<1x512xf32>
    %78 = arith.select %76, %75, %77 : vector<1x512xi1>, vector<1x512xf32>
    %c2_31 = arith.constant 2 : index
    %c0_32 = arith.constant 0 : index
    %79 = vector.load %arg10[%c2_31, %c0_32] : memref<25x512xf32, #tpu.memory_space<vmem>>, vector<1x512xf32>
    tpu.vector_store %arg10[%c2_31, %c0_32], %78 {strides = array<i32>} : memref<25x512xf32, #tpu.memory_space<vmem>>, vector<1x512xf32>,
    %c0_33 = arith.constant 0 : index
    %c3 = arith.constant 3 : index
    %80 = vector.load %arg8[%c0_33, %c3] : memref<1x580xf32, #tpu.memory_space<vmem>>, vector<1x512xf32>
    %81 = arith.andi %19, %59 : vector<1x512xi1>
    %cst_34 = arith.constant 0.000000e+00 : f32
    %82 = vector.broadcast %cst_34 : f32 to vector<1x512xf32>
    %83 = arith.select %81, %80, %82 : vector<1x512xi1>, vector<1x512xf32>
    %c3_35 = arith.constant 3 : index
    %c0_36 = arith.constant 0 : index
    %84 = vector.load %arg10[%c3_35, %c0_36] : memref<25x512xf32, #tpu.memory_space<vmem>>, vector<1x512xf32>
    tpu.vector_store %arg10[%c3_35, %c0_36], %83 {strides = array<i32>} : memref<25x512xf32, #tpu.memory_space<vmem>>, vector<1x512xf32>,
    %c0_37 = arith.constant 0 : index
    %c4 = arith.constant 4 : index
    %85 = vector.load %arg8[%c0_37, %c4] : memref<1x580xf32, #tpu.memory_space<vmem>>, vector<1x512xf32>
    %86 = arith.andi %19, %64 : vector<1x512xi1>
    %cst_38 = arith.constant 0.000000e+00 : f32
    %87 = vector.broadcast %cst_38 : f32 to vector<1x512xf32>
    %88 = arith.select %86, %85, %87 : vector<1x512xi1>, vector<1x512xf32>
    %c4_39 = arith.constant 4 : index
    %c0_40 = arith.constant 0 : index
    %89 = vector.load %arg10[%c4_39, %c0_40] : memref<25x512xf32, #tpu.memory_space<vmem>>, vector<1x512xf32>
    tpu.vector_store %arg10[%c4_39, %c0_40], %88 {strides = array<i32>} : memref<25x512xf32, #tpu.memory_space<vmem>>, vector<1x512xf32>,
    %c0_41 = arith.constant 0 : index
    %c16 = arith.constant 16 : index
    %90 = vector.load %arg8[%c0_41, %c16] : memref<1x580xf32, #tpu.memory_space<vmem>>, vector<1x512xf32>
    %91 = arith.andi %24, %44 : vector<1x512xi1>
    %cst_42 = arith.constant 0.000000e+00 : f32
    %92 = vector.broadcast %cst_42 : f32 to vector<1x512xf32>
    %93 = arith.select %91, %90, %92 : vector<1x512xi1>, vector<1x512xf32>
    %c5 = arith.constant 5 : index
    %c0_43 = arith.constant 0 : index
    %94 = vector.load %arg10[%c5, %c0_43] : memref<25x512xf32, #tpu.memory_space<vmem>>, vector<1x512xf32>
    tpu.vector_store %arg10[%c5, %c0_43], %93 {strides = array<i32>} : memref<25x512xf32, #tpu.memory_space<vmem>>, vector<1x512xf32>,
    %c0_44 = arith.constant 0 : index
    %c17 = arith.constant 17 : index
    %95 = vector.load %arg8[%c0_44, %c17] : memref<1x580xf32, #tpu.memory_space<vmem>>, vector<1x512xf32>
    %96 = arith.andi %24, %49 : vector<1x512xi1>
    %cst_45 = arith.constant 0.000000e+00 : f32
    %97 = vector.broadcast %cst_45 : f32 to vector<1x512xf32>
    %98 = arith.select %96, %95, %97 : vector<1x512xi1>, vector<1x512xf32>
    %c6 = arith.constant 6 : index
    %c0_46 = arith.constant 0 : index
    %99 = vector.load %arg10[%c6, %c0_46] : memref<25x512xf32, #tpu.memory_space<vmem>>, vector<1x512xf32>
    tpu.vector_store %arg10[%c6, %c0_46], %98 {strides = array<i32>} : memref<25x512xf32, #tpu.memory_space<vmem>>, vector<1x512xf32>,
    %c0_47 = arith.constant 0 : index
    %c18 = arith.constant 18 : index
    %100 = vector.load %arg8[%c0_47, %c18] : memref<1x580xf32, #tpu.memory_space<vmem>>, vector<1x512xf32>
    %101 = arith.andi %24, %54 : vector<1x512xi1>
    %cst_48 = arith.constant 0.000000e+00 : f32
    %102 = vector.broadcast %cst_48 : f32 to vector<1x512xf32>
    %103 = arith.select %101, %100, %102 : vector<1x512xi1>, vector<1x512xf32>
    %c7 = arith.constant 7 : index
    %c0_49 = arith.constant 0 : index
    %104 = vector.load %arg10[%c7, %c0_49] : memref<25x512xf32, #tpu.memory_space<vmem>>, vector<1x512xf32>
    tpu.vector_store %arg10[%c7, %c0_49], %103 {strides = array<i32>} : memref<25x512xf32, #tpu.memory_space<vmem>>, vector<1x512xf32>,
    %c0_50 = arith.constant 0 : index
    %c19 = arith.constant 19 : index
    %105 = vector.load %arg8[%c0_50, %c19] : memref<1x580xf32, #tpu.memory_space<vmem>>, vector<1x512xf32>
    %106 = arith.andi %24, %59 : vector<1x512xi1>
    %cst_51 = arith.constant 0.000000e+00 : f32
    %107 = vector.broadcast %cst_51 : f32 to vector<1x512xf32>
    %108 = arith.select %106, %105, %107 : vector<1x512xi1>, vector<1x512xf32>
    %c8 = arith.constant 8 : index
    %c0_52 = arith.constant 0 : index
    %109 = vector.load %arg10[%c8, %c0_52] : memref<25x512xf32, #tpu.memory_space<vmem>>, vector<1x512xf32>
    tpu.vector_store %arg10[%c8, %c0_52], %108 {strides = array<i32>} : memref<25x512xf32, #tpu.memory_space<vmem>>, vector<1x512xf32>,
    %c0_53 = arith.constant 0 : index
    %c20 = arith.constant 20 : index
    %110 = vector.load %arg8[%c0_53, %c20] : memref<1x580xf32, #tpu.memory_space<vmem>>, vector<1x512xf32>
    %111 = arith.andi %24, %64 : vector<1x512xi1>
    %cst_54 = arith.constant 0.000000e+00 : f32
    %112 = vector.broadcast %cst_54 : f32 to vector<1x512xf32>
    %113 = arith.select %111, %110, %112 : vector<1x512xi1>, vector<1x512xf32>
    %c9 = arith.constant 9 : index
    %c0_55 = arith.constant 0 : index
    %114 = vector.load %arg10[%c9, %c0_55] : memref<25x512xf32, #tpu.memory_space<vmem>>, vector<1x512xf32>
    tpu.vector_store %arg10[%c9, %c0_55], %113 {strides = array<i32>} : memref<25x512xf32, #tpu.memory_space<vmem>>, vector<1x512xf32>,
    %c0_56 = arith.constant 0 : index
    %c32 = arith.constant 32 : index
    %115 = vector.load %arg8[%c0_56, %c32] : memref<1x580xf32, #tpu.memory_space<vmem>>, vector<1x512xf32>
    %116 = arith.andi %29, %44 : vector<1x512xi1>
    %cst_57 = arith.constant 0.000000e+00 : f32
    %117 = vector.broadcast %cst_57 : f32 to vector<1x512xf32>
    %118 = arith.select %116, %115, %117 : vector<1x512xi1>, vector<1x512xf32>
    %c10 = arith.constant 10 : index
    %c0_58 = arith.constant 0 : index
    %119 = vector.load %arg10[%c10, %c0_58] : memref<25x512xf32, #tpu.memory_space<vmem>>, vector<1x512xf32>
    tpu.vector_store %arg10[%c10, %c0_58], %118 {strides = array<i32>} : memref<25x512xf32, #tpu.memory_space<vmem>>, vector<1x512xf32>,
    %c0_59 = arith.constant 0 : index
    %c33 = arith.constant 33 : index
    %120 = vector.load %arg8[%c0_59, %c33] : memref<1x580xf32, #tpu.memory_space<vmem>>, vector<1x512xf32>
    %121 = arith.andi %29, %49 : vector<1x512xi1>
    %cst_60 = arith.constant 0.000000e+00 : f32
    %122 = vector.broadcast %cst_60 : f32 to vector<1x512xf32>
    %123 = arith.select %121, %120, %122 : vector<1x512xi1>, vector<1x512xf32>
    %c11 = arith.constant 11 : index
    %c0_61 = arith.constant 0 : index
    %124 = vector.load %arg10[%c11, %c0_61] : memref<25x512xf32, #tpu.memory_space<vmem>>, vector<1x512xf32>
    tpu.vector_store %arg10[%c11, %c0_61], %123 {strides = array<i32>} : memref<25x512xf32, #tpu.memory_space<vmem>>, vector<1x512xf32>,
    %c0_62 = arith.constant 0 : index
    %c34_63 = arith.constant 34 : index
    %125 = vector.load %arg8[%c0_62, %c34_63] : memref<1x580xf32, #tpu.memory_space<vmem>>, vector<1x512xf32>
    %126 = arith.andi %29, %54 : vector<1x512xi1>
    %cst_64 = arith.constant 0.000000e+00 : f32
    %127 = vector.broadcast %cst_64 : f32 to vector<1x512xf32>
    %128 = arith.select %126, %125, %127 : vector<1x512xi1>, vector<1x512xf32>
    %c12 = arith.constant 12 : index
    %c0_65 = arith.constant 0 : index
    %129 = vector.load %arg10[%c12, %c0_65] : memref<25x512xf32, #tpu.memory_space<vmem>>, vector<1x512xf32>
    tpu.vector_store %arg10[%c12, %c0_65], %128 {strides = array<i32>} : memref<25x512xf32, #tpu.memory_space<vmem>>, vector<1x512xf32>,
    %c0_66 = arith.constant 0 : index
    %c35 = arith.constant 35 : index
    %130 = vector.load %arg8[%c0_66, %c35] : memref<1x580xf32, #tpu.memory_space<vmem>>, vector<1x512xf32>
    %131 = arith.andi %29, %59 : vector<1x512xi1>
    %cst_67 = arith.constant 0.000000e+00 : f32
    %132 = vector.broadcast %cst_67 : f32 to vector<1x512xf32>
    %133 = arith.select %131, %130, %132 : vector<1x512xi1>, vector<1x512xf32>
    %c13 = arith.constant 13 : index
    %c0_68 = arith.constant 0 : index
    %134 = vector.load %arg10[%c13, %c0_68] : memref<25x512xf32, #tpu.memory_space<vmem>>, vector<1x512xf32>
    tpu.vector_store %arg10[%c13, %c0_68], %133 {strides = array<i32>} : memref<25x512xf32, #tpu.memory_space<vmem>>, vector<1x512xf32>,
    %c0_69 = arith.constant 0 : index
    %c36 = arith.constant 36 : index
    %135 = vector.load %arg8[%c0_69, %c36] : memref<1x580xf32, #tpu.memory_space<vmem>>, vector<1x512xf32>
    %136 = arith.andi %29, %64 : vector<1x512xi1>
    %cst_70 = arith.constant 0.000000e+00 : f32
    %137 = vector.broadcast %cst_70 : f32 to vector<1x512xf32>
    %138 = arith.select %136, %135, %137 : vector<1x512xi1>, vector<1x512xf32>
    %c14 = arith.constant 14 : index
    %c0_71 = arith.constant 0 : index
    %139 = vector.load %arg10[%c14, %c0_71] : memref<25x512xf32, #tpu.memory_space<vmem>>, vector<1x512xf32>
    tpu.vector_store %arg10[%c14, %c0_71], %138 {strides = array<i32>} : memref<25x512xf32, #tpu.memory_space<vmem>>, vector<1x512xf32>,
    %c0_72 = arith.constant 0 : index
    %c48 = arith.constant 48 : index
    %140 = vector.load %arg8[%c0_72, %c48] : memref<1x580xf32, #tpu.memory_space<vmem>>, vector<1x512xf32>
    %141 = arith.andi %34, %44 : vector<1x512xi1>
    %cst_73 = arith.constant 0.000000e+00 : f32
    %142 = vector.broadcast %cst_73 : f32 to vector<1x512xf32>
    %143 = arith.select %141, %140, %142 : vector<1x512xi1>, vector<1x512xf32>
    %c15 = arith.constant 15 : index
    %c0_74 = arith.constant 0 : index
    %144 = vector.load %arg10[%c15, %c0_74] : memref<25x512xf32, #tpu.memory_space<vmem>>, vector<1x512xf32>
    tpu.vector_store %arg10[%c15, %c0_74], %143 {strides = array<i32>} : memref<25x512xf32, #tpu.memory_space<vmem>>, vector<1x512xf32>,
    %c0_75 = arith.constant 0 : index
    %c49 = arith.constant 49 : index
    %145 = vector.load %arg8[%c0_75, %c49] : memref<1x580xf32, #tpu.memory_space<vmem>>, vector<1x512xf32>
    %146 = arith.andi %34, %49 : vector<1x512xi1>
    %cst_76 = arith.constant 0.000000e+00 : f32
    %147 = vector.broadcast %cst_76 : f32 to vector<1x512xf32>
    %148 = arith.select %146, %145, %147 : vector<1x512xi1>, vector<1x512xf32>
    %c16_77 = arith.constant 16 : index
    %c0_78 = arith.constant 0 : index
    %149 = vector.load %arg10[%c16_77, %c0_78] : memref<25x512xf32, #tpu.memory_space<vmem>>, vector<1x512xf32>
    tpu.vector_store %arg10[%c16_77, %c0_78], %148 {strides = array<i32>} : memref<25x512xf32, #tpu.memory_space<vmem>>, vector<1x512xf32>,
    %c0_79 = arith.constant 0 : index
    %c50 = arith.constant 50 : index
    %150 = vector.load %arg8[%c0_79, %c50] : memref<1x580xf32, #tpu.memory_space<vmem>>, vector<1x512xf32>
    %151 = arith.andi %34, %54 : vector<1x512xi1>
    %cst_80 = arith.constant 0.000000e+00 : f32
    %152 = vector.broadcast %cst_80 : f32 to vector<1x512xf32>
    %153 = arith.select %151, %150, %152 : vector<1x512xi1>, vector<1x512xf32>
    %c17_81 = arith.constant 17 : index
    %c0_82 = arith.constant 0 : index
    %154 = vector.load %arg10[%c17_81, %c0_82] : memref<25x512xf32, #tpu.memory_space<vmem>>, vector<1x512xf32>
    tpu.vector_store %arg10[%c17_81, %c0_82], %153 {strides = array<i32>} : memref<25x512xf32, #tpu.memory_space<vmem>>, vector<1x512xf32>,
    %c0_83 = arith.constant 0 : index
    %c51 = arith.constant 51 : index
    %155 = vector.load %arg8[%c0_83, %c51] : memref<1x580xf32, #tpu.memory_space<vmem>>, vector<1x512xf32>
    %156 = arith.andi %34, %59 : vector<1x512xi1>
    %cst_84 = arith.constant 0.000000e+00 : f32
    %157 = vector.broadcast %cst_84 : f32 to vector<1x512xf32>
    %158 = arith.select %156, %155, %157 : vector<1x512xi1>, vector<1x512xf32>
    %c18_85 = arith.constant 18 : index
    %c0_86 = arith.constant 0 : index
    %159 = vector.load %arg10[%c18_85, %c0_86] : memref<25x512xf32, #tpu.memory_space<vmem>>, vector<1x512xf32>
    tpu.vector_store %arg10[%c18_85, %c0_86], %158 {strides = array<i32>} : memref<25x512xf32, #tpu.memory_space<vmem>>, vector<1x512xf32>,
    %c0_87 = arith.constant 0 : index
    %c52 = arith.constant 52 : index
    %160 = vector.load %arg8[%c0_87, %c52] : memref<1x580xf32, #tpu.memory_space<vmem>>, vector<1x512xf32>
    %161 = arith.andi %34, %64 : vector<1x512xi1>
    %cst_88 = arith.constant 0.000000e+00 : f32
    %162 = vector.broadcast %cst_88 : f32 to vector<1x512xf32>
    %163 = arith.select %161, %160, %162 : vector<1x512xi1>, vector<1x512xf32>
    %c19_89 = arith.constant 19 : index
    %c0_90 = arith.constant 0 : index
    %164 = vector.load %arg10[%c19_89, %c0_90] : memref<25x512xf32, #tpu.memory_space<vmem>>, vector<1x512xf32>
    tpu.vector_store %arg10[%c19_89, %c0_90], %163 {strides = array<i32>} : memref<25x512xf32, #tpu.memory_space<vmem>>, vector<1x512xf32>,
    %c0_91 = arith.constant 0 : index
    %c64 = arith.constant 64 : index
    %165 = vector.load %arg8[%c0_91, %c64] : memref<1x580xf32, #tpu.memory_space<vmem>>, vector<1x512xf32>
    %166 = arith.andi %39, %44 : vector<1x512xi1>
    %cst_92 = arith.constant 0.000000e+00 : f32
    %167 = vector.broadcast %cst_92 : f32 to vector<1x512xf32>
    %168 = arith.select %166, %165, %167 : vector<1x512xi1>, vector<1x512xf32>
    %c20_93 = arith.constant 20 : index
    %c0_94 = arith.constant 0 : index
    %169 = vector.load %arg10[%c20_93, %c0_94] : memref<25x512xf32, #tpu.memory_space<vmem>>, vector<1x512xf32>
    tpu.vector_store %arg10[%c20_93, %c0_94], %168 {strides = array<i32>} : memref<25x512xf32, #tpu.memory_space<vmem>>, vector<1x512xf32>,
    %c0_95 = arith.constant 0 : index
    %c65 = arith.constant 65 : index
    %170 = vector.load %arg8[%c0_95, %c65] : memref<1x580xf32, #tpu.memory_space<vmem>>, vector<1x512xf32>
    %171 = arith.andi %39, %49 : vector<1x512xi1>
    %cst_96 = arith.constant 0.000000e+00 : f32
    %172 = vector.broadcast %cst_96 : f32 to vector<1x512xf32>
    %173 = arith.select %171, %170, %172 : vector<1x512xi1>, vector<1x512xf32>
    %c21 = arith.constant 21 : index
    %c0_97 = arith.constant 0 : index
    %174 = vector.load %arg10[%c21, %c0_97] : memref<25x512xf32, #tpu.memory_space<vmem>>, vector<1x512xf32>
    tpu.vector_store %arg10[%c21, %c0_97], %173 {strides = array<i32>} : memref<25x512xf32, #tpu.memory_space<vmem>>, vector<1x512xf32>,
    %c0_98 = arith.constant 0 : index
    %c66 = arith.constant 66 : index
    %175 = vector.load %arg8[%c0_98, %c66] : memref<1x580xf32, #tpu.memory_space<vmem>>, vector<1x512xf32>
    %176 = arith.andi %39, %54 : vector<1x512xi1>
    %cst_99 = arith.constant 0.000000e+00 : f32
    %177 = vector.broadcast %cst_99 : f32 to vector<1x512xf32>
    %178 = arith.select %176, %175, %177 : vector<1x512xi1>, vector<1x512xf32>
    %c22 = arith.constant 22 : index
    %c0_100 = arith.constant 0 : index
    %179 = vector.load %arg10[%c22, %c0_100] : memref<25x512xf32, #tpu.memory_space<vmem>>, vector<1x512xf32>
    tpu.vector_store %arg10[%c22, %c0_100], %178 {strides = array<i32>} : memref<25x512xf32, #tpu.memory_space<vmem>>, vector<1x512xf32>,
    %c0_101 = arith.constant 0 : index
    %c67 = arith.constant 67 : index
    %180 = vector.load %arg8[%c0_101, %c67] : memref<1x580xf32, #tpu.memory_space<vmem>>, vector<1x512xf32>
    %181 = arith.andi %39, %59 : vector<1x512xi1>
    %cst_102 = arith.constant 0.000000e+00 : f32
    %182 = vector.broadcast %cst_102 : f32 to vector<1x512xf32>
    %183 = arith.select %181, %180, %182 : vector<1x512xi1>, vector<1x512xf32>
    %c23 = arith.constant 23 : index
    %c0_103 = arith.constant 0 : index
    %184 = vector.load %arg10[%c23, %c0_103] : memref<25x512xf32, #tpu.memory_space<vmem>>, vector<1x512xf32>
    tpu.vector_store %arg10[%c23, %c0_103], %183 {strides = array<i32>} : memref<25x512xf32, #tpu.memory_space<vmem>>, vector<1x512xf32>,
    %c0_104 = arith.constant 0 : index
    %c68 = arith.constant 68 : index
    %185 = vector.load %arg8[%c0_104, %c68] : memref<1x580xf32, #tpu.memory_space<vmem>>, vector<1x512xf32>
    %186 = arith.andi %39, %64 : vector<1x512xi1>
    %cst_105 = arith.constant 0.000000e+00 : f32
    %187 = vector.broadcast %cst_105 : f32 to vector<1x512xf32>
    %188 = arith.select %186, %185, %187 : vector<1x512xi1>, vector<1x512xf32>
    %c24 = arith.constant 24 : index
    %c0_106 = arith.constant 0 : index
    %189 = vector.load %arg10[%c24, %c0_106] : memref<25x512xf32, #tpu.memory_space<vmem>>, vector<1x512xf32>
    tpu.vector_store %arg10[%c24, %c0_106], %188 {strides = array<i32>} : memref<25x512xf32, #tpu.memory_space<vmem>>, vector<1x512xf32>,
    %c0_107 = arith.constant 0 : index
    %c0_108 = arith.constant 0 : index
    %190 = vector.load %arg2[%c0_107, %c0_108] : memref<4x25xf32, #tpu.memory_space<vmem>>, vector<4x25xf32>
    %c0_109 = arith.constant 0 : index
    %c0_110 = arith.constant 0 : index
    %191 = vector.load %arg10[%c0_109, %c0_110] : memref<25x512xf32, #tpu.memory_space<vmem>>, vector<25x512xf32>
    %cst_111 = arith.constant dense<0.000000e+00> : vector<4x512xf32>
    %192 = tpu.matmul %190, %191, %cst_111 {dimension_numbers = #tpu.dot_dimension_numbers<[1], [0], [0], [1], [0, 0, 1, 1], [], []>} : vector<4x25xf32>, vector<25x512xf32>, vector<4x512xf32> -> vector<4x512xf32>
    %c0_112 = arith.constant 0 : index
    %c0_113 = arith.constant 0 : index
    %193 = vector.load %arg5[%c0_112, %c0_113] : memref<28x1xf32, #tpu.memory_space<vmem>>, vector<4x1xf32>
    %c0_114 = arith.constant 0 : index
    %c0_115 = arith.constant 0 : index
    %194 = vector.load %arg6[%c0_114, %c0_115] : memref<28x1xf32, #tpu.memory_space<vmem>>, vector<4x1xf32>
    %cst_116 = arith.constant dense<0.000000e+00> : vector<4xf32>
    %195 = vector.multi_reduction <add>, %192, %cst_116 [1] : vector<4x512xf32> to vector<4xf32>
    %196 = vector.shape_cast %195 : vector<4xf32> to vector<4x1xf32>
    %cst_117 = arith.constant 0.001953125 : f32
    %197 = vector.broadcast %cst_117 : f32 to vector<4x1xf32>
    %198 = arith.mulf %196, %197 : vector<4x1xf32>
    %199 = arith.mulf %192, %192 : vector<4x512xf32>
    %cst_118 = arith.constant dense<0.000000e+00> : vector<4xf32>
    %200 = vector.multi_reduction <add>, %199, %cst_118 [1] : vector<4x512xf32> to vector<4xf32>
    %201 = vector.shape_cast %200 : vector<4xf32> to vector<4x1xf32>
    %cst_119 = arith.constant 0.001953125 : f32
    %202 = vector.broadcast %cst_119 : f32 to vector<4x1xf32>
    %203 = arith.mulf %201, %202 : vector<4x1xf32>
    %204 = arith.mulf %198, %198 : vector<4x1xf32>
    %205 = arith.subf %203, %204 : vector<4x1xf32>
    %cst_120 = arith.constant 0.000000e+00 : f32
    %206 = vector.broadcast %cst_120 : f32 to vector<4x1xf32>
    %207 = arith.maximumf %205, %206 : vector<4x1xf32>
    %cst_121 = arith.constant 9.99999974E-6 : f32
    %208 = vector.broadcast %cst_121 : f32 to vector<4x1xf32>
    %209 = arith.addf %207, %208 : vector<4x1xf32>
    %210 = math.rsqrt %209 : vector<4x1xf32>
    %211 = arith.mulf %210, %193 : vector<4x1xf32>
    %212 = vector.broadcast %198 : vector<4x1xf32> to vector<4x512xf32>
    %213 = arith.subf %192, %212 : vector<4x512xf32>
    %214 = vector.broadcast %211 : vector<4x1xf32> to vector<4x512xf32>
    %215 = arith.mulf %213, %214 : vector<4x512xf32>
    %216 = vector.broadcast %194 : vector<4x1xf32> to vector<4x512xf32>
    %217 = arith.addf %215, %216 : vector<4x512xf32>
    %cst_122 = arith.constant 0.000000e+00 : f32
    %218 = vector.broadcast %cst_122 : f32 to vector<4x512xf32>
    %219 = arith.maximumf %217, %218 : vector<4x512xf32>
    %cst_123 = arith.constant 0.000000e+00 : f32
    %220 = vector.broadcast %cst_123 : f32 to vector<4x17xf32>
    %c0_124 = arith.constant 0 : index
    %c512 = arith.constant 512 : index
    %221 = vector.load %arg9[%c0_124, %c512] : memref<4x529xf32, #tpu.memory_space<vmem>>, vector<4x17xf32>
    tpu.vector_store %arg9[%c0_124, %c512], %220 {strides = array<i32>} : memref<4x529xf32, #tpu.memory_space<vmem>>, vector<4x17xf32>,
    %c0_125 = arith.constant 0 : index
    %c0_126 = arith.constant 0 : index
    %222 = vector.load %arg9[%c0_125, %c0_126] : memref<4x529xf32, #tpu.memory_space<vmem>>, vector<4x512xf32>
    tpu.vector_store %arg9[%c0_125, %c0_126], %219 {strides = array<i32>} : memref<4x529xf32, #tpu.memory_space<vmem>>, vector<4x512xf32>,
    %223 = tpu.iota {dimensions = array<i32: 1>} : vector<1x64xi32>
    %c3_i32 = arith.constant 3 : i32
    %224 = vector.broadcast %c3_i32 : i32 to vector<1x64xi32>
    %225 = arith.shrsi %223, %224 : vector<1x64xi32>
    %c7_i32 = arith.constant 7 : i32
    %226 = vector.broadcast %c7_i32 : i32 to vector<1x64xi32>
    %227 = arith.andi %223, %226 : vector<1x64xi32>
    %c5_i32 = arith.constant 5 : i32
    %228 = vector.broadcast %c5_i32 : i32 to vector<1x64xi32>
    %229 = arith.shli %225, %228 : vector<1x64xi32>
    %c1_i32_127 = arith.constant 1 : i32
    %230 = vector.broadcast %c1_i32_127 : i32 to vector<1x64xi32>
    %231 = arith.shli %227, %230 : vector<1x64xi32>
    %232 = arith.addi %229, %231 : vector<1x64xi32>
    %233 = tpu.iota {dimensions = array<i32: 0>} : vector<256x64xi32>
    %234 = vector.broadcast %232 : vector<1x64xi32> to vector<256x64xi32>
    %235 = arith.cmpi eq, %233, %234 : vector<256x64xi32>
    %cst_128 = arith.constant 1.000000e+00 : f32
    %cst_129 = arith.constant 0.000000e+00 : f32
    %236 = vector.broadcast %cst_128 : f32 to vector<256x64xf32>
    %237 = vector.broadcast %cst_129 : f32 to vector<256x64xf32>
    %238 = arith.select %235, %236, %237 : vector<256x64xi1>, vector<256x64xf32>
    %cst_130 = arith.constant 0.000000e+00 : f32
    %239 = vector.broadcast %cst_130 : f32 to vector<4x9xf32>
    %c0_131 = arith.constant 0 : index
    %c0_132 = arith.constant 0 : index
    %240 = vector.load %arg11[%c0_131, %c0_132] : memref<4x146xf32, #tpu.memory_space<vmem>>, vector<4x9xf32>
    tpu.vector_store %arg11[%c0_131, %c0_132], %239 {strides = array<i32>} : memref<4x146xf32, #tpu.memory_space<vmem>>, vector<4x9xf32>,
    %cst_133 = arith.constant 0.000000e+00 : f32
    %241 = vector.broadcast %cst_133 : f32 to vector<4x9xf32>
    %c0_134 = arith.constant 0 : index
    %c137 = arith.constant 137 : index
    %242 = vector.load %arg11[%c0_134, %c137] : memref<4x146xf32, #tpu.memory_space<vmem>>, vector<4x9xf32>
    tpu.vector_store %arg11[%c0_134, %c137], %241 {strides = array<i32>} : memref<4x146xf32, #tpu.memory_space<vmem>>, vector<4x9xf32>,
    %c0_135 = arith.constant 0 : index
    %c0_136 = arith.constant 0 : index
    %243 = vector.load %arg9[%c0_135, %c0_136] : memref<4x529xf32, #tpu.memory_space<vmem>>, vector<4x256xf32>
    %c0_137 = arith.constant 0 : index
    %c1_138 = arith.constant 1 : index
    %244 = vector.load %arg9[%c0_137, %c1_138] : memref<4x529xf32, #tpu.memory_space<vmem>>, vector<4x256xf32>
    %245 = arith.maximumf %243, %244 : vector<4x256xf32>
    %c0_139 = arith.constant 0 : index
    %c16_140 = arith.constant 16 : index
    %246 = vector.load %arg9[%c0_139, %c16_140] : memref<4x529xf32, #tpu.memory_space<vmem>>, vector<4x256xf32>
    %c0_141 = arith.constant 0 : index
    %c17_142 = arith.constant 17 : index
    %247 = vector.load %arg9[%c0_141, %c17_142] : memref<4x529xf32, #tpu.memory_space<vmem>>, vector<4x256xf32>
    %248 = arith.maximumf %246, %247 : vector<4x256xf32>
    %249 = arith.maximumf %245, %248 : vector<4x256xf32>
    %cst_143 = arith.constant dense<0.000000e+00> : vector<4x64xf32>
    %250 = tpu.matmul %249, %238, %cst_143 {dimension_numbers = #tpu.dot_dimension_numbers<[1], [0], [0], [1], [0, 0, 1, 1], [], []>} : vector<4x256xf32>, vector<256x64xf32>, vector<4x64xf32> -> vector<4x64xf32>
    %cst_144 = arith.constant dense<0.000000e+00> : vector<4xf32>
    %251 = vector.multi_reduction <add>, %250, %cst_144 [1] : vector<4x64xf32> to vector<4xf32>
    %252 = vector.shape_cast %251 : vector<4xf32> to vector<4x1xf32>
    %cst_145 = arith.constant 1.562500e-02 : f32
    %253 = vector.broadcast %cst_145 : f32 to vector<4x1xf32>
    %254 = arith.mulf %252, %253 : vector<4x1xf32>
    %c0_146 = arith.constant 0 : index
    %c8_147 = arith.constant 8 : index
    %255 = vector.load %arg7[%c0_146, %c8_147] : memref<16x128xf32, #tpu.memory_space<vmem>>, vector<4x1xf32>
    tpu.vector_store %arg7[%c0_146, %c8_147], %254 {strides = array<i32>} : memref<16x128xf32, #tpu.memory_space<vmem>>, vector<4x1xf32>,
    %c0_148 = arith.constant 0 : index
    %c9_149 = arith.constant 9 : index
    %256 = vector.load %arg11[%c0_148, %c9_149] : memref<4x146xf32, #tpu.memory_space<vmem>>, vector<4x64xf32>
    tpu.vector_store %arg11[%c0_148, %c9_149], %250 {strides = array<i32>} : memref<4x146xf32, #tpu.memory_space<vmem>>, vector<4x64xf32>,
    %c0_150 = arith.constant 0 : index
    %c256 = arith.constant 256 : index
    %257 = vector.load %arg9[%c0_150, %c256] : memref<4x529xf32, #tpu.memory_space<vmem>>, vector<4x256xf32>
    %c0_151 = arith.constant 0 : index
    %c257 = arith.constant 257 : index
    %258 = vector.load %arg9[%c0_151, %c257] : memref<4x529xf32, #tpu.memory_space<vmem>>, vector<4x256xf32>
    %259 = arith.maximumf %257, %258 : vector<4x256xf32>
    %c0_152 = arith.constant 0 : index
    %c272 = arith.constant 272 : index
    %260 = vector.load %arg9[%c0_152, %c272] : memref<4x529xf32, #tpu.memory_space<vmem>>, vector<4x256xf32>
    %c0_153 = arith.constant 0 : index
    %c273 = arith.constant 273 : index
    %261 = vector.load %arg9[%c0_153, %c273] : memref<4x529xf32, #tpu.memory_space<vmem>>, vector<4x256xf32>
    %262 = arith.maximumf %260, %261 : vector<4x256xf32>
    %263 = arith.maximumf %259, %262 : vector<4x256xf32>
    %cst_154 = arith.constant dense<0.000000e+00> : vector<4x64xf32>
    %264 = tpu.matmul %263, %238, %cst_154 {dimension_numbers = #tpu.dot_dimension_numbers<[1], [0], [0], [1], [0, 0, 1, 1], [], []>} : vector<4x256xf32>, vector<256x64xf32>, vector<4x64xf32> -> vector<4x64xf32>
    %cst_155 = arith.constant dense<0.000000e+00> : vector<4xf32>
    %265 = vector.multi_reduction <add>, %264, %cst_155 [1] : vector<4x64xf32> to vector<4xf32>
    %266 = vector.shape_cast %265 : vector<4xf32> to vector<4x1xf32>
    %cst_156 = arith.constant 1.562500e-02 : f32
    %267 = vector.broadcast %cst_156 : f32 to vector<4x1xf32>
    %268 = arith.mulf %266, %267 : vector<4x1xf32>
    %c0_157 = arith.constant 0 : index
    %c9_158 = arith.constant 9 : index
    %269 = vector.load %arg7[%c0_157, %c9_158] : memref<16x128xf32, #tpu.memory_space<vmem>>, vector<4x1xf32>
    tpu.vector_store %arg7[%c0_157, %c9_158], %268 {strides = array<i32>} : memref<16x128xf32, #tpu.memory_space<vmem>>, vector<4x1xf32>,
    %c0_159 = arith.constant 0 : index
    %c73 = arith.constant 73 : index
    %270 = vector.load %arg11[%c0_159, %c73] : memref<4x146xf32, #tpu.memory_space<vmem>>, vector<4x64xf32>
    tpu.vector_store %arg11[%c0_159, %c73], %264 {strides = array<i32>} : memref<4x146xf32, #tpu.memory_space<vmem>>, vector<4x64xf32>,
    %271 = tpu.iota {dimensions = array<i32: 1>} : vector<1x128xi32>
    %c7_i32_160 = arith.constant 7 : i32
    %272 = vector.broadcast %c7_i32_160 : i32 to vector<1x128xi32>
    %273 = arith.andi %271, %272 : vector<1x128xi32>
    %c63_i32 = arith.constant 63 : i32
    %274 = vector.broadcast %c63_i32 : i32 to vector<1x128xi32>
    %275 = arith.andi %271, %274 : vector<1x128xi32>
    %c3_i32_161 = arith.constant 3 : i32
    %276 = vector.broadcast %c3_i32_161 : i32 to vector<1x128xi32>
    %277 = arith.shrsi %275, %276 : vector<1x128xi32>
    %c1_i32_162 = arith.constant 1 : i32
    %278 = vector.broadcast %c1_i32_162 : i32 to vector<1x128xi32>
    %279 = arith.cmpi sge, %277, %278 : vector<1x128xi32>
    %c8_i32 = arith.constant 8 : i32
    %280 = vector.broadcast %c8_i32 : i32 to vector<1x128xi32>
    %281 = arith.cmpi sle, %277, %280 : vector<1x128xi32>
    %282 = arith.andi %279, %281 : vector<1x128xi1>
    %c0_i32_163 = arith.constant 0 : i32
    %283 = vector.broadcast %c0_i32_163 : i32 to vector<1x128xi32>
    %284 = arith.cmpi sge, %277, %283 : vector<1x128xi32>
    %c7_i32_164 = arith.constant 7 : i32
    %285 = vector.broadcast %c7_i32_164 : i32 to vector<1x128xi32>
    %286 = arith.cmpi sle, %277, %285 : vector<1x128xi32>
    %287 = arith.andi %284, %286 : vector<1x128xi1>
    %c-1_i32_165 = arith.constant -1 : i32
    %288 = vector.broadcast %c-1_i32_165 : i32 to vector<1x128xi32>
    %289 = arith.cmpi sge, %277, %288 : vector<1x128xi32>
    %c6_i32 = arith.constant 6 : i32
    %290 = vector.broadcast %c6_i32 : i32 to vector<1x128xi32>
    %291 = arith.cmpi sle, %277, %290 : vector<1x128xi32>
    %292 = arith.andi %289, %291 : vector<1x128xi1>
    %c1_i32_166 = arith.constant 1 : i32
    %293 = vector.broadcast %c1_i32_166 : i32 to vector<1x128xi32>
    %294 = arith.cmpi sge, %273, %293 : vector<1x128xi32>
    %c8_i32_167 = arith.constant 8 : i32
    %295 = vector.broadcast %c8_i32_167 : i32 to vector<1x128xi32>
    %296 = arith.cmpi sle, %273, %295 : vector<1x128xi32>
    %297 = arith.andi %294, %296 : vector<1x128xi1>
    %c0_i32_168 = arith.constant 0 : i32
    %298 = vector.broadcast %c0_i32_168 : i32 to vector<1x128xi32>
    %299 = arith.cmpi sge, %273, %298 : vector<1x128xi32>
    %c7_i32_169 = arith.constant 7 : i32
    %300 = vector.broadcast %c7_i32_169 : i32 to vector<1x128xi32>
    %301 = arith.cmpi sle, %273, %300 : vector<1x128xi32>
    %302 = arith.andi %299, %301 : vector<1x128xi1>
    %c-1_i32_170 = arith.constant -1 : i32
    %303 = vector.broadcast %c-1_i32_170 : i32 to vector<1x128xi32>
    %304 = arith.cmpi sge, %273, %303 : vector<1x128xi32>
    %c6_i32_171 = arith.constant 6 : i32
    %305 = vector.broadcast %c6_i32_171 : i32 to vector<1x128xi32>
    %306 = arith.cmpi sle, %273, %305 : vector<1x128xi32>
    %307 = arith.andi %304, %306 : vector<1x128xi1>
    %c0_172 = arith.constant 0 : index
    %c0_173 = arith.constant 0 : index
    %308 = vector.load %arg11[%c0_172, %c0_173] : memref<4x146xf32, #tpu.memory_space<vmem>>, vector<4x128xf32>
    %309 = arith.andi %282, %297 : vector<1x128xi1>
    %cst_174 = arith.constant 0.000000e+00 : f32
    %310 = vector.shape_cast %309 : vector<1x128xi1> to vector<1x128xi1>
    %311 = vector.broadcast %310 : vector<1x128xi1> to vector<4x128xi1>
    %312 = vector.broadcast %cst_174 : f32 to vector<4x128xf32>
    %313 = arith.select %311, %308, %312 : vector<4x128xi1>, vector<4x128xf32>
    %c0_175 = arith.constant 0 : index
    %c0_176 = arith.constant 0 : index
    %314 = vector.load %arg13[%c0_175, %c0_176] : memref<36x128xf32, #tpu.memory_space<vmem>>, vector<4x128xf32>
    tpu.vector_store %arg13[%c0_175, %c0_176], %313 {strides = array<i32>} : memref<36x128xf32, #tpu.memory_space<vmem>>, vector<4x128xf32>,
    %c0_177 = arith.constant 0 : index
    %c1_178 = arith.constant 1 : index
    %315 = vector.load %arg11[%c0_177, %c1_178] : memref<4x146xf32, #tpu.memory_space<vmem>>, vector<4x128xf32>
    %316 = arith.andi %282, %302 : vector<1x128xi1>
    %cst_179 = arith.constant 0.000000e+00 : f32
    %317 = vector.shape_cast %316 : vector<1x128xi1> to vector<1x128xi1>
    %318 = vector.broadcast %317 : vector<1x128xi1> to vector<4x128xi1>
    %319 = vector.broadcast %cst_179 : f32 to vector<4x128xf32>
    %320 = arith.select %318, %315, %319 : vector<4x128xi1>, vector<4x128xf32>
    %c4_180 = arith.constant 4 : index
    %c0_181 = arith.constant 0 : index
    %321 = vector.load %arg13[%c4_180, %c0_181] : memref<36x128xf32, #tpu.memory_space<vmem>>, vector<4x128xf32>
    tpu.vector_store %arg13[%c4_180, %c0_181], %320 {strides = array<i32>} : memref<36x128xf32, #tpu.memory_space<vmem>>, vector<4x128xf32>,
    %c0_182 = arith.constant 0 : index
    %c2_183 = arith.constant 2 : index
    %322 = vector.load %arg11[%c0_182, %c2_183] : memref<4x146xf32, #tpu.memory_space<vmem>>, vector<4x128xf32>
    %323 = arith.andi %282, %307 : vector<1x128xi1>
    %cst_184 = arith.constant 0.000000e+00 : f32
    %324 = vector.shape_cast %323 : vector<1x128xi1> to vector<1x128xi1>
    %325 = vector.broadcast %324 : vector<1x128xi1> to vector<4x128xi1>
    %326 = vector.broadcast %cst_184 : f32 to vector<4x128xf32>
    %327 = arith.select %325, %322, %326 : vector<4x128xi1>, vector<4x128xf32>
    %c8_185 = arith.constant 8 : index
    %c0_186 = arith.constant 0 : index
    %328 = vector.load %arg13[%c8_185, %c0_186] : memref<36x128xf32, #tpu.memory_space<vmem>>, vector<4x128xf32>
    tpu.vector_store %arg13[%c8_185, %c0_186], %327 {strides = array<i32>} : memref<36x128xf32, #tpu.memory_space<vmem>>, vector<4x128xf32>,
    %c0_187 = arith.constant 0 : index
    %c8_188 = arith.constant 8 : index
    %329 = vector.load %arg11[%c0_187, %c8_188] : memref<4x146xf32, #tpu.memory_space<vmem>>, vector<4x128xf32>
    %330 = arith.andi %287, %297 : vector<1x128xi1>
    %cst_189 = arith.constant 0.000000e+00 : f32
    %331 = vector.shape_cast %330 : vector<1x128xi1> to vector<1x128xi1>
    %332 = vector.broadcast %331 : vector<1x128xi1> to vector<4x128xi1>
    %333 = vector.broadcast %cst_189 : f32 to vector<4x128xf32>
    %334 = arith.select %332, %329, %333 : vector<4x128xi1>, vector<4x128xf32>
    %c12_190 = arith.constant 12 : index
    %c0_191 = arith.constant 0 : index
    %335 = vector.load %arg13[%c12_190, %c0_191] : memref<36x128xf32, #tpu.memory_space<vmem>>, vector<4x128xf32>
    tpu.vector_store %arg13[%c12_190, %c0_191], %334 {strides = array<i32>} : memref<36x128xf32, #tpu.memory_space<vmem>>, vector<4x128xf32>,
    %c0_192 = arith.constant 0 : index
    %c9_193 = arith.constant 9 : index
    %336 = vector.load %arg11[%c0_192, %c9_193] : memref<4x146xf32, #tpu.memory_space<vmem>>, vector<4x128xf32>
    %337 = arith.andi %287, %302 : vector<1x128xi1>
    %cst_194 = arith.constant 0.000000e+00 : f32
    %338 = vector.shape_cast %337 : vector<1x128xi1> to vector<1x128xi1>
    %339 = vector.broadcast %338 : vector<1x128xi1> to vector<4x128xi1>
    %340 = vector.broadcast %cst_194 : f32 to vector<4x128xf32>
    %341 = arith.select %339, %336, %340 : vector<4x128xi1>, vector<4x128xf32>
    %c16_195 = arith.constant 16 : index
    %c0_196 = arith.constant 0 : index
    %342 = vector.load %arg13[%c16_195, %c0_196] : memref<36x128xf32, #tpu.memory_space<vmem>>, vector<4x128xf32>
    tpu.vector_store %arg13[%c16_195, %c0_196], %341 {strides = array<i32>} : memref<36x128xf32, #tpu.memory_space<vmem>>, vector<4x128xf32>,
    %c0_197 = arith.constant 0 : index
    %c10_198 = arith.constant 10 : index
    %343 = vector.load %arg11[%c0_197, %c10_198] : memref<4x146xf32, #tpu.memory_space<vmem>>, vector<4x128xf32>
    %344 = arith.andi %287, %307 : vector<1x128xi1>
    %cst_199 = arith.constant 0.000000e+00 : f32
    %345 = vector.shape_cast %344 : vector<1x128xi1> to vector<1x128xi1>
    %346 = vector.broadcast %345 : vector<1x128xi1> to vector<4x128xi1>
    %347 = vector.broadcast %cst_199 : f32 to vector<4x128xf32>
    %348 = arith.select %346, %343, %347 : vector<4x128xi1>, vector<4x128xf32>
    %c20_200 = arith.constant 20 : index
    %c0_201 = arith.constant 0 : index
    %349 = vector.load %arg13[%c20_200, %c0_201] : memref<36x128xf32, #tpu.memory_space<vmem>>, vector<4x128xf32>
    tpu.vector_store %arg13[%c20_200, %c0_201], %348 {strides = array<i32>} : memref<36x128xf32, #tpu.memory_space<vmem>>, vector<4x128xf32>,
    %c0_202 = arith.constant 0 : index
    %c16_203 = arith.constant 16 : index
    %350 = vector.load %arg11[%c0_202, %c16_203] : memref<4x146xf32, #tpu.memory_space<vmem>>, vector<4x128xf32>
    %351 = arith.andi %292, %297 : vector<1x128xi1>
    %cst_204 = arith.constant 0.000000e+00 : f32
    %352 = vector.shape_cast %351 : vector<1x128xi1> to vector<1x128xi1>
    %353 = vector.broadcast %352 : vector<1x128xi1> to vector<4x128xi1>
    %354 = vector.broadcast %cst_204 : f32 to vector<4x128xf32>
    %355 = arith.select %353, %350, %354 : vector<4x128xi1>, vector<4x128xf32>
    %c24_205 = arith.constant 24 : index
    %c0_206 = arith.constant 0 : index
    %356 = vector.load %arg13[%c24_205, %c0_206] : memref<36x128xf32, #tpu.memory_space<vmem>>, vector<4x128xf32>
    tpu.vector_store %arg13[%c24_205, %c0_206], %355 {strides = array<i32>} : memref<36x128xf32, #tpu.memory_space<vmem>>, vector<4x128xf32>,
    %c0_207 = arith.constant 0 : index
    %c17_208 = arith.constant 17 : index
    %357 = vector.load %arg11[%c0_207, %c17_208] : memref<4x146xf32, #tpu.memory_space<vmem>>, vector<4x128xf32>
    %358 = arith.andi %292, %302 : vector<1x128xi1>
    %cst_209 = arith.constant 0.000000e+00 : f32
    %359 = vector.shape_cast %358 : vector<1x128xi1> to vector<1x128xi1>
    %360 = vector.broadcast %359 : vector<1x128xi1> to vector<4x128xi1>
    %361 = vector.broadcast %cst_209 : f32 to vector<4x128xf32>
    %362 = arith.select %360, %357, %361 : vector<4x128xi1>, vector<4x128xf32>
    %c28 = arith.constant 28 : index
    %c0_210 = arith.constant 0 : index
    %363 = vector.load %arg13[%c28, %c0_210] : memref<36x128xf32, #tpu.memory_space<vmem>>, vector<4x128xf32>
    tpu.vector_store %arg13[%c28, %c0_210], %362 {strides = array<i32>} : memref<36x128xf32, #tpu.memory_space<vmem>>, vector<4x128xf32>,
    %c0_211 = arith.constant 0 : index
    %c18_212 = arith.constant 18 : index
    %364 = vector.load %arg11[%c0_211, %c18_212] : memref<4x146xf32, #tpu.memory_space<vmem>>, vector<4x128xf32>
    %365 = arith.andi %292, %307 : vector<1x128xi1>
    %cst_213 = arith.constant 0.000000e+00 : f32
    %366 = vector.shape_cast %365 : vector<1x128xi1> to vector<1x128xi1>
    %367 = vector.broadcast %366 : vector<1x128xi1> to vector<4x128xi1>
    %368 = vector.broadcast %cst_213 : f32 to vector<4x128xf32>
    %369 = arith.select %367, %364, %368 : vector<4x128xi1>, vector<4x128xf32>
    %c32_214 = arith.constant 32 : index
    %c0_215 = arith.constant 0 : index
    %370 = vector.load %arg13[%c32_214, %c0_215] : memref<36x128xf32, #tpu.memory_space<vmem>>, vector<4x128xf32>
    tpu.vector_store %arg13[%c32_214, %c0_215], %369 {strides = array<i32>} : memref<36x128xf32, #tpu.memory_space<vmem>>, vector<4x128xf32>,
    %c0_216 = arith.constant 0 : index
    %c0_217 = arith.constant 0 : index
    %371 = vector.load %arg3[%c0_216, %c0_217] : memref<8x36xf32, #tpu.memory_space<vmem>>, vector<8x36xf32>
    %c0_218 = arith.constant 0 : index
    %c0_219 = arith.constant 0 : index
    %372 = vector.load %arg13[%c0_218, %c0_219] : memref<36x128xf32, #tpu.memory_space<vmem>>, vector<36x128xf32>
    %cst_220 = arith.constant dense<0.000000e+00> : vector<8x128xf32>
    %373 = tpu.matmul %371, %372, %cst_220 {dimension_numbers = #tpu.dot_dimension_numbers<[1], [0], [0], [1], [0, 0, 1, 1], [], []>} : vector<8x36xf32>, vector<36x128xf32>, vector<8x128xf32> -> vector<8x128xf32>
    %c4_221 = arith.constant 4 : index
    %c0_222 = arith.constant 0 : index
    %374 = vector.load %arg5[%c4_221, %c0_222] : memref<28x1xf32, #tpu.memory_space<vmem>>, vector<8x1xf32>
    %c4_223 = arith.constant 4 : index
    %c0_224 = arith.constant 0 : index
    %375 = vector.load %arg6[%c4_223, %c0_224] : memref<28x1xf32, #tpu.memory_space<vmem>>, vector<8x1xf32>
    %cst_225 = arith.constant dense<0.000000e+00> : vector<8xf32>
    %376 = vector.multi_reduction <add>, %373, %cst_225 [1] : vector<8x128xf32> to vector<8xf32>
    %377 = vector.shape_cast %376 : vector<8xf32> to vector<8x1xf32>
    %cst_226 = arith.constant 7.812500e-03 : f32
    %378 = vector.broadcast %cst_226 : f32 to vector<8x1xf32>
    %379 = arith.mulf %377, %378 : vector<8x1xf32>
    %380 = arith.mulf %373, %373 : vector<8x128xf32>
    %cst_227 = arith.constant dense<0.000000e+00> : vector<8xf32>
    %381 = vector.multi_reduction <add>, %380, %cst_227 [1] : vector<8x128xf32> to vector<8xf32>
    %382 = vector.shape_cast %381 : vector<8xf32> to vector<8x1xf32>
    %cst_228 = arith.constant 7.812500e-03 : f32
    %383 = vector.broadcast %cst_228 : f32 to vector<8x1xf32>
    %384 = arith.mulf %382, %383 : vector<8x1xf32>
    %385 = arith.mulf %379, %379 : vector<8x1xf32>
    %386 = arith.subf %384, %385 : vector<8x1xf32>
    %cst_229 = arith.constant 0.000000e+00 : f32
    %387 = vector.broadcast %cst_229 : f32 to vector<8x1xf32>
    %388 = arith.maximumf %386, %387 : vector<8x1xf32>
    %cst_230 = arith.constant 9.99999974E-6 : f32
    %389 = vector.broadcast %cst_230 : f32 to vector<8x1xf32>
    %390 = arith.addf %388, %389 : vector<8x1xf32>
    %391 = math.rsqrt %390 : vector<8x1xf32>
    %392 = arith.mulf %391, %374 : vector<8x1xf32>
    %393 = vector.broadcast %379 : vector<8x1xf32> to vector<8x128xf32>
    %394 = arith.subf %373, %393 : vector<8x128xf32>
    %395 = vector.broadcast %392 : vector<8x1xf32> to vector<8x128xf32>
    %396 = arith.mulf %394, %395 : vector<8x128xf32>
    %397 = vector.broadcast %375 : vector<8x1xf32> to vector<8x128xf32>
    %398 = arith.addf %396, %397 : vector<8x128xf32>
    %cst_231 = arith.constant 0.000000e+00 : f32
    %399 = vector.broadcast %cst_231 : f32 to vector<8x128xf32>
    %400 = arith.maximumf %398, %399 : vector<8x128xf32>
    %cst_232 = arith.constant 0.000000e+00 : f32
    %401 = vector.broadcast %cst_232 : f32 to vector<8x9xf32>
    %c0_233 = arith.constant 0 : index
    %c128 = arith.constant 128 : index
    %402 = vector.load %arg12[%c0_233, %c128] : memref<8x137xf32, #tpu.memory_space<vmem>>, vector<8x9xf32>
    tpu.vector_store %arg12[%c0_233, %c128], %401 {strides = array<i32>} : memref<8x137xf32, #tpu.memory_space<vmem>>, vector<8x9xf32>,
    %c0_234 = arith.constant 0 : index
    %c0_235 = arith.constant 0 : index
    %403 = vector.load %arg12[%c0_234, %c0_235] : memref<8x137xf32, #tpu.memory_space<vmem>>, vector<8x128xf32>
    tpu.vector_store %arg12[%c0_234, %c0_235], %400 {strides = array<i32>} : memref<8x137xf32, #tpu.memory_space<vmem>>, vector<8x128xf32>,
    %404 = tpu.iota {dimensions = array<i32: 1>} : vector<1x16xi32>
    %c2_i32_236 = arith.constant 2 : i32
    %405 = vector.broadcast %c2_i32_236 : i32 to vector<1x16xi32>
    %406 = arith.shrsi %404, %405 : vector<1x16xi32>
    %c3_i32_237 = arith.constant 3 : i32
    %407 = vector.broadcast %c3_i32_237 : i32 to vector<1x16xi32>
    %408 = arith.andi %404, %407 : vector<1x16xi32>
    %c4_i32_238 = arith.constant 4 : i32
    %409 = vector.broadcast %c4_i32_238 : i32 to vector<1x16xi32>
    %410 = arith.shli %406, %409 : vector<1x16xi32>
    %c1_i32_239 = arith.constant 1 : i32
    %411 = vector.broadcast %c1_i32_239 : i32 to vector<1x16xi32>
    %412 = arith.shli %408, %411 : vector<1x16xi32>
    %413 = arith.addi %410, %412 : vector<1x16xi32>
    %414 = tpu.iota {dimensions = array<i32: 0>} : vector<64x16xi32>
    %415 = vector.broadcast %413 : vector<1x16xi32> to vector<64x16xi32>
    %416 = arith.cmpi eq, %414, %415 : vector<64x16xi32>
    %cst_240 = arith.constant 1.000000e+00 : f32
    %cst_241 = arith.constant 0.000000e+00 : f32
    %417 = vector.broadcast %cst_240 : f32 to vector<64x16xf32>
    %418 = vector.broadcast %cst_241 : f32 to vector<64x16xf32>
    %419 = arith.select %416, %417, %418 : vector<64x16xi1>, vector<64x16xf32>
    %cst_242 = arith.constant 0.000000e+00 : f32
    %420 = vector.broadcast %cst_242 : f32 to vector<8x5xf32>
    %c0_243 = arith.constant 0 : index
    %c0_244 = arith.constant 0 : index
    %421 = vector.load %arg14[%c0_243, %c0_244] : memref<8x42xf32, #tpu.memory_space<vmem>>, vector<8x5xf32>
    tpu.vector_store %arg14[%c0_243, %c0_244], %420 {strides = array<i32>} : memref<8x42xf32, #tpu.memory_space<vmem>>, vector<8x5xf32>,
    %cst_245 = arith.constant 0.000000e+00 : f32
    %422 = vector.broadcast %cst_245 : f32 to vector<8x5xf32>
    %c0_246 = arith.constant 0 : index
    %c37 = arith.constant 37 : index
    %423 = vector.load %arg14[%c0_246, %c37] : memref<8x42xf32, #tpu.memory_space<vmem>>, vector<8x5xf32>
    tpu.vector_store %arg14[%c0_246, %c37], %422 {strides = array<i32>} : memref<8x42xf32, #tpu.memory_space<vmem>>, vector<8x5xf32>,
    %c0_247 = arith.constant 0 : index
    %c0_248 = arith.constant 0 : index
    %424 = vector.load %arg12[%c0_247, %c0_248] : memref<8x137xf32, #tpu.memory_space<vmem>>, vector<8x64xf32>
    %c0_249 = arith.constant 0 : index
    %c1_250 = arith.constant 1 : index
    %425 = vector.load %arg12[%c0_249, %c1_250] : memref<8x137xf32, #tpu.memory_space<vmem>>, vector<8x64xf32>
    %426 = arith.maximumf %424, %425 : vector<8x64xf32>
    %c0_251 = arith.constant 0 : index
    %c8_252 = arith.constant 8 : index
    %427 = vector.load %arg12[%c0_251, %c8_252] : memref<8x137xf32, #tpu.memory_space<vmem>>, vector<8x64xf32>
    %c0_253 = arith.constant 0 : index
    %c9_254 = arith.constant 9 : index
    %428 = vector.load %arg12[%c0_253, %c9_254] : memref<8x137xf32, #tpu.memory_space<vmem>>, vector<8x64xf32>
    %429 = arith.maximumf %427, %428 : vector<8x64xf32>
    %430 = arith.maximumf %426, %429 : vector<8x64xf32>
    %cst_255 = arith.constant dense<0.000000e+00> : vector<8x16xf32>
    %431 = tpu.matmul %430, %419, %cst_255 {dimension_numbers = #tpu.dot_dimension_numbers<[1], [0], [0], [1], [0, 0, 1, 1], [], []>} : vector<8x64xf32>, vector<64x16xf32>, vector<8x16xf32> -> vector<8x16xf32>
    %cst_256 = arith.constant dense<0.000000e+00> : vector<8xf32>
    %432 = vector.multi_reduction <add>, %431, %cst_256 [1] : vector<8x16xf32> to vector<8xf32>
    %433 = vector.shape_cast %432 : vector<8xf32> to vector<8x1xf32>
    %cst_257 = arith.constant 6.250000e-02 : f32
    %434 = vector.broadcast %cst_257 : f32 to vector<8x1xf32>
    %435 = arith.mulf %433, %434 : vector<8x1xf32>
    %c0_258 = arith.constant 0 : index
    %c10_259 = arith.constant 10 : index
    %436 = vector.load %arg7[%c0_258, %c10_259] : memref<16x128xf32, #tpu.memory_space<vmem>>, vector<8x1xf32>
    tpu.vector_store %arg7[%c0_258, %c10_259], %435 {strides = array<i32>} : memref<16x128xf32, #tpu.memory_space<vmem>>, vector<8x1xf32>,
    %c0_260 = arith.constant 0 : index
    %c5_261 = arith.constant 5 : index
    %437 = vector.load %arg14[%c0_260, %c5_261] : memref<8x42xf32, #tpu.memory_space<vmem>>, vector<8x16xf32>
    tpu.vector_store %arg14[%c0_260, %c5_261], %431 {strides = array<i32>} : memref<8x42xf32, #tpu.memory_space<vmem>>, vector<8x16xf32>,
    %c0_262 = arith.constant 0 : index
    %c64_263 = arith.constant 64 : index
    %438 = vector.load %arg12[%c0_262, %c64_263] : memref<8x137xf32, #tpu.memory_space<vmem>>, vector<8x64xf32>
    %c0_264 = arith.constant 0 : index
    %c65_265 = arith.constant 65 : index
    %439 = vector.load %arg12[%c0_264, %c65_265] : memref<8x137xf32, #tpu.memory_space<vmem>>, vector<8x64xf32>
    %440 = arith.maximumf %438, %439 : vector<8x64xf32>
    %c0_266 = arith.constant 0 : index
    %c72 = arith.constant 72 : index
    %441 = vector.load %arg12[%c0_266, %c72] : memref<8x137xf32, #tpu.memory_space<vmem>>, vector<8x64xf32>
    %c0_267 = arith.constant 0 : index
    %c73_268 = arith.constant 73 : index
    %442 = vector.load %arg12[%c0_267, %c73_268] : memref<8x137xf32, #tpu.memory_space<vmem>>, vector<8x64xf32>
    %443 = arith.maximumf %441, %442 : vector<8x64xf32>
    %444 = arith.maximumf %440, %443 : vector<8x64xf32>
    %cst_269 = arith.constant dense<0.000000e+00> : vector<8x16xf32>
    %445 = tpu.matmul %444, %419, %cst_269 {dimension_numbers = #tpu.dot_dimension_numbers<[1], [0], [0], [1], [0, 0, 1, 1], [], []>} : vector<8x64xf32>, vector<64x16xf32>, vector<8x16xf32> -> vector<8x16xf32>
    %cst_270 = arith.constant dense<0.000000e+00> : vector<8xf32>
    %446 = vector.multi_reduction <add>, %445, %cst_270 [1] : vector<8x16xf32> to vector<8xf32>
    %447 = vector.shape_cast %446 : vector<8xf32> to vector<8x1xf32>
    %cst_271 = arith.constant 6.250000e-02 : f32
    %448 = vector.broadcast %cst_271 : f32 to vector<8x1xf32>
    %449 = arith.mulf %447, %448 : vector<8x1xf32>
    %c0_272 = arith.constant 0 : index
    %c11_273 = arith.constant 11 : index
    %450 = vector.load %arg7[%c0_272, %c11_273] : memref<16x128xf32, #tpu.memory_space<vmem>>, vector<8x1xf32>
    tpu.vector_store %arg7[%c0_272, %c11_273], %449 {strides = array<i32>} : memref<16x128xf32, #tpu.memory_space<vmem>>, vector<8x1xf32>,
    %c0_274 = arith.constant 0 : index
    %c21_275 = arith.constant 21 : index
    %451 = vector.load %arg14[%c0_274, %c21_275] : memref<8x42xf32, #tpu.memory_space<vmem>>, vector<8x16xf32>
    tpu.vector_store %arg14[%c0_274, %c21_275], %445 {strides = array<i32>} : memref<8x42xf32, #tpu.memory_space<vmem>>, vector<8x16xf32>,
    %452 = tpu.iota {dimensions = array<i32: 1>} : vector<1x32xi32>
    %c3_i32_276 = arith.constant 3 : i32
    %453 = vector.broadcast %c3_i32_276 : i32 to vector<1x32xi32>
    %454 = arith.andi %452, %453 : vector<1x32xi32>
    %c15_i32_277 = arith.constant 15 : i32
    %455 = vector.broadcast %c15_i32_277 : i32 to vector<1x32xi32>
    %456 = arith.andi %452, %455 : vector<1x32xi32>
    %c2_i32_278 = arith.constant 2 : i32
    %457 = vector.broadcast %c2_i32_278 : i32 to vector<1x32xi32>
    %458 = arith.shrsi %456, %457 : vector<1x32xi32>
    %c1_i32_279 = arith.constant 1 : i32
    %459 = vector.broadcast %c1_i32_279 : i32 to vector<1x32xi32>
    %460 = arith.cmpi sge, %458, %459 : vector<1x32xi32>
    %c4_i32_280 = arith.constant 4 : i32
    %461 = vector.broadcast %c4_i32_280 : i32 to vector<1x32xi32>
    %462 = arith.cmpi sle, %458, %461 : vector<1x32xi32>
    %463 = arith.andi %460, %462 : vector<1x32xi1>
    %c0_i32_281 = arith.constant 0 : i32
    %464 = vector.broadcast %c0_i32_281 : i32 to vector<1x32xi32>
    %465 = arith.cmpi sge, %458, %464 : vector<1x32xi32>
    %c3_i32_282 = arith.constant 3 : i32
    %466 = vector.broadcast %c3_i32_282 : i32 to vector<1x32xi32>
    %467 = arith.cmpi sle, %458, %466 : vector<1x32xi32>
    %468 = arith.andi %465, %467 : vector<1x32xi1>
    %c-1_i32_283 = arith.constant -1 : i32
    %469 = vector.broadcast %c-1_i32_283 : i32 to vector<1x32xi32>
    %470 = arith.cmpi sge, %458, %469 : vector<1x32xi32>
    %c2_i32_284 = arith.constant 2 : i32
    %471 = vector.broadcast %c2_i32_284 : i32 to vector<1x32xi32>
    %472 = arith.cmpi sle, %458, %471 : vector<1x32xi32>
    %473 = arith.andi %470, %472 : vector<1x32xi1>
    %c1_i32_285 = arith.constant 1 : i32
    %474 = vector.broadcast %c1_i32_285 : i32 to vector<1x32xi32>
    %475 = arith.cmpi sge, %454, %474 : vector<1x32xi32>
    %c4_i32_286 = arith.constant 4 : i32
    %476 = vector.broadcast %c4_i32_286 : i32 to vector<1x32xi32>
    %477 = arith.cmpi sle, %454, %476 : vector<1x32xi32>
    %478 = arith.andi %475, %477 : vector<1x32xi1>
    %c0_i32_287 = arith.constant 0 : i32
    %479 = vector.broadcast %c0_i32_287 : i32 to vector<1x32xi32>
    %480 = arith.cmpi sge, %454, %479 : vector<1x32xi32>
    %c3_i32_288 = arith.constant 3 : i32
    %481 = vector.broadcast %c3_i32_288 : i32 to vector<1x32xi32>
    %482 = arith.cmpi sle, %454, %481 : vector<1x32xi32>
    %483 = arith.andi %480, %482 : vector<1x32xi1>
    %c-1_i32_289 = arith.constant -1 : i32
    %484 = vector.broadcast %c-1_i32_289 : i32 to vector<1x32xi32>
    %485 = arith.cmpi sge, %454, %484 : vector<1x32xi32>
    %c2_i32_290 = arith.constant 2 : i32
    %486 = vector.broadcast %c2_i32_290 : i32 to vector<1x32xi32>
    %487 = arith.cmpi sle, %454, %486 : vector<1x32xi32>
    %488 = arith.andi %485, %487 : vector<1x32xi1>
    %c0_291 = arith.constant 0 : index
    %c0_292 = arith.constant 0 : index
    %489 = vector.load %arg14[%c0_291, %c0_292] : memref<8x42xf32, #tpu.memory_space<vmem>>, vector<8x32xf32>
    %490 = arith.andi %463, %478 : vector<1x32xi1>
    %cst_293 = arith.constant 0.000000e+00 : f32
    %491 = vector.shape_cast %490 : vector<1x32xi1> to vector<1x32xi1>
    %492 = vector.broadcast %491 : vector<1x32xi1> to vector<8x32xi1>
    %493 = vector.broadcast %cst_293 : f32 to vector<8x32xf32>
    %494 = arith.select %492, %489, %493 : vector<8x32xi1>, vector<8x32xf32>
    %c0_294 = arith.constant 0 : index
    %c0_295 = arith.constant 0 : index
    %495 = vector.load %arg16[%c0_294, %c0_295] : memref<72x32xf32, #tpu.memory_space<vmem>>, vector<8x32xf32>
    tpu.vector_store %arg16[%c0_294, %c0_295], %494 {strides = array<i32>} : memref<72x32xf32, #tpu.memory_space<vmem>>, vector<8x32xf32>,
    %c0_296 = arith.constant 0 : index
    %c1_297 = arith.constant 1 : index
    %496 = vector.load %arg14[%c0_296, %c1_297] : memref<8x42xf32, #tpu.memory_space<vmem>>, vector<8x32xf32>
    %497 = arith.andi %463, %483 : vector<1x32xi1>
    %cst_298 = arith.constant 0.000000e+00 : f32
    %498 = vector.shape_cast %497 : vector<1x32xi1> to vector<1x32xi1>
    %499 = vector.broadcast %498 : vector<1x32xi1> to vector<8x32xi1>
    %500 = vector.broadcast %cst_298 : f32 to vector<8x32xf32>
    %501 = arith.select %499, %496, %500 : vector<8x32xi1>, vector<8x32xf32>
    %c8_299 = arith.constant 8 : index
    %c0_300 = arith.constant 0 : index
    %502 = vector.load %arg16[%c8_299, %c0_300] : memref<72x32xf32, #tpu.memory_space<vmem>>, vector<8x32xf32>
    tpu.vector_store %arg16[%c8_299, %c0_300], %501 {strides = array<i32>} : memref<72x32xf32, #tpu.memory_space<vmem>>, vector<8x32xf32>,
    %c0_301 = arith.constant 0 : index
    %c2_302 = arith.constant 2 : index
    %503 = vector.load %arg14[%c0_301, %c2_302] : memref<8x42xf32, #tpu.memory_space<vmem>>, vector<8x32xf32>
    %504 = arith.andi %463, %488 : vector<1x32xi1>
    %cst_303 = arith.constant 0.000000e+00 : f32
    %505 = vector.shape_cast %504 : vector<1x32xi1> to vector<1x32xi1>
    %506 = vector.broadcast %505 : vector<1x32xi1> to vector<8x32xi1>
    %507 = vector.broadcast %cst_303 : f32 to vector<8x32xf32>
    %508 = arith.select %506, %503, %507 : vector<8x32xi1>, vector<8x32xf32>
    %c16_304 = arith.constant 16 : index
    %c0_305 = arith.constant 0 : index
    %509 = vector.load %arg16[%c16_304, %c0_305] : memref<72x32xf32, #tpu.memory_space<vmem>>, vector<8x32xf32>
    tpu.vector_store %arg16[%c16_304, %c0_305], %508 {strides = array<i32>} : memref<72x32xf32, #tpu.memory_space<vmem>>, vector<8x32xf32>,
    %c0_306 = arith.constant 0 : index
    %c4_307 = arith.constant 4 : index
    %510 = vector.load %arg14[%c0_306, %c4_307] : memref<8x42xf32, #tpu.memory_space<vmem>>, vector<8x32xf32>
    %511 = arith.andi %468, %478 : vector<1x32xi1>
    %cst_308 = arith.constant 0.000000e+00 : f32
    %512 = vector.shape_cast %511 : vector<1x32xi1> to vector<1x32xi1>
    %513 = vector.broadcast %512 : vector<1x32xi1> to vector<8x32xi1>
    %514 = vector.broadcast %cst_308 : f32 to vector<8x32xf32>
    %515 = arith.select %513, %510, %514 : vector<8x32xi1>, vector<8x32xf32>
    %c24_309 = arith.constant 24 : index
    %c0_310 = arith.constant 0 : index
    %516 = vector.load %arg16[%c24_309, %c0_310] : memref<72x32xf32, #tpu.memory_space<vmem>>, vector<8x32xf32>
    tpu.vector_store %arg16[%c24_309, %c0_310], %515 {strides = array<i32>} : memref<72x32xf32, #tpu.memory_space<vmem>>, vector<8x32xf32>,
    %c0_311 = arith.constant 0 : index
    %c5_312 = arith.constant 5 : index
    %517 = vector.load %arg14[%c0_311, %c5_312] : memref<8x42xf32, #tpu.memory_space<vmem>>, vector<8x32xf32>
    %518 = arith.andi %468, %483 : vector<1x32xi1>
    %cst_313 = arith.constant 0.000000e+00 : f32
    %519 = vector.shape_cast %518 : vector<1x32xi1> to vector<1x32xi1>
    %520 = vector.broadcast %519 : vector<1x32xi1> to vector<8x32xi1>
    %521 = vector.broadcast %cst_313 : f32 to vector<8x32xf32>
    %522 = arith.select %520, %517, %521 : vector<8x32xi1>, vector<8x32xf32>
    %c32_314 = arith.constant 32 : index
    %c0_315 = arith.constant 0 : index
    %523 = vector.load %arg16[%c32_314, %c0_315] : memref<72x32xf32, #tpu.memory_space<vmem>>, vector<8x32xf32>
    tpu.vector_store %arg16[%c32_314, %c0_315], %522 {strides = array<i32>} : memref<72x32xf32, #tpu.memory_space<vmem>>, vector<8x32xf32>,
    %c0_316 = arith.constant 0 : index
    %c6_317 = arith.constant 6 : index
    %524 = vector.load %arg14[%c0_316, %c6_317] : memref<8x42xf32, #tpu.memory_space<vmem>>, vector<8x32xf32>
    %525 = arith.andi %468, %488 : vector<1x32xi1>
    %cst_318 = arith.constant 0.000000e+00 : f32
    %526 = vector.shape_cast %525 : vector<1x32xi1> to vector<1x32xi1>
    %527 = vector.broadcast %526 : vector<1x32xi1> to vector<8x32xi1>
    %528 = vector.broadcast %cst_318 : f32 to vector<8x32xf32>
    %529 = arith.select %527, %524, %528 : vector<8x32xi1>, vector<8x32xf32>
    %c40 = arith.constant 40 : index
    %c0_319 = arith.constant 0 : index
    %530 = vector.load %arg16[%c40, %c0_319] : memref<72x32xf32, #tpu.memory_space<vmem>>, vector<8x32xf32>
    tpu.vector_store %arg16[%c40, %c0_319], %529 {strides = array<i32>} : memref<72x32xf32, #tpu.memory_space<vmem>>, vector<8x32xf32>,
    %c0_320 = arith.constant 0 : index
    %c8_321 = arith.constant 8 : index
    %531 = vector.load %arg14[%c0_320, %c8_321] : memref<8x42xf32, #tpu.memory_space<vmem>>, vector<8x32xf32>
    %532 = arith.andi %473, %478 : vector<1x32xi1>
    %cst_322 = arith.constant 0.000000e+00 : f32
    %533 = vector.shape_cast %532 : vector<1x32xi1> to vector<1x32xi1>
    %534 = vector.broadcast %533 : vector<1x32xi1> to vector<8x32xi1>
    %535 = vector.broadcast %cst_322 : f32 to vector<8x32xf32>
    %536 = arith.select %534, %531, %535 : vector<8x32xi1>, vector<8x32xf32>
    %c48_323 = arith.constant 48 : index
    %c0_324 = arith.constant 0 : index
    %537 = vector.load %arg16[%c48_323, %c0_324] : memref<72x32xf32, #tpu.memory_space<vmem>>, vector<8x32xf32>
    tpu.vector_store %arg16[%c48_323, %c0_324], %536 {strides = array<i32>} : memref<72x32xf32, #tpu.memory_space<vmem>>, vector<8x32xf32>,
    %c0_325 = arith.constant 0 : index
    %c9_326 = arith.constant 9 : index
    %538 = vector.load %arg14[%c0_325, %c9_326] : memref<8x42xf32, #tpu.memory_space<vmem>>, vector<8x32xf32>
    %539 = arith.andi %473, %483 : vector<1x32xi1>
    %cst_327 = arith.constant 0.000000e+00 : f32
    %540 = vector.shape_cast %539 : vector<1x32xi1> to vector<1x32xi1>
    %541 = vector.broadcast %540 : vector<1x32xi1> to vector<8x32xi1>
    %542 = vector.broadcast %cst_327 : f32 to vector<8x32xf32>
    %543 = arith.select %541, %538, %542 : vector<8x32xi1>, vector<8x32xf32>
    %c56 = arith.constant 56 : index
    %c0_328 = arith.constant 0 : index
    %544 = vector.load %arg16[%c56, %c0_328] : memref<72x32xf32, #tpu.memory_space<vmem>>, vector<8x32xf32>
    tpu.vector_store %arg16[%c56, %c0_328], %543 {strides = array<i32>} : memref<72x32xf32, #tpu.memory_space<vmem>>, vector<8x32xf32>,
    %c0_329 = arith.constant 0 : index
    %c10_330 = arith.constant 10 : index
    %545 = vector.load %arg14[%c0_329, %c10_330] : memref<8x42xf32, #tpu.memory_space<vmem>>, vector<8x32xf32>
    %546 = arith.andi %473, %488 : vector<1x32xi1>
    %cst_331 = arith.constant 0.000000e+00 : f32
    %547 = vector.shape_cast %546 : vector<1x32xi1> to vector<1x32xi1>
    %548 = vector.broadcast %547 : vector<1x32xi1> to vector<8x32xi1>
    %549 = vector.broadcast %cst_331 : f32 to vector<8x32xf32>
    %550 = arith.select %548, %545, %549 : vector<8x32xi1>, vector<8x32xf32>
    %c64_332 = arith.constant 64 : index
    %c0_333 = arith.constant 0 : index
    %551 = vector.load %arg16[%c64_332, %c0_333] : memref<72x32xf32, #tpu.memory_space<vmem>>, vector<8x32xf32>
    tpu.vector_store %arg16[%c64_332, %c0_333], %550 {strides = array<i32>} : memref<72x32xf32, #tpu.memory_space<vmem>>, vector<8x32xf32>,
    %c0_334 = arith.constant 0 : index
    %c0_335 = arith.constant 0 : index
    %552 = vector.load %arg4[%c0_334, %c0_335] : memref<16x72xf32, #tpu.memory_space<vmem>>, vector<16x72xf32>
    %c0_336 = arith.constant 0 : index
    %c0_337 = arith.constant 0 : index
    %553 = vector.load %arg16[%c0_336, %c0_337] : memref<72x32xf32, #tpu.memory_space<vmem>>, vector<72x32xf32>
    %cst_338 = arith.constant dense<0.000000e+00> : vector<16x32xf32>
    %554 = tpu.matmul %552, %553, %cst_338 {dimension_numbers = #tpu.dot_dimension_numbers<[1], [0], [0], [1], [0, 0, 1, 1], [], []>} : vector<16x72xf32>, vector<72x32xf32>, vector<16x32xf32> -> vector<16x32xf32>
    %c12_339 = arith.constant 12 : index
    %c0_340 = arith.constant 0 : index
    %555 = vector.load %arg5[%c12_339, %c0_340] : memref<28x1xf32, #tpu.memory_space<vmem>>, vector<16x1xf32>
    %c12_341 = arith.constant 12 : index
    %c0_342 = arith.constant 0 : index
    %556 = vector.load %arg6[%c12_341, %c0_342] : memref<28x1xf32, #tpu.memory_space<vmem>>, vector<16x1xf32>
    %cst_343 = arith.constant dense<0.000000e+00> : vector<16xf32>
    %557 = vector.multi_reduction <add>, %554, %cst_343 [1] : vector<16x32xf32> to vector<16xf32>
    %558 = vector.shape_cast %557 : vector<16xf32> to vector<16x1xf32>
    %cst_344 = arith.constant 3.125000e-02 : f32
    %559 = vector.broadcast %cst_344 : f32 to vector<16x1xf32>
    %560 = arith.mulf %558, %559 : vector<16x1xf32>
    %561 = arith.mulf %554, %554 : vector<16x32xf32>
    %cst_345 = arith.constant dense<0.000000e+00> : vector<16xf32>
    %562 = vector.multi_reduction <add>, %561, %cst_345 [1] : vector<16x32xf32> to vector<16xf32>
    %563 = vector.shape_cast %562 : vector<16xf32> to vector<16x1xf32>
    %cst_346 = arith.constant 3.125000e-02 : f32
    %564 = vector.broadcast %cst_346 : f32 to vector<16x1xf32>
    %565 = arith.mulf %563, %564 : vector<16x1xf32>
    %566 = arith.mulf %560, %560 : vector<16x1xf32>
    %567 = arith.subf %565, %566 : vector<16x1xf32>
    %cst_347 = arith.constant 0.000000e+00 : f32
    %568 = vector.broadcast %cst_347 : f32 to vector<16x1xf32>
    %569 = arith.maximumf %567, %568 : vector<16x1xf32>
    %cst_348 = arith.constant 9.99999974E-6 : f32
    %570 = vector.broadcast %cst_348 : f32 to vector<16x1xf32>
    %571 = arith.addf %569, %570 : vector<16x1xf32>
    %572 = math.rsqrt %571 : vector<16x1xf32>
    %573 = arith.mulf %572, %555 : vector<16x1xf32>
    %574 = vector.broadcast %560 : vector<16x1xf32> to vector<16x32xf32>
    %575 = arith.subf %554, %574 : vector<16x32xf32>
    %576 = vector.broadcast %573 : vector<16x1xf32> to vector<16x32xf32>
    %577 = arith.mulf %575, %576 : vector<16x32xf32>
    %578 = vector.broadcast %556 : vector<16x1xf32> to vector<16x32xf32>
    %579 = arith.addf %577, %578 : vector<16x32xf32>
    %cst_349 = arith.constant 0.000000e+00 : f32
    %580 = vector.broadcast %cst_349 : f32 to vector<16x32xf32>
    %581 = arith.maximumf %579, %580 : vector<16x32xf32>
    %cst_350 = arith.constant 0.000000e+00 : f32
    %582 = vector.broadcast %cst_350 : f32 to vector<16x5xf32>
    %c0_351 = arith.constant 0 : index
    %c32_352 = arith.constant 32 : index
    %583 = vector.load %arg15[%c0_351, %c32_352] : memref<16x37xf32, #tpu.memory_space<vmem>>, vector<16x5xf32>
    tpu.vector_store %arg15[%c0_351, %c32_352], %582 {strides = array<i32>} : memref<16x37xf32, #tpu.memory_space<vmem>>, vector<16x5xf32>,
    %c0_353 = arith.constant 0 : index
    %c0_354 = arith.constant 0 : index
    %584 = vector.load %arg15[%c0_353, %c0_354] : memref<16x37xf32, #tpu.memory_space<vmem>>, vector<16x32xf32>
    tpu.vector_store %arg15[%c0_353, %c0_354], %581 {strides = array<i32>} : memref<16x37xf32, #tpu.memory_space<vmem>>, vector<16x32xf32>,
    %585 = tpu.iota {dimensions = array<i32: 1>} : vector<1x4xi32>
    %c1_i32_355 = arith.constant 1 : i32
    %586 = vector.broadcast %c1_i32_355 : i32 to vector<1x4xi32>
    %587 = arith.shrsi %585, %586 : vector<1x4xi32>
    %c1_i32_356 = arith.constant 1 : i32
    %588 = vector.broadcast %c1_i32_356 : i32 to vector<1x4xi32>
    %589 = arith.andi %585, %588 : vector<1x4xi32>
    %c3_i32_357 = arith.constant 3 : i32
    %590 = vector.broadcast %c3_i32_357 : i32 to vector<1x4xi32>
    %591 = arith.shli %587, %590 : vector<1x4xi32>
    %c1_i32_358 = arith.constant 1 : i32
    %592 = vector.broadcast %c1_i32_358 : i32 to vector<1x4xi32>
    %593 = arith.shli %589, %592 : vector<1x4xi32>
    %594 = arith.addi %591, %593 : vector<1x4xi32>
    %595 = tpu.iota {dimensions = array<i32: 0>} : vector<16x4xi32>
    %596 = vector.broadcast %594 : vector<1x4xi32> to vector<16x4xi32>
    %597 = arith.cmpi eq, %595, %596 : vector<16x4xi32>
    %cst_359 = arith.constant 1.000000e+00 : f32
    %cst_360 = arith.constant 0.000000e+00 : f32
    %598 = vector.broadcast %cst_359 : f32 to vector<16x4xf32>
    %599 = vector.broadcast %cst_360 : f32 to vector<16x4xf32>
    %600 = arith.select %597, %598, %599 : vector<16x4xi1>, vector<16x4xf32>
    %c0_361 = arith.constant 0 : index
    %c0_362 = arith.constant 0 : index
    %601 = vector.load %arg15[%c0_361, %c0_362] : memref<16x37xf32, #tpu.memory_space<vmem>>, vector<16x16xf32>
    %c0_363 = arith.constant 0 : index
    %c1_364 = arith.constant 1 : index
    %602 = vector.load %arg15[%c0_363, %c1_364] : memref<16x37xf32, #tpu.memory_space<vmem>>, vector<16x16xf32>
    %603 = arith.maximumf %601, %602 : vector<16x16xf32>
    %c0_365 = arith.constant 0 : index
    %c4_366 = arith.constant 4 : index
    %604 = vector.load %arg15[%c0_365, %c4_366] : memref<16x37xf32, #tpu.memory_space<vmem>>, vector<16x16xf32>
    %c0_367 = arith.constant 0 : index
    %c5_368 = arith.constant 5 : index
    %605 = vector.load %arg15[%c0_367, %c5_368] : memref<16x37xf32, #tpu.memory_space<vmem>>, vector<16x16xf32>
    %606 = arith.maximumf %604, %605 : vector<16x16xf32>
    %607 = arith.maximumf %603, %606 : vector<16x16xf32>
    %cst_369 = arith.constant dense<0.000000e+00> : vector<16x4xf32>
    %608 = tpu.matmul %607, %600, %cst_369 {dimension_numbers = #tpu.dot_dimension_numbers<[1], [0], [0], [1], [0, 0, 1, 1], [], []>} : vector<16x16xf32>, vector<16x4xf32>, vector<16x4xf32> -> vector<16x4xf32>
    %cst_370 = arith.constant dense<0.000000e+00> : vector<16xf32>
    %609 = vector.multi_reduction <add>, %608, %cst_370 [1] : vector<16x4xf32> to vector<16xf32>
    %610 = vector.shape_cast %609 : vector<16xf32> to vector<16x1xf32>
    %cst_371 = arith.constant 2.500000e-01 : f32
    %611 = vector.broadcast %cst_371 : f32 to vector<16x1xf32>
    %612 = arith.mulf %610, %611 : vector<16x1xf32>
    %c0_372 = arith.constant 0 : index
    %c12_373 = arith.constant 12 : index
    %613 = vector.load %arg7[%c0_372, %c12_373] : memref<16x128xf32, #tpu.memory_space<vmem>>, vector<16x1xf32>
    tpu.vector_store %arg7[%c0_372, %c12_373], %612 {strides = array<i32>} : memref<16x128xf32, #tpu.memory_space<vmem>>, vector<16x1xf32>,
    %c0_374 = arith.constant 0 : index
    %c0_375 = arith.constant 0 : index
    %614 = vector.load %arg7[%c0_374, %c0_375] : memref<16x128xf32, #tpu.memory_space<vmem>>, vector<16x4xf32>
    tpu.vector_store %arg7[%c0_374, %c0_375], %608 {strides = array<i32>} : memref<16x128xf32, #tpu.memory_space<vmem>>, vector<16x4xf32>,
    %c0_376 = arith.constant 0 : index
    %c16_377 = arith.constant 16 : index
    %615 = vector.load %arg15[%c0_376, %c16_377] : memref<16x37xf32, #tpu.memory_space<vmem>>, vector<16x16xf32>
    %c0_378 = arith.constant 0 : index
    %c17_379 = arith.constant 17 : index
    %616 = vector.load %arg15[%c0_378, %c17_379] : memref<16x37xf32, #tpu.memory_space<vmem>>, vector<16x16xf32>
    %617 = arith.maximumf %615, %616 : vector<16x16xf32>
    %c0_380 = arith.constant 0 : index
    %c20_381 = arith.constant 20 : index
    %618 = vector.load %arg15[%c0_380, %c20_381] : memref<16x37xf32, #tpu.memory_space<vmem>>, vector<16x16xf32>
    %c0_382 = arith.constant 0 : index
    %c21_383 = arith.constant 21 : index
    %619 = vector.load %arg15[%c0_382, %c21_383] : memref<16x37xf32, #tpu.memory_space<vmem>>, vector<16x16xf32>
    %620 = arith.maximumf %618, %619 : vector<16x16xf32>
    %621 = arith.maximumf %617, %620 : vector<16x16xf32>
    %cst_384 = arith.constant dense<0.000000e+00> : vector<16x4xf32>
    %622 = tpu.matmul %621, %600, %cst_384 {dimension_numbers = #tpu.dot_dimension_numbers<[1], [0], [0], [1], [0, 0, 1, 1], [], []>} : vector<16x16xf32>, vector<16x4xf32>, vector<16x4xf32> -> vector<16x4xf32>
    %cst_385 = arith.constant dense<0.000000e+00> : vector<16xf32>
    %623 = vector.multi_reduction <add>, %622, %cst_385 [1] : vector<16x4xf32> to vector<16xf32>
    %624 = vector.shape_cast %623 : vector<16xf32> to vector<16x1xf32>
    %cst_386 = arith.constant 2.500000e-01 : f32
    %625 = vector.broadcast %cst_386 : f32 to vector<16x1xf32>
    %626 = arith.mulf %624, %625 : vector<16x1xf32>
    %c0_387 = arith.constant 0 : index
    %c13_388 = arith.constant 13 : index
    %627 = vector.load %arg7[%c0_387, %c13_388] : memref<16x128xf32, #tpu.memory_space<vmem>>, vector<16x1xf32>
    tpu.vector_store %arg7[%c0_387, %c13_388], %626 {strides = array<i32>} : memref<16x128xf32, #tpu.memory_space<vmem>>, vector<16x1xf32>,
    %c0_389 = arith.constant 0 : index
    %c4_390 = arith.constant 4 : index
    %628 = vector.load %arg7[%c0_389, %c4_390] : memref<16x128xf32, #tpu.memory_space<vmem>>, vector<16x4xf32>
    tpu.vector_store %arg7[%c0_389, %c4_390], %622 {strides = array<i32>} : memref<16x128xf32, #tpu.memory_space<vmem>>, vector<16x4xf32>,
    return
  }
  func.func @transform_0(%arg0: i32) -> (i32, i32) {
    %c0_i32 = arith.constant 0 : i32
    %c0_i32_0 = arith.constant 0 : i32
    %c0_i32_1 = arith.constant 0 : i32
    return %c0_i32, %c0_i32_0 : i32, i32
  }
  func.func @transform_1(%arg0: i32) -> (i32, i32) {
    %c0_i32 = arith.constant 0 : i32
    %c0_i32_0 = arith.constant 0 : i32
    %c0_i32_1 = arith.constant 0 : i32
    return %c0_i32, %c0_i32_0 : i32, i32
  }
  func.func @transform_2(%arg0: i32) -> (i32, i32) {
    %c0_i32 = arith.constant 0 : i32
    %c0_i32_0 = arith.constant 0 : i32
    %c0_i32_1 = arith.constant 0 : i32
    return %c0_i32, %c0_i32_0 : i32, i32
  }
  func.func @transform_3(%arg0: i32) -> (i32, i32) {
    %c0_i32 = arith.constant 0 : i32
    %c0_i32_0 = arith.constant 0 : i32
    %c0_i32_1 = arith.constant 0 : i32
    return %c0_i32, %c0_i32_0 : i32, i32
  }
  func.func @transform_4(%arg0: i32) -> (i32, i32) {
    %c0_i32 = arith.constant 0 : i32
    %c0_i32_0 = arith.constant 0 : i32
    %c0_i32_1 = arith.constant 0 : i32
    return %c0_i32, %c0_i32_0 : i32, i32
  }
  func.func @transform_5(%arg0: i32) -> (i32, i32) {
    %c0_i32 = arith.constant 0 : i32
    %c0_i32_0 = arith.constant 0 : i32
    %c0_i32_1 = arith.constant 0 : i32
    return %c0_i32, %c0_i32_0 : i32, i32
  }
  func.func @transform_6(%arg0: i32) -> (i32, i32) {
    %c0_i32 = arith.constant 0 : i32
    %c0_i32_0 = arith.constant 0 : i32
    %c0_i32_1 = arith.constant 0 : i32
    return %c0_i32, %c0_i32_0 : i32, i32
  }
}

</mosaic_0001>

<llo_original>
// kernel: _lambda_.1
$region0: #{_lambda_.1}
  #allocation0 [shape = 'u32[]', space=smem, size = 0x4, offset = 0x4, fixed_abs, tag = 'smem constant byte address 0x4 - core index']
  #allocation1 [shape = 'u32[144,128]{1,0:T(1,128)}', space=vmem, size = 0x12000, scoped, tag = 'internal scratch']
  #allocation2 [shape = 'f32[1,580]{1,0:T(1,128)}', space=vmem, size = 0xa00, scoped, tag = 'scratch operand']
  #allocation3 [shape = 'f32[4,529]{1,0:T(4,128)}', space=vmem, size = 0x2800, scoped, tag = 'scratch operand']
  #allocation4 [shape = 'f32[25,512]{1,0:T(8,128)}', space=vmem, size = 0x10000, scoped, tag = 'scratch operand']
  #allocation5 [shape = 'f32[4,146]{1,0:T(4,128)}', space=vmem, size = 0x1000, scoped, tag = 'scratch operand']
  #allocation6 [shape = 'f32[8,137]{1,0:T(8,128)}', space=vmem, size = 0x2000, scoped, tag = 'scratch operand']
  #allocation7 [shape = 'f32[36,128]{1,0:T(8,128)}', space=vmem, size = 0x5000, scoped, tag = 'scratch operand']
  #allocation8 [shape = 'f32[8,42]{1,0:T(8,128)}', space=vmem, size = 0x1000, scoped, tag = 'scratch operand']
  #allocation9 [shape = 'f32[16,37]{1,0:T(8,128)}', space=vmem, size = 0x2000, scoped, tag = 'scratch operand']
  #allocation10 [shape = 'f32[72,32]{1,0:T(8,128)}', space=vmem, size = 0x9000, scoped, tag = 'scratch operand']
  %s0 = inlined_call_operand.vmem [shape: f32[1,512], index: 0, kind: input, shape index: {}]
  %s1 = inlined_call_operand.vmem [shape: f32[4,25], index: 1, kind: input, shape index: {}]
  %s2 = inlined_call_operand.vmem [shape: f32[8,36], index: 2, kind: input, shape index: {}]
  %s3 = inlined_call_operand.vmem [shape: f32[16,72], index: 3, kind: input, shape index: {}]
  %s4 = inlined_call_operand.vmem [shape: f32[28,1], index: 4, kind: input, shape index: {}]
  %s5 = inlined_call_operand.vmem [shape: f32[28,1], index: 5, kind: input, shape index: {}]
  %s6 = inlined_call_operand.vmem [shape: f32[16,128], index: 6, kind: output, shape index: {}]
  %s7 = sld [smem:[#allocation0]]
  $region34: #{_lambda_.1} parent=0
    _
  %s9 = ssub.s32 1, %s7
  %s10 = scalar_select 0, %s9, %s7
  // Predicated region
  $region2: #{_lambda_.1} parent=0 // pred_check
    _
  $region3: #{_lambda_.1} parent=0 // pred_check_branch
    %12 = sbr.rel (0) target = $region5
  $region4: #{_lambda_.1} parent=0 // pred_region
    _
  $region5: #{_lambda_.1} parent=0 // pred_fallthru
    _
  // Predicated region
  $region6: #{_lambda_.1} parent=0 // pred_check
    _
  $region7: #{_lambda_.1} parent=0 // pred_check_branch
    %14 = sbr.rel (0) target = $region9
  $region8: #{_lambda_.1} parent=0 // pred_region
    _
  $region9: #{_lambda_.1} parent=0 // pred_fallthru
    _
  // Predicated region
  $region10: #{_lambda_.1} parent=0 // pred_check
    _
  $region11: #{_lambda_.1} parent=0 // pred_check_branch
    %16 = sbr.rel (0) target = $region13
  $region12: #{_lambda_.1} parent=0 // pred_region
    _
  $region13: #{_lambda_.1} parent=0 // pred_fallthru
    _
  // Predicated region
  $region14: #{_lambda_.1} parent=0 // pred_check
    _
  $region15: #{_lambda_.1} parent=0 // pred_check_branch
    %18 = sbr.rel (0) target = $region17
  $region16: #{_lambda_.1} parent=0 // pred_region
    _
  $region17: #{_lambda_.1} parent=0 // pred_fallthru
    _
  // Predicated region
  $region18: #{_lambda_.1} parent=0 // pred_check
    _
  $region19: #{_lambda_.1} parent=0 // pred_check_branch
    %20 = sbr.rel (0) target = $region21
  $region20: #{_lambda_.1} parent=0 // pred_region
    _
  $region21: #{_lambda_.1} parent=0 // pred_fallthru
    _
  // Predicated region
  $region22: #{_lambda_.1} parent=0 // pred_check
    _
  $region23: #{_lambda_.1} parent=0 // pred_check_branch
    %22 = sbr.rel (0) target = $region25
  $region24: #{_lambda_.1} parent=0 // pred_region
    _
  $region25: #{_lambda_.1} parent=0 // pred_fallthru
    _
  %23 = vst [vmem:[%s6] sm:$0xff] 0.0
  %24 = vst [vmem:[%s6 + $0x8] sm:$0xff] 0.0
  %v25 = vlaneseq
  %vm26 = vcmp.ge.s32.totalorder %v25, 0
  %vm27 = vcmp.lt.s32.totalorder %v25, 34
  %vm28 = vmand %vm26, %vm27
  %29 = vst.msk [vmem:[#allocation2] sm:$0x1] %vm28, 0.0
  %vm30 = vcmp.ge.s32.totalorder %v25, 34
  %vm31 = vcmp.lt.s32.totalorder %v25, 68
  %vm32 = vmand %vm30, %vm31
  %33 = vst.msk [vmem:[#allocation2 + $0x4] sm:$0x1] %vm32, 0.0
  %v34 = vld [vmem:[%s0] sm:$0xf]
  %36 = vrot.lane.b32.xlu0 %v34, 34
  %v37 = vpop.permute.xlu0 %36
  %v38 = vrot.slane %v37, 7
  %vm39 = vcmask 277504
  %v40 = vsel %vm39, %v38, %v37
  %vm42 = vcmp.lt.s32.totalorder %v25, 546
  %vm43 = vmand %vm30, %vm42
  %44 = vst.msk [vmem:[#allocation2] sm:$0x1f] %vm43, %v40
  %v45 = vlaneseq
  %v46 = vand.u32 %v45, 127
  %v47 = vadd.s32 %v46, 128
  %v48 = vadd.s32 %v46, 256
  %v49 = vadd.s32 %v46, 384
  %v50 = vand.u32 %v46, 15
  %v51 = vand.u32 %v47, 15
  %v52 = vand.u32 %v48, 15
  %v53 = vand.u32 %v49, 15
  %v54 = vand.u32 %v46, 255
  %v55 = vand.u32 %v47, 255
  %v56 = vand.u32 %v48, 255
  %v57 = vand.u32 %v49, 255
  %v58 = vshra.s32 %v54, 4
  %v59 = vshra.s32 %v55, 4
  %v60 = vshra.s32 %v56, 4
  %v61 = vshra.s32 %v57, 4
  %vm62 = vcmp.ge.s32.totalorder %v58, 2
  %vm63 = vcmp.ge.s32.totalorder %v59, 2
  %vm64 = vcmp.ge.s32.totalorder %v60, 2
  %vm65 = vcmp.ge.s32.totalorder %v61, 2
  %vm66 = vcmp.le.s32.totalorder %v58, 17
  %vm67 = vcmp.le.s32.totalorder %v59, 17
  %vm68 = vcmp.le.s32.totalorder %v60, 17
  %vm69 = vcmp.le.s32.totalorder %v61, 17
  %vm70 = vmand %vm62, %vm66
  %vm71 = vmand %vm63, %vm67
  %vm72 = vmand %vm64, %vm68
  %vm73 = vmand %vm65, %vm69
  %vm74 = vcmp.ge.s32.totalorder %v58, 1
  %vm75 = vcmp.ge.s32.totalorder %v59, 1
  %vm76 = vcmp.ge.s32.totalorder %v60, 1
  %vm77 = vcmp.ge.s32.totalorder %v61, 1
  %vm78 = vcmp.le.s32.totalorder %v58, 16
  %vm79 = vcmp.le.s32.totalorder %v59, 16
  %vm80 = vcmp.le.s32.totalorder %v60, 16
  %vm81 = vcmp.le.s32.totalorder %v61, 16
  %vm82 = vmand %vm74, %vm78
  %vm83 = vmand %vm75, %vm79
  %vm84 = vmand %vm76, %vm80
  %vm85 = vmand %vm77, %vm81
  %vm86 = vcmp.ge.s32.totalorder %v58, 0
  %vm87 = vcmp.ge.s32.totalorder %v59, 0
  %vm88 = vcmp.ge.s32.totalorder %v60, 0
  %vm89 = vcmp.ge.s32.totalorder %v61, 0
  %vm90 = vcmp.le.s32.totalorder %v58, 15
  %vm91 = vcmp.le.s32.totalorder %v59, 15
  %vm92 = vcmp.le.s32.totalorder %v60, 15
  %vm93 = vcmp.le.s32.totalorder %v61, 15
  %vm94 = vmand %vm86, %vm90
  %vm95 = vmand %vm87, %vm91
  %vm96 = vmand %vm88, %vm92
  %vm97 = vmand %vm89, %vm93
  %vm98 = vcmp.ge.s32.totalorder %v58, 4294967295
  %vm99 = vcmp.ge.s32.totalorder %v59, 4294967295
  %vm100 = vcmp.ge.s32.totalorder %v60, 4294967295
  %vm101 = vcmp.ge.s32.totalorder %v61, 4294967295
  %vm102 = vcmp.le.s32.totalorder %v58, 14
  %vm103 = vcmp.le.s32.totalorder %v59, 14
  %vm104 = vcmp.le.s32.totalorder %v60, 14
  %vm105 = vcmp.le.s32.totalorder %v61, 14
  %vm106 = vmand %vm98, %vm102
  %vm107 = vmand %vm99, %vm103
  %vm108 = vmand %vm100, %vm104
  %vm109 = vmand %vm101, %vm105
  %vm110 = vcmp.ge.s32.totalorder %v58, 4294967294
  %vm111 = vcmp.ge.s32.totalorder %v59, 4294967294
  %vm112 = vcmp.ge.s32.totalorder %v60, 4294967294
  %vm113 = vcmp.ge.s32.totalorder %v61, 4294967294
  %vm114 = vcmp.le.s32.totalorder %v58, 13
  %vm115 = vcmp.le.s32.totalorder %v59, 13
  %vm116 = vcmp.le.s32.totalorder %v60, 13
  %vm117 = vcmp.le.s32.totalorder %v61, 13
  %vm118 = vmand %vm110, %vm114
  %vm119 = vmand %vm111, %vm115
  %vm120 = vmand %vm112, %vm116
  %vm121 = vmand %vm113, %vm117
  %vm122 = vcmp.ge.s32.totalorder %v50, 2
  %vm123 = vcmp.ge.s32.totalorder %v51, 2
  %vm124 = vcmp.ge.s32.totalorder %v52, 2
  %vm125 = vcmp.ge.s32.totalorder %v53, 2
  %vm126 = vcmp.le.s32.totalorder %v50, 17
  %vm127 = vcmp.le.s32.totalorder %v51, 17
  %vm128 = vcmp.le.s32.totalorder %v52, 17
  %vm129 = vcmp.le.s32.totalorder %v53, 17
  %vm130 = vmand %vm122, %vm126
  %vm131 = vmand %vm123, %vm127
  %vm132 = vmand %vm124, %vm128
  %vm133 = vmand %vm125, %vm129
  %vm134 = vcmp.ge.s32.totalorder %v50, 1
  %vm135 = vcmp.ge.s32.totalorder %v51, 1
  %vm136 = vcmp.ge.s32.totalorder %v52, 1
  %vm137 = vcmp.ge.s32.totalorder %v53, 1
  %vm138 = vcmp.le.s32.totalorder %v50, 16
  %vm139 = vcmp.le.s32.totalorder %v51, 16
  %vm140 = vcmp.le.s32.totalorder %v52, 16
  %vm141 = vcmp.le.s32.totalorder %v53, 16
  %vm142 = vmand %vm134, %vm138
  %vm143 = vmand %vm135, %vm139
  %vm144 = vmand %vm136, %vm140
  %vm145 = vmand %vm137, %vm141
  %vm146 = vcmp.ge.s32.totalorder %v50, 0
  %vm147 = vcmp.ge.s32.totalorder %v51, 0
  %vm148 = vcmp.ge.s32.totalorder %v52, 0
  %vm149 = vcmp.ge.s32.totalorder %v53, 0
  %vm150 = vcmp.le.s32.totalorder %v50, 15
  %vm151 = vcmp.le.s32.totalorder %v51, 15
  %vm152 = vcmp.le.s32.totalorder %v52, 15
  %vm153 = vcmp.le.s32.totalorder %v53, 15
  %vm154 = vmand %vm146, %vm150
  %vm155 = vmand %vm147, %vm151
  %vm156 = vmand %vm148, %vm152
  %vm157 = vmand %vm149, %vm153
  %vm158 = vcmp.ge.s32.totalorder %v50, 4294967295
  %vm159 = vcmp.ge.s32.totalorder %v51, 4294967295
  %vm160 = vcmp.ge.s32.totalorder %v52, 4294967295
  %vm161 = vcmp.ge.s32.totalorder %v53, 4294967295
  %vm162 = vcmp.le.s32.totalorder %v50, 14
  %vm163 = vcmp.le.s32.totalorder %v51, 14
  %vm164 = vcmp.le.s32.totalorder %v52, 14
  %vm165 = vcmp.le.s32.totalorder %v53, 14
  %vm166 = vmand %vm158, %vm162
  %vm167 = vmand %vm159, %vm163
  %vm168 = vmand %vm160, %vm164
  %vm169 = vmand %vm161, %vm165
  %vm170 = vcmp.ge.s32.totalorder %v50, 4294967294
  %vm171 = vcmp.ge.s32.totalorder %v51, 4294967294
  %vm172 = vcmp.ge.s32.totalorder %v52, 4294967294
  %vm173 = vcmp.ge.s32.totalorder %v53, 4294967294
  %vm174 = vcmp.le.s32.totalorder %v50, 13
  %vm175 = vcmp.le.s32.totalorder %v51, 13
  %vm176 = vcmp.le.s32.totalorder %v52, 13
  %vm177 = vcmp.le.s32.totalorder %v53, 13
  %vm178 = vmand %vm170, %vm174
  %vm179 = vmand %vm171, %vm175
  %vm180 = vmand %vm172, %vm176
  %vm181 = vmand %vm173, %vm177
  %v182 = vld [vmem:[#allocation2] sm:$0xf]
  %vm183 = vmand %vm70, %vm130
  %vm184 = vmand %vm71, %vm131
  %vm185 = vmand %vm72, %vm132
  %vm186 = vmand %vm73, %vm133
  %v188 = vlaneseq
  %v189 = vshrl.u32 %v188, 7
  %v190 = vsub.s32 0, %v189
  %v191 = vrot.slane %v182, %v190
  %v192 = vlaneseq
  %v193 = vshrl.u32 %v192, 7
  %v194 = vsub.s32 1, %v193
  %v195 = vrot.slane %v182, %v194
  %v196 = vlaneseq
  %v197 = vshrl.u32 %v196, 7
  %v198 = vsub.s32 2, %v197
  %v199 = vrot.slane %v182, %v198
  %v200 = vlaneseq
  %v201 = vshrl.u32 %v200, 7
  %v202 = vsub.s32 3, %v201
  %v203 = vrot.slane %v182, %v202
  %v208 = vsel %vm183, %v191, 0.0
  %v209 = vsel %vm184, %v195, 0.0
  %v210 = vsel %vm185, %v199, 0.0
  %v211 = vsel %vm186, %v203, 0.0
  %v216 = vcombine.low %v208, %v209
  %v217 = vcombine.low %v210, %v211
  %v219 = vunpack.c.l.s4 1966171168
  %v220 = vunpack.c.0.s8 %v219
  %v221 = vlaneseq
  %v222 = vshrl.u32 %v221, 7
  %v223 = vsub.s32 %v220, %v222
  %v224 = vrot.slane %v216, %v223
  %v226 = vunpack.c.l.s4 1966171168
  %v227 = vunpack.c.0.s8 %v226
  %v228 = vlaneseq
  %v229 = vshrl.u32 %v228, 7
  %v230 = vsub.s32 %v227, %v229
  %v231 = vrot.slane %v217, %v230
  %v232 = vcombine.low %v224, %v231
  %v234 = vunpack.c.l.s4 1966171168
  %v235 = vunpack.c.0.s8 %v234
  %v236 = vlaneseq
  %v237 = vshrl.u32 %v236, 7
  %v238 = vsub.s32 %v235, %v237
  %v239 = vrot.slane %v232, %v238
  %vm241 = vcmp.lt.s32.totalorder %v25, 512
  %vm242 = vmand %vm26, %vm241
  %243 = vst.msk [vmem:[#allocation4] ss:$8 sm:$0xf] %vm242, %v239
  %244 = vst.msk [vmem:[#allocation4] ss:$8 sm:$0x0] %vm242, %v239
  %v245 = vld [vmem:[#allocation2] sm:$0x1f]
  %vm246 = vmand %vm70, %vm142
  %vm247 = vmand %vm71, %vm143
  %vm248 = vmand %vm72, %vm144
  %vm249 = vmand %vm73, %vm145
  %v251 = vlaneseq
  %v252 = vshrl.u32 %v251, 7
  %v253 = vsub.s32 0, %v252
  %v254 = vrot.slane %v245, %v253
  %v255 = vlaneseq
  %v256 = vshrl.u32 %v255, 7
  %v257 = vsub.s32 1, %v256
  %v258 = vrot.slane %v245, %v257
  %v259 = vlaneseq
  %v260 = vshrl.u32 %v259, 7
  %v261 = vsub.s32 2, %v260
  %v262 = vrot.slane %v245, %v261
  %v263 = vlaneseq
  %v264 = vshrl.u32 %v263, 7
  %v265 = vsub.s32 3, %v264
  %v266 = vrot.slane %v245, %v265
  %v267 = vlaneseq
  %v268 = vshrl.u32 %v267, 7
  %v269 = vsub.s32 4, %v268
  %v270 = vrot.slane %v245, %v269
  %271 = vrot.lane.b32.xlu0 %v254, 127
  %v272 = vpop.permute.xlu0 %271
  %273 = vrot.lane.b32.xlu0 %v258, 127
  %v274 = vpop.permute.xlu0 %273
  %275 = vrot.lane.b32.xlu0 %v262, 127
  %v276 = vpop.permute.xlu0 %275
  %277 = vrot.lane.b32.xlu0 %v266, 127
  %v278 = vpop.permute.xlu0 %277
  %279 = vrot.lane.b32.xlu0 %v270, 127
  %v280 = vpop.permute.xlu0 %279
  %vm281 = vcmask 1039360
  %v282 = vsel %vm281, %v272, %v274
  %v283 = vsel %vm281, %v274, %v276
  %v284 = vsel %vm281, %v276, %v278
  %v285 = vsel %vm281, %v278, %v280
  %v290 = vsel %vm246, %v282, 0.0
  %v291 = vsel %vm247, %v283, 0.0
  %v292 = vsel %vm248, %v284, 0.0
  %v293 = vsel %vm249, %v285, 0.0
  %v298 = vcombine.low %v290, %v291
  %v299 = vcombine.low %v292, %v293
  %v301 = vunpack.c.l.s4 1966171168
  %v302 = vunpack.c.0.s8 %v301
  %v303 = vlaneseq
  %v304 = vshrl.u32 %v303, 7
  %v305 = vsub.s32 %v302, %v304
  %v306 = vrot.slane %v298, %v305
  %v308 = vunpack.c.l.s4 1966171168
  %v309 = vunpack.c.0.s8 %v308
  %v310 = vlaneseq
  %v311 = vshrl.u32 %v310, 7
  %v312 = vsub.s32 %v309, %v311
  %v313 = vrot.slane %v299, %v312
  %v314 = vcombine.low %v306, %v313
  %v316 = vunpack.c.l.s4 1966171168
  %v317 = vunpack.c.0.s8 %v316
  %v318 = vlaneseq
  %v319 = vshrl.u32 %v318, 7
  %v320 = vsub.s32 %v317, %v319
  %v321 = vrot.slane %v314, %v320
  %s323 = scalar_lea.vmem [#allocation4], 1
  %324 = vst.msk [vmem:[%s323] ss:$8 sm:$0xf] %vm242, %v321
  %325 = vst.msk [vmem:[%s323] ss:$8 sm:$0x0] %vm242, %v321
  %v326 = vld [vmem:[#allocation2] sm:$0x1f]
  %vm327 = vmand %vm70, %vm154
  %vm328 = vmand %vm71, %vm155
  %vm329 = vmand %vm72, %vm156
  %vm330 = vmand %vm73, %vm157
  %v332 = vlaneseq
  %v333 = vshrl.u32 %v332, 7
  %v334 = vsub.s32 0, %v333
  %v335 = vrot.slane %v326, %v334
  %v336 = vlaneseq
  %v337 = vshrl.u32 %v336, 7
  %v338 = vsub.s32 1, %v337
  %v339 = vrot.slane %v326, %v338
  %v340 = vlaneseq
  %v341 = vshrl.u32 %v340, 7
  %v342 = vsub.s32 2, %v341
  %v343 = vrot.slane %v326, %v342
  %v344 = vlaneseq
  %v345 = vshrl.u32 %v344, 7
  %v346 = vsub.s32 3, %v345
  %v347 = vrot.slane %v326, %v346
  %v348 = vlaneseq
  %v349 = vshrl.u32 %v348, 7
  %v350 = vsub.s32 4, %v349
  %v351 = vrot.slane %v326, %v350
  %352 = vrot.lane.b32.xlu0 %v335, 126
  %v353 = vpop.permute.xlu0 %352
  %354 = vrot.lane.b32.xlu0 %v339, 126
  %v355 = vpop.permute.xlu0 %354
  %356 = vrot.lane.b32.xlu0 %v343, 126
  %v357 = vpop.permute.xlu0 %356
  %358 = vrot.lane.b32.xlu0 %v347, 126
  %v359 = vpop.permute.xlu0 %358
  %360 = vrot.lane.b32.xlu0 %v351, 126
  %v361 = vpop.permute.xlu0 %360
  %vm362 = vcmask 1031168
  %v363 = vsel %vm362, %v353, %v355
  %v364 = vsel %vm362, %v355, %v357
  %v365 = vsel %vm362, %v357, %v359
  %v366 = vsel %vm362, %v359, %v361
  %v371 = vsel %vm327, %v363, 0.0
  %v372 = vsel %vm328, %v364, 0.0
  %v373 = vsel %vm329, %v365, 0.0
  %v374 = vsel %vm330, %v366, 0.0
  %v379 = vcombine.low %v371, %v372
  %v380 = vcombine.low %v373, %v374
  %v382 = vunpack.c.l.s4 1966171168
  %v383 = vunpack.c.0.s8 %v382
  %v384 = vlaneseq
  %v385 = vshrl.u32 %v384, 7
  %v386 = vsub.s32 %v383, %v385
  %v387 = vrot.slane %v379, %v386
  %v389 = vunpack.c.l.s4 1966171168
  %v390 = vunpack.c.0.s8 %v389
  %v391 = vlaneseq
  %v392 = vshrl.u32 %v391, 7
  %v393 = vsub.s32 %v390, %v392
  %v394 = vrot.slane %v380, %v393
  %v395 = vcombine.low %v387, %v394
  %v397 = vunpack.c.l.s4 1966171168
  %v398 = vunpack.c.0.s8 %v397
  %v399 = vlaneseq
  %v400 = vshrl.u32 %v399, 7
  %v401 = vsub.s32 %v398, %v400
  %v402 = vrot.slane %v395, %v401
  %s404 = scalar_lea.vmem [#allocation4], 2
  %405 = vst.msk [vmem:[%s404] ss:$8 sm:$0xf] %vm242, %v402
  %406 = vst.msk [vmem:[%s404] ss:$8 sm:$0x0] %vm242, %v402
  %v407 = vld [vmem:[#allocation2] sm:$0x1f]
  %vm408 = vmand %vm70, %vm166
  %vm409 = vmand %vm71, %vm167
  %vm410 = vmand %vm72, %vm168
  %vm411 = vmand %vm73, %vm169
  %v413 = vlaneseq
  %v414 = vshrl.u32 %v413, 7
  %v415 = vsub.s32 0, %v414
  %v416 = vrot.slane %v407, %v415
  %v417 = vlaneseq
  %v418 = vshrl.u32 %v417, 7
  %v419 = vsub.s32 1, %v418
  %v420 = vrot.slane %v407, %v419
  %v421 = vlaneseq
  %v422 = vshrl.u32 %v421, 7
  %v423 = vsub.s32 2, %v422
  %v424 = vrot.slane %v407, %v423
  %v425 = vlaneseq
  %v426 = vshrl.u32 %v425, 7
  %v427 = vsub.s32 3, %v426
  %v428 = vrot.slane %v407, %v427
  %v429 = vlaneseq
  %v430 = vshrl.u32 %v429, 7
  %v431 = vsub.s32 4, %v430
  %v432 = vrot.slane %v407, %v431
  %433 = vrot.lane.b32.xlu0 %v416, 125
  %v434 = vpop.permute.xlu0 %433
  %435 = vrot.lane.b32.xlu0 %v420, 125
  %v436 = vpop.permute.xlu0 %435
  %437 = vrot.lane.b32.xlu0 %v424, 125
  %v438 = vpop.permute.xlu0 %437
  %439 = vrot.lane.b32.xlu0 %v428, 125
  %v440 = vpop.permute.xlu0 %439
  %441 = vrot.lane.b32.xlu0 %v432, 125
  %v442 = vpop.permute.xlu0 %441
  %vm443 = vcmask 1022976
  %v444 = vsel %vm443, %v434, %v436
  %v445 = vsel %vm443, %v436, %v438
  %v446 = vsel %vm443, %v438, %v440
  %v447 = vsel %vm443, %v440, %v442
  %v452 = vsel %vm408, %v444, 0.0
  %v453 = vsel %vm409, %v445, 0.0
  %v454 = vsel %vm410, %v446, 0.0
  %v455 = vsel %vm411, %v447, 0.0
  %v460 = vcombine.low %v452, %v453
  %v461 = vcombine.low %v454, %v455
  %v463 = vunpack.c.l.s4 1966171168
  %v464 = vunpack.c.0.s8 %v463
  %v465 = vlaneseq
  %v466 = vshrl.u32 %v465, 7
  %v467 = vsub.s32 %v464, %v466
  %v468 = vrot.slane %v460, %v467
  %v470 = vunpack.c.l.s4 1966171168
  %v471 = vunpack.c.0.s8 %v470
  %v472 = vlaneseq
  %v473 = vshrl.u32 %v472, 7
  %v474 = vsub.s32 %v471, %v473
  %v475 = vrot.slane %v461, %v474
  %v476 = vcombine.low %v468, %v475
  %v478 = vunpack.c.l.s4 1966171168
  %v479 = vunpack.c.0.s8 %v478
  %v480 = vlaneseq
  %v481 = vshrl.u32 %v480, 7
  %v482 = vsub.s32 %v479, %v481
  %v483 = vrot.slane %v476, %v482
  %s485 = scalar_lea.vmem [#allocation4], 3
  %486 = vst.msk [vmem:[%s485] ss:$8 sm:$0xf] %vm242, %v483
  %487 = vst.msk [vmem:[%s485] ss:$8 sm:$0x0] %vm242, %v483
  %v488 = vld [vmem:[#allocation2] sm:$0x1f]
  %vm489 = vmand %vm70, %vm178
  %vm490 = vmand %vm71, %vm179
  %vm491 = vmand %vm72, %vm180
  %vm492 = vmand %vm73, %vm181
  %v494 = vlaneseq
  %v495 = vshrl.u32 %v494, 7
  %v496 = vsub.s32 0, %v495
  %v497 = vrot.slane %v488, %v496
  %v498 = vlaneseq
  %v499 = vshrl.u32 %v498, 7
  %v500 = vsub.s32 1, %v499
  %v501 = vrot.slane %v488, %v500
  %v502 = vlaneseq
  %v503 = vshrl.u32 %v502, 7
  %v504 = vsub.s32 2, %v503
  %v505 = vrot.slane %v488, %v504
  %v506 = vlaneseq
  %v507 = vshrl.u32 %v506, 7
  %v508 = vsub.s32 3, %v507
  %v509 = vrot.slane %v488, %v508
  %v510 = vlaneseq
  %v511 = vshrl.u32 %v510, 7
  %v512 = vsub.s32 4, %v511
  %v513 = vrot.slane %v488, %v512
  %514 = vrot.lane.b32.xlu0 %v497, 124
  %v515 = vpop.permute.xlu0 %514
  %516 = vrot.lane.b32.xlu0 %v501, 124
  %v517 = vpop.permute.xlu0 %516
  %518 = vrot.lane.b32.xlu0 %v505, 124
  %v519 = vpop.permute.xlu0 %518
  %520 = vrot.lane.b32.xlu0 %v509, 124
  %v521 = vpop.permute.xlu0 %520
  %522 = vrot.lane.b32.xlu0 %v513, 124
  %v523 = vpop.permute.xlu0 %522
  %vm524 = vcmask 1014784
  %v525 = vsel %vm524, %v515, %v517
  %v526 = vsel %vm524, %v517, %v519
  %v527 = vsel %vm524, %v519, %v521
  %v528 = vsel %vm524, %v521, %v523
  %v533 = vsel %vm489, %v525, 0.0
  %v534 = vsel %vm490, %v526, 0.0
  %v535 = vsel %vm491, %v527, 0.0
  %v536 = vsel %vm492, %v528, 0.0
  %v541 = vcombine.low %v533, %v534
  %v542 = vcombine.low %v535, %v536
  %v544 = vunpack.c.l.s4 1966171168
  %v545 = vunpack.c.0.s8 %v544
  %v546 = vlaneseq
  %v547 = vshrl.u32 %v546, 7
  %v548 = vsub.s32 %v545, %v547
  %v549 = vrot.slane %v541, %v548
  %v551 = vunpack.c.l.s4 1966171168
  %v552 = vunpack.c.0.s8 %v551
  %v553 = vlaneseq
  %v554 = vshrl.u32 %v553, 7
  %v555 = vsub.s32 %v552, %v554
  %v556 = vrot.slane %v542, %v555
  %v557 = vcombine.low %v549, %v556
  %v559 = vunpack.c.l.s4 1966171168
  %v560 = vunpack.c.0.s8 %v559
  %v561 = vlaneseq
  %v562 = vshrl.u32 %v561, 7
  %v563 = vsub.s32 %v560, %v562
  %v564 = vrot.slane %v557, %v563
  %s566 = scalar_lea.vmem [#allocation4], 4
  %567 = vst.msk [vmem:[%s566] ss:$8 sm:$0xf] %vm242, %v564
  %568 = vst.msk [vmem:[%s566] ss:$8 sm:$0x0] %vm242, %v564
  %v569 = vld [vmem:[#allocation2] sm:$0x1f]
  %vm570 = vmand %vm82, %vm130
  %vm571 = vmand %vm83, %vm131
  %vm572 = vmand %vm84, %vm132
  %vm573 = vmand %vm85, %vm133
  %v575 = vlaneseq
  %v576 = vshrl.u32 %v575, 7
  %v577 = vsub.s32 0, %v576
  %v578 = vrot.slane %v569, %v577
  %v579 = vlaneseq
  %v580 = vshrl.u32 %v579, 7
  %v581 = vsub.s32 1, %v580
  %v582 = vrot.slane %v569, %v581
  %v583 = vlaneseq
  %v584 = vshrl.u32 %v583, 7
  %v585 = vsub.s32 2, %v584
  %v586 = vrot.slane %v569, %v585
  %v587 = vlaneseq
  %v588 = vshrl.u32 %v587, 7
  %v589 = vsub.s32 3, %v588
  %v590 = vrot.slane %v569, %v589
  %v591 = vlaneseq
  %v592 = vshrl.u32 %v591, 7
  %v593 = vsub.s32 4, %v592
  %v594 = vrot.slane %v569, %v593
  %595 = vrot.lane.b32.xlu0 %v578, 112
  %v596 = vpop.permute.xlu0 %595
  %597 = vrot.lane.b32.xlu0 %v582, 112
  %v598 = vpop.permute.xlu0 %597
  %599 = vrot.lane.b32.xlu0 %v586, 112
  %v600 = vpop.permute.xlu0 %599
  %601 = vrot.lane.b32.xlu0 %v590, 112
  %v602 = vpop.permute.xlu0 %601
  %603 = vrot.lane.b32.xlu0 %v594, 112
  %v604 = vpop.permute.xlu0 %603
  %vm605 = vcmask 916480
  %v606 = vsel %vm605, %v596, %v598
  %v607 = vsel %vm605, %v598, %v600
  %v608 = vsel %vm605, %v600, %v602
  %v609 = vsel %vm605, %v602, %v604
  %v614 = vsel %vm570, %v606, 0.0
  %v615 = vsel %vm571, %v607, 0.0
  %v616 = vsel %vm572, %v608, 0.0
  %v617 = vsel %vm573, %v609, 0.0
  %v622 = vcombine.low %v614, %v615
  %v623 = vcombine.low %v616, %v617
  %v625 = vunpack.c.l.s4 1966171168
  %v626 = vunpack.c.0.s8 %v625
  %v627 = vlaneseq
  %v628 = vshrl.u32 %v627, 7
  %v629 = vsub.s32 %v626, %v628
  %v630 = vrot.slane %v622, %v629
  %v632 = vunpack.c.l.s4 1966171168
  %v633 = vunpack.c.0.s8 %v632
  %v634 = vlaneseq
  %v635 = vshrl.u32 %v634, 7
  %v636 = vsub.s32 %v633, %v635
  %v637 = vrot.slane %v623, %v636
  %v638 = vcombine.low %v630, %v637
  %v640 = vunpack.c.l.s4 1966171168
  %v641 = vunpack.c.0.s8 %v640
  %v642 = vlaneseq
  %v643 = vshrl.u32 %v642, 7
  %v644 = vsub.s32 %v641, %v643
  %v645 = vrot.slane %v638, %v644
  %s647 = scalar_lea.vmem [#allocation4], 5
  %648 = vst.msk [vmem:[%s647] ss:$8 sm:$0xf] %vm242, %v645
  %649 = vst.msk [vmem:[%s647] ss:$8 sm:$0x0] %vm242, %v645
  %v650 = vld [vmem:[#allocation2] sm:$0x1f]
  %vm651 = vmand %vm82, %vm142
  %vm652 = vmand %vm83, %vm143
  %vm653 = vmand %vm84, %vm144
  %vm654 = vmand %vm85, %vm145
  %v656 = vlaneseq
  %v657 = vshrl.u32 %v656, 7
  %v658 = vsub.s32 0, %v657
  %v659 = vrot.slane %v650, %v658
  %v660 = vlaneseq
  %v661 = vshrl.u32 %v660, 7
  %v662 = vsub.s32 1, %v661
  %v663 = vrot.slane %v650, %v662
  %v664 = vlaneseq
  %v665 = vshrl.u32 %v664, 7
  %v666 = vsub.s32 2, %v665
  %v667 = vrot.slane %v650, %v666
  %v668 = vlaneseq
  %v669 = vshrl.u32 %v668, 7
  %v670 = vsub.s32 3, %v669
  %v671 = vrot.slane %v650, %v670
  %v672 = vlaneseq
  %v673 = vshrl.u32 %v672, 7
  %v674 = vsub.s32 4, %v673
  %v675 = vrot.slane %v650, %v674
  %676 = vrot.lane.b32.xlu0 %v659, 111
  %v677 = vpop.permute.xlu0 %676
  %678 = vrot.lane.b32.xlu0 %v663, 111
  %v679 = vpop.permute.xlu0 %678
  %680 = vrot.lane.b32.xlu0 %v667, 111
  %v681 = vpop.permute.xlu0 %680
  %682 = vrot.lane.b32.xlu0 %v671, 111
  %v683 = vpop.permute.xlu0 %682
  %684 = vrot.lane.b32.xlu0 %v675, 111
  %v685 = vpop.permute.xlu0 %684
  %vm686 = vcmask 908288
  %v687 = vsel %vm686, %v677, %v679
  %v688 = vsel %vm686, %v679, %v681
  %v689 = vsel %vm686, %v681, %v683
  %v690 = vsel %vm686, %v683, %v685
  %v695 = vsel %vm651, %v687, 0.0
  %v696 = vsel %vm652, %v688, 0.0
  %v697 = vsel %vm653, %v689, 0.0
  %v698 = vsel %vm654, %v690, 0.0
  %v703 = vcombine.low %v695, %v696
  %v704 = vcombine.low %v697, %v698
  %v706 = vunpack.c.l.s4 1966171168
  %v707 = vunpack.c.0.s8 %v706
  %v708 = vlaneseq
  %v709 = vshrl.u32 %v708, 7
  %v710 = vsub.s32 %v707, %v709
  %v711 = vrot.slane %v703, %v710
  %v713 = vunpack.c.l.s4 1966171168
  %v714 = vunpack.c.0.s8 %v713
  %v715 = vlaneseq
  %v716 = vshrl.u32 %v715, 7
  %v717 = vsub.s32 %v714, %v716
  %v718 = vrot.slane %v704, %v717
  %v719 = vcombine.low %v711, %v718
  %v721 = vunpack.c.l.s4 1966171168
  %v722 = vunpack.c.0.s8 %v721
  %v723 = vlaneseq
  %v724 = vshrl.u32 %v723, 7
  %v725 = vsub.s32 %v722, %v724
  %v726 = vrot.slane %v719, %v725
  %s728 = scalar_lea.vmem [#allocation4], 6
  %729 = vst.msk [vmem:[%s728] ss:$8 sm:$0xf] %vm242, %v726
  %730 = vst.msk [vmem:[%s728] ss:$8 sm:$0x0] %vm242, %v726
  %v731 = vld [vmem:[#allocation2] sm:$0x1f]
  %vm732 = vmand %vm82, %vm154
  %vm733 = vmand %vm83, %vm155
  %vm734 = vmand %vm84, %vm156
  %vm735 = vmand %vm85, %vm157
  %v737 = vlaneseq
  %v738 = vshrl.u32 %v737, 7
  %v739 = vsub.s32 0, %v738
  %v740 = vrot.slane %v731, %v739
  %v741 = vlaneseq
  %v742 = vshrl.u32 %v741, 7
  %v743 = vsub.s32 1, %v742
  %v744 = vrot.slane %v731, %v743
  %v745 = vlaneseq
  %v746 = vshrl.u32 %v745, 7
  %v747 = vsub.s32 2, %v746
  %v748 = vrot.slane %v731, %v747
  %v749 = vlaneseq
  %v750 = vshrl.u32 %v749, 7
  %v751 = vsub.s32 3, %v750
  %v752 = vrot.slane %v731, %v751
  %v753 = vlaneseq
  %v754 = vshrl.u32 %v753, 7
  %v755 = vsub.s32 4, %v754
  %v756 = vrot.slane %v731, %v755
  %757 = vrot.lane.b32.xlu0 %v740, 110
  %v758 = vpop.permute.xlu0 %757
  %759 = vrot.lane.b32.xlu0 %v744, 110
  %v760 = vpop.permute.xlu0 %759
  %761 = vrot.lane.b32.xlu0 %v748, 110
  %v762 = vpop.permute.xlu0 %761
  %763 = vrot.lane.b32.xlu0 %v752, 110
  %v764 = vpop.permute.xlu0 %763
  %765 = vrot.lane.b32.xlu0 %v756, 110
  %v766 = vpop.permute.xlu0 %765
  %vm767 = vcmask 900096
  %v768 = vsel %vm767, %v758, %v760
  %v769 = vsel %vm767, %v760, %v762
  %v770 = vsel %vm767, %v762, %v764
  %v771 = vsel %vm767, %v764, %v766
  %v776 = vsel %vm732, %v768, 0.0
  %v777 = vsel %vm733, %v769, 0.0
  %v778 = vsel %vm734, %v770, 0.0
  %v779 = vsel %vm735, %v771, 0.0
  %v784 = vcombine.low %v776, %v777
  %v785 = vcombine.low %v778, %v779
  %v787 = vunpack.c.l.s4 1966171168
  %v788 = vunpack.c.0.s8 %v787
  %v789 = vlaneseq
  %v790 = vshrl.u32 %v789, 7
  %v791 = vsub.s32 %v788, %v790
  %v792 = vrot.slane %v784, %v791
  %v794 = vunpack.c.l.s4 1966171168
  %v795 = vunpack.c.0.s8 %v794
  %v796 = vlaneseq
  %v797 = vshrl.u32 %v796, 7
  %v798 = vsub.s32 %v795, %v797
  %v799 = vrot.slane %v785, %v798
  %v800 = vcombine.low %v792, %v799
  %v802 = vunpack.c.l.s4 1966171168
  %v803 = vunpack.c.0.s8 %v802
  %v804 = vlaneseq
  %v805 = vshrl.u32 %v804, 7
  %v806 = vsub.s32 %v803, %v805
  %v807 = vrot.slane %v800, %v806
  %s809 = scalar_lea.vmem [#allocation4], 7
  %810 = vst.msk [vmem:[%s809] ss:$8 sm:$0xf] %vm242, %v807
  %811 = vst.msk [vmem:[%s809] ss:$8 sm:$0x0] %vm242, %v807
  %v812 = vld [vmem:[#allocation2] sm:$0x1f]
  %vm813 = vmand %vm82, %vm166
  %vm814 = vmand %vm83, %vm167
  %vm815 = vmand %vm84, %vm168
  %vm816 = vmand %vm85, %vm169
  %v818 = vlaneseq
  %v819 = vshrl.u32 %v818, 7
  %v820 = vsub.s32 0, %v819
  %v821 = vrot.slane %v812, %v820
  %v822 = vlaneseq
  %v823 = vshrl.u32 %v822, 7
  %v824 = vsub.s32 1, %v823
  %v825 = vrot.slane %v812, %v824
  %v826 = vlaneseq
  %v827 = vshrl.u32 %v826, 7
  %v828 = vsub.s32 2, %v827
  %v829 = vrot.slane %v812, %v828
  %v830 = vlaneseq
  %v831 = vshrl.u32 %v830, 7
  %v832 = vsub.s32 3, %v831
  %v833 = vrot.slane %v812, %v832
  %v834 = vlaneseq
  %v835 = vshrl.u32 %v834, 7
  %v836 = vsub.s32 4, %v835
  %v837 = vrot.slane %v812, %v836
  %838 = vrot.lane.b32.xlu0 %v821, 109
  %v839 = vpop.permute.xlu0 %838
  %840 = vrot.lane.b32.xlu0 %v825, 109
  %v841 = vpop.permute.xlu0 %840
  %842 = vrot.lane.b32.xlu0 %v829, 109
  %v843 = vpop.permute.xlu0 %842
  %844 = vrot.lane.b32.xlu0 %v833, 109
  %v845 = vpop.permute.xlu0 %844
  %846 = vrot.lane.b32.xlu0 %v837, 109
  %v847 = vpop.permute.xlu0 %846
  %vm848 = vcmask 891904
  %v849 = vsel %vm848, %v839, %v841
  %v850 = vsel %vm848, %v841, %v843
  %v851 = vsel %vm848, %v843, %v845
  %v852 = vsel %vm848, %v845, %v847
  %v857 = vsel %vm813, %v849, 0.0
  %v858 = vsel %vm814, %v850, 0.0
  %v859 = vsel %vm815, %v851, 0.0
  %v860 = vsel %vm816, %v852, 0.0
  %v865 = vcombine.low %v857, %v858
  %v866 = vcombine.low %v859, %v860
  %v868 = vunpack.c.l.s4 1966171168
  %v869 = vunpack.c.0.s8 %v868
  %v870 = vlaneseq
  %v871 = vshrl.u32 %v870, 7
  %v872 = vsub.s32 %v869, %v871
  %v873 = vrot.slane %v865, %v872
  %v875 = vunpack.c.l.s4 1966171168
  %v876 = vunpack.c.0.s8 %v875
  %v877 = vlaneseq
  %v878 = vshrl.u32 %v877, 7
  %v879 = vsub.s32 %v876, %v878
  %v880 = vrot.slane %v866, %v879
  %v881 = vcombine.low %v873, %v880
  %v883 = vunpack.c.l.s4 1966171168
  %v884 = vunpack.c.0.s8 %v883
  %v885 = vlaneseq
  %v886 = vshrl.u32 %v885, 7
  %v887 = vsub.s32 %v884, %v886
  %v888 = vrot.slane %v881, %v887
  %s890 = scalar_lea.vmem [#allocation4], 32
  %891 = vst.msk [vmem:[%s890] ss:$8 sm:$0xf] %vm242, %v888
  %892 = vst.msk [vmem:[%s890] ss:$8 sm:$0x0] %vm242, %v888
  %v893 = vld [vmem:[#allocation2] sm:$0x1f]
  %vm894 = vmand %vm82, %vm178
  %vm895 = vmand %vm83, %vm179
  %vm896 = vmand %vm84, %vm180
  %vm897 = vmand %vm85, %vm181
  %v899 = vlaneseq
  %v900 = vshrl.u32 %v899, 7
  %v901 = vsub.s32 0, %v900
  %v902 = vrot.slane %v893, %v901
  %v903 = vlaneseq
  %v904 = vshrl.u32 %v903, 7
  %v905 = vsub.s32 1, %v904
  %v906 = vrot.slane %v893, %v905
  %v907 = vlaneseq
  %v908 = vshrl.u32 %v907, 7
  %v909 = vsub.s32 2, %v908
  %v910 = vrot.slane %v893, %v909
  %v911 = vlaneseq
  %v912 = vshrl.u32 %v911, 7
  %v913 = vsub.s32 3, %v912
  %v914 = vrot.slane %v893, %v913
  %v915 = vlaneseq
  %v916 = vshrl.u32 %v915, 7
  %v917 = vsub.s32 4, %v916
  %v918 = vrot.slane %v893, %v917
  %919 = vrot.lane.b32.xlu0 %v902, 108
  %v920 = vpop.permute.xlu0 %919
  %921 = vrot.lane.b32.xlu0 %v906, 108
  %v922 = vpop.permute.xlu0 %921
  %923 = vrot.lane.b32.xlu0 %v910, 108
  %v924 = vpop.permute.xlu0 %923
  %925 = vrot.lane.b32.xlu0 %v914, 108
  %v926 = vpop.permute.xlu0 %925
  %927 = vrot.lane.b32.xlu0 %v918, 108
  %v928 = vpop.permute.xlu0 %927
  %vm929 = vcmask 883712
  %v930 = vsel %vm929, %v920, %v922
  %v931 = vsel %vm929, %v922, %v924
  %v932 = vsel %vm929, %v924, %v926
  %v933 = vsel %vm929, %v926, %v928
  %v938 = vsel %vm894, %v930, 0.0
  %v939 = vsel %vm895, %v931, 0.0
  %v940 = vsel %vm896, %v932, 0.0
  %v941 = vsel %vm897, %v933, 0.0
  %v946 = vcombine.low %v938, %v939
  %v947 = vcombine.low %v940, %v941
  %v949 = vunpack.c.l.s4 1966171168
  %v950 = vunpack.c.0.s8 %v949
  %v951 = vlaneseq
  %v952 = vshrl.u32 %v951, 7
  %v953 = vsub.s32 %v950, %v952
  %v954 = vrot.slane %v946, %v953
  %v956 = vunpack.c.l.s4 1966171168
  %v957 = vunpack.c.0.s8 %v956
  %v958 = vlaneseq
  %v959 = vshrl.u32 %v958, 7
  %v960 = vsub.s32 %v957, %v959
  %v961 = vrot.slane %v947, %v960
  %v962 = vcombine.low %v954, %v961
  %v964 = vunpack.c.l.s4 1966171168
  %v965 = vunpack.c.0.s8 %v964
  %v966 = vlaneseq
  %v967 = vshrl.u32 %v966, 7
  %v968 = vsub.s32 %v965, %v967
  %v969 = vrot.slane %v962, %v968
  %s971 = scalar_lea.vmem [#allocation4], 33
  %972 = vst.msk [vmem:[%s971] ss:$8 sm:$0xf] %vm242, %v969
  %973 = vst.msk [vmem:[%s971] ss:$8 sm:$0x0] %vm242, %v969
  %v974 = vld [vmem:[#allocation2] sm:$0x1f]
  %vm975 = vmand %vm94, %vm130
  %vm976 = vmand %vm95, %vm131
  %vm977 = vmand %vm96, %vm132
  %vm978 = vmand %vm97, %vm133
  %v980 = vlaneseq
  %v981 = vshrl.u32 %v980, 7
  %v982 = vsub.s32 0, %v981
  %v983 = vrot.slane %v974, %v982
  %v984 = vlaneseq
  %v985 = vshrl.u32 %v984, 7
  %v986 = vsub.s32 1, %v985
  %v987 = vrot.slane %v974, %v986
  %v988 = vlaneseq
  %v989 = vshrl.u32 %v988, 7
  %v990 = vsub.s32 2, %v989
  %v991 = vrot.slane %v974, %v990
  %v992 = vlaneseq
  %v993 = vshrl.u32 %v992, 7
  %v994 = vsub.s32 3, %v993
  %v995 = vrot.slane %v974, %v994
  %v996 = vlaneseq
  %v997 = vshrl.u32 %v996, 7
  %v998 = vsub.s32 4, %v997
  %v999 = vrot.slane %v974, %v998
  %1000 = vrot.lane.b32.xlu0 %v983, 96
  %v1001 = vpop.permute.xlu0 %1000
  %1002 = vrot.lane.b32.xlu0 %v987, 96
  %v1003 = vpop.permute.xlu0 %1002
  %1004 = vrot.lane.b32.xlu0 %v991, 96
  %v1005 = vpop.permute.xlu0 %1004
  %1006 = vrot.lane.b32.xlu0 %v995, 96
  %v1007 = vpop.permute.xlu0 %1006
  %1008 = vrot.lane.b32.xlu0 %v999, 96
  %v1009 = vpop.permute.xlu0 %1008
  %vm1010 = vcmask 785408
  %v1011 = vsel %vm1010, %v1001, %v1003
  %v1012 = vsel %vm1010, %v1003, %v1005
  %v1013 = vsel %vm1010, %v1005, %v1007
  %v1014 = vsel %vm1010, %v1007, %v1009
  %v1019 = vsel %vm975, %v1011, 0.0
  %v1020 = vsel %vm976, %v1012, 0.0
  %v1021 = vsel %vm977, %v1013, 0.0
  %v1022 = vsel %vm978, %v1014, 0.0
  %v1027 = vcombine.low %v1019, %v1020
  %v1028 = vcombine.low %v1021, %v1022
  %v1030 = vunpack.c.l.s4 1966171168
  %v1031 = vunpack.c.0.s8 %v1030
  %v1032 = vlaneseq
  %v1033 = vshrl.u32 %v1032, 7
  %v1034 = vsub.s32 %v1031, %v1033
  %v1035 = vrot.slane %v1027, %v1034
  %v1037 = vunpack.c.l.s4 1966171168
  %v1038 = vunpack.c.0.s8 %v1037
  %v1039 = vlaneseq
  %v1040 = vshrl.u32 %v1039, 7
  %v1041 = vsub.s32 %v1038, %v1040
  %v1042 = vrot.slane %v1028, %v1041
  %v1043 = vcombine.low %v1035, %v1042
  %v1045 = vunpack.c.l.s4 1966171168
  %v1046 = vunpack.c.0.s8 %v1045
  %v1047 = vlaneseq
  %v1048 = vshrl.u32 %v1047, 7
  %v1049 = vsub.s32 %v1046, %v1048
  %v1050 = vrot.slane %v1043, %v1049
  %s1052 = scalar_lea.vmem [#allocation4], 34
  %1053 = vst.msk [vmem:[%s1052] ss:$8 sm:$0xf] %vm242, %v1050
  %1054 = vst.msk [vmem:[%s1052] ss:$8 sm:$0x0] %vm242, %v1050
  %v1055 = vld [vmem:[#allocation2] sm:$0x1f]
  %vm1056 = vmand %vm94, %vm142
  %vm1057 = vmand %vm95, %vm143
  %vm1058 = vmand %vm96, %vm144
  %vm1059 = vmand %vm97, %vm145
  %v1061 = vlaneseq
  %v1062 = vshrl.u32 %v1061, 7
  %v1063 = vsub.s32 0, %v1062
  %v1064 = vrot.slane %v1055, %v1063
  %v1065 = vlaneseq
  %v1066 = vshrl.u32 %v1065, 7
  %v1067 = vsub.s32 1, %v1066
  %v1068 = vrot.slane %v1055, %v1067
  %v1069 = vlaneseq
  %v1070 = vshrl.u32 %v1069, 7
  %v1071 = vsub.s32 2, %v1070
  %v1072 = vrot.slane %v1055, %v1071
  %v1073 = vlaneseq
  %v1074 = vshrl.u32 %v1073, 7
  %v1075 = vsub.s32 3, %v1074
  %v1076 = vrot.slane %v1055, %v1075
  %v1077 = vlaneseq
  %v1078 = vshrl.u32 %v1077, 7
  %v1079 = vsub.s32 4, %v1078
  %v1080 = vrot.slane %v1055, %v1079
  %1081 = vrot.lane.b32.xlu0 %v1064, 95
  %v1082 = vpop.permute.xlu0 %1081
  %1083 = vrot.lane.b32.xlu0 %v1068, 95
  %v1084 = vpop.permute.xlu0 %1083
  %1085 = vrot.lane.b32.xlu0 %v1072, 95
  %v1086 = vpop.permute.xlu0 %1085
  %1087 = vrot.lane.b32.xlu0 %v1076, 95
  %v1088 = vpop.permute.xlu0 %1087
  %1089 = vrot.lane.b32.xlu0 %v1080, 95
  %v1090 = vpop.permute.xlu0 %1089
  %vm1091 = vcmask 777216
  %v1092 = vsel %vm1091, %v1082, %v1084
  %v1093 = vsel %vm1091, %v1084, %v1086
  %v1094 = vsel %vm1091, %v1086, %v1088
  %v1095 = vsel %vm1091, %v1088, %v1090
  %v1100 = vsel %vm1056, %v1092, 0.0
  %v1101 = vsel %vm1057, %v1093, 0.0
  %v1102 = vsel %vm1058, %v1094, 0.0
  %v1103 = vsel %vm1059, %v1095, 0.0
  %v1108 = vcombine.low %v1100, %v1101
  %v1109 = vcombine.low %v1102, %v1103
  %v1111 = vunpack.c.l.s4 1966171168
  %v1112 = vunpack.c.0.s8 %v1111
  %v1113 = vlaneseq
  %v1114 = vshrl.u32 %v1113, 7
  %v1115 = vsub.s32 %v1112, %v1114
  %v1116 = vrot.slane %v1108, %v1115
  %v1118 = vunpack.c.l.s4 1966171168
  %v1119 = vunpack.c.0.s8 %v1118
  %v1120 = vlaneseq
  %v1121 = vshrl.u32 %v1120, 7
  %v1122 = vsub.s32 %v1119, %v1121
  %v1123 = vrot.slane %v1109, %v1122
  %v1124 = vcombine.low %v1116, %v1123
  %v1126 = vunpack.c.l.s4 1966171168
  %v1127 = vunpack.c.0.s8 %v1126
  %v1128 = vlaneseq
  %v1129 = vshrl.u32 %v1128, 7
  %v1130 = vsub.s32 %v1127, %v1129
  %v1131 = vrot.slane %v1124, %v1130
  %s1133 = scalar_lea.vmem [#allocation4], 35
  %1134 = vst.msk [vmem:[%s1133] ss:$8 sm:$0xf] %vm242, %v1131
  %1135 = vst.msk [vmem:[%s1133] ss:$8 sm:$0x0] %vm242, %v1131
  %v1136 = vld [vmem:[#allocation2] sm:$0x1f]
  %vm1137 = vmand %vm94, %vm154
  %vm1138 = vmand %vm95, %vm155
  %vm1139 = vmand %vm96, %vm156
  %vm1140 = vmand %vm97, %vm157
  %v1142 = vlaneseq
  %v1143 = vshrl.u32 %v1142, 7
  %v1144 = vsub.s32 0, %v1143
  %v1145 = vrot.slane %v1136, %v1144
  %v1146 = vlaneseq
  %v1147 = vshrl.u32 %v1146, 7
  %v1148 = vsub.s32 1, %v1147
  %v1149 = vrot.slane %v1136, %v1148
  %v1150 = vlaneseq
  %v1151 = vshrl.u32 %v1150, 7
  %v1152 = vsub.s32 2, %v1151
  %v1153 = vrot.slane %v1136, %v1152
  %v1154 = vlaneseq
  %v1155 = vshrl.u32 %v1154, 7
  %v1156 = vsub.s32 3, %v1155
  %v1157 = vrot.slane %v1136, %v1156
  %v1158 = vlaneseq
  %v1159 = vshrl.u32 %v1158, 7
  %v1160 = vsub.s32 4, %v1159
  %v1161 = vrot.slane %v1136, %v1160
  %1162 = vrot.lane.b32.xlu0 %v1145, 94
  %v1163 = vpop.permute.xlu0 %1162
  %1164 = vrot.lane.b32.xlu0 %v1149, 94
  %v1165 = vpop.permute.xlu0 %1164
  %1166 = vrot.lane.b32.xlu0 %v1153, 94
  %v1167 = vpop.permute.xlu0 %1166
  %1168 = vrot.lane.b32.xlu0 %v1157, 94
  %v1169 = vpop.permute.xlu0 %1168
  %1170 = vrot.lane.b32.xlu0 %v1161, 94
  %v1171 = vpop.permute.xlu0 %1170
  %vm1172 = vcmask 769024
  %v1173 = vsel %vm1172, %v1163, %v1165
  %v1174 = vsel %vm1172, %v1165, %v1167
  %v1175 = vsel %vm1172, %v1167, %v1169
  %v1176 = vsel %vm1172, %v1169, %v1171
  %v1181 = vsel %vm1137, %v1173, 0.0
  %v1182 = vsel %vm1138, %v1174, 0.0
  %v1183 = vsel %vm1139, %v1175, 0.0
  %v1184 = vsel %vm1140, %v1176, 0.0
  %v1189 = vcombine.low %v1181, %v1182
  %v1190 = vcombine.low %v1183, %v1184
  %v1192 = vunpack.c.l.s4 1966171168
  %v1193 = vunpack.c.0.s8 %v1192
  %v1194 = vlaneseq
  %v1195 = vshrl.u32 %v1194, 7
  %v1196 = vsub.s32 %v1193, %v1195
  %v1197 = vrot.slane %v1189, %v1196
  %v1199 = vunpack.c.l.s4 1966171168
  %v1200 = vunpack.c.0.s8 %v1199
  %v1201 = vlaneseq
  %v1202 = vshrl.u32 %v1201, 7
  %v1203 = vsub.s32 %v1200, %v1202
  %v1204 = vrot.slane %v1190, %v1203
  %v1205 = vcombine.low %v1197, %v1204
  %v1207 = vunpack.c.l.s4 1966171168
  %v1208 = vunpack.c.0.s8 %v1207
  %v1209 = vlaneseq
  %v1210 = vshrl.u32 %v1209, 7
  %v1211 = vsub.s32 %v1208, %v1210
  %v1212 = vrot.slane %v1205, %v1211
  %s1214 = scalar_lea.vmem [#allocation4], 36
  %1215 = vst.msk [vmem:[%s1214] ss:$8 sm:$0xf] %vm242, %v1212
  %1216 = vst.msk [vmem:[%s1214] ss:$8 sm:$0x0] %vm242, %v1212
  %v1217 = vld [vmem:[#allocation2] sm:$0x1f]
  %vm1218 = vmand %vm94, %vm166
  %vm1219 = vmand %vm95, %vm167
  %vm1220 = vmand %vm96, %vm168
  %vm1221 = vmand %vm97, %vm169
  %v1223 = vlaneseq
  %v1224 = vshrl.u32 %v1223, 7
  %v1225 = vsub.s32 0, %v1224
  %v1226 = vrot.slane %v1217, %v1225
  %v1227 = vlaneseq
  %v1228 = vshrl.u32 %v1227, 7
  %v1229 = vsub.s32 1, %v1228
  %v1230 = vrot.slane %v1217, %v1229
  %v1231 = vlaneseq
  %v1232 = vshrl.u32 %v1231, 7
  %v1233 = vsub.s32 2, %v1232
  %v1234 = vrot.slane %v1217, %v1233
  %v1235 = vlaneseq
  %v1236 = vshrl.u32 %v1235, 7
  %v1237 = vsub.s32 3, %v1236
  %v1238 = vrot.slane %v1217, %v1237
  %v1239 = vlaneseq
  %v1240 = vshrl.u32 %v1239, 7
  %v1241 = vsub.s32 4, %v1240
  %v1242 = vrot.slane %v1217, %v1241
  %1243 = vrot.lane.b32.xlu0 %v1226, 93
  %v1244 = vpop.permute.xlu0 %1243
  %1245 = vrot.lane.b32.xlu0 %v1230, 93
  %v1246 = vpop.permute.xlu0 %1245
  %1247 = vrot.lane.b32.xlu0 %v1234, 93
  %v1248 = vpop.permute.xlu0 %1247
  %1249 = vrot.lane.b32.xlu0 %v1238, 93
  %v1250 = vpop.permute.xlu0 %1249
  %1251 = vrot.lane.b32.xlu0 %v1242, 93
  %v1252 = vpop.permute.xlu0 %1251
  %vm1253 = vcmask 760832
  %v1254 = vsel %vm1253, %v1244, %v1246
  %v1255 = vsel %vm1253, %v1246, %v1248
  %v1256 = vsel %vm1253, %v1248, %v1250
  %v1257 = vsel %vm1253, %v1250, %v1252
  %v1262 = vsel %vm1218, %v1254, 0.0
  %v1263 = vsel %vm1219, %v1255, 0.0
  %v1264 = vsel %vm1220, %v1256, 0.0
  %v1265 = vsel %vm1221, %v1257, 0.0
  %v1270 = vcombine.low %v1262, %v1263
  %v1271 = vcombine.low %v1264, %v1265
  %v1273 = vunpack.c.l.s4 1966171168
  %v1274 = vunpack.c.0.s8 %v1273
  %v1275 = vlaneseq
  %v1276 = vshrl.u32 %v1275, 7
  %v1277 = vsub.s32 %v1274, %v1276
  %v1278 = vrot.slane %v1270, %v1277
  %v1280 = vunpack.c.l.s4 1966171168
  %v1281 = vunpack.c.0.s8 %v1280
  %v1282 = vlaneseq
  %v1283 = vshrl.u32 %v1282, 7
  %v1284 = vsub.s32 %v1281, %v1283
  %v1285 = vrot.slane %v1271, %v1284
  %v1286 = vcombine.low %v1278, %v1285
  %v1288 = vunpack.c.l.s4 1966171168
  %v1289 = vunpack.c.0.s8 %v1288
  %v1290 = vlaneseq
  %v1291 = vshrl.u32 %v1290, 7
  %v1292 = vsub.s32 %v1289, %v1291
  %v1293 = vrot.slane %v1286, %v1292
  %s1295 = scalar_lea.vmem [#allocation4], 37
  %1296 = vst.msk [vmem:[%s1295] ss:$8 sm:$0xf] %vm242, %v1293
  %1297 = vst.msk [vmem:[%s1295] ss:$8 sm:$0x0] %vm242, %v1293
  %v1298 = vld [vmem:[#allocation2] sm:$0x1f]
  %vm1299 = vmand %vm94, %vm178
  %vm1300 = vmand %vm95, %vm179
  %vm1301 = vmand %vm96, %vm180
  %vm1302 = vmand %vm97, %vm181
  %v1304 = vlaneseq
  %v1305 = vshrl.u32 %v1304, 7
  %v1306 = vsub.s32 0, %v1305
  %v1307 = vrot.slane %v1298, %v1306
  %v1308 = vlaneseq
  %v1309 = vshrl.u32 %v1308, 7
  %v1310 = vsub.s32 1, %v1309
  %v1311 = vrot.slane %v1298, %v1310
  %v1312 = vlaneseq
  %v1313 = vshrl.u32 %v1312, 7
  %v1314 = vsub.s32 2, %v1313
  %v1315 = vrot.slane %v1298, %v1314
  %v1316 = vlaneseq
  %v1317 = vshrl.u32 %v1316, 7
  %v1318 = vsub.s32 3, %v1317
  %v1319 = vrot.slane %v1298, %v1318
  %v1320 = vlaneseq
  %v1321 = vshrl.u32 %v1320, 7
  %v1322 = vsub.s32 4, %v1321
  %v1323 = vrot.slane %v1298, %v1322
  %1324 = vrot.lane.b32.xlu0 %v1307, 92
  %v1325 = vpop.permute.xlu0 %1324
  %1326 = vrot.lane.b32.xlu0 %v1311, 92
  %v1327 = vpop.permute.xlu0 %1326
  %1328 = vrot.lane.b32.xlu0 %v1315, 92
  %v1329 = vpop.permute.xlu0 %1328
  %1330 = vrot.lane.b32.xlu0 %v1319, 92
  %v1331 = vpop.permute.xlu0 %1330
  %1332 = vrot.lane.b32.xlu0 %v1323, 92
  %v1333 = vpop.permute.xlu0 %1332
  %vm1334 = vcmask 752640
  %v1335 = vsel %vm1334, %v1325, %v1327
  %v1336 = vsel %vm1334, %v1327, %v1329
  %v1337 = vsel %vm1334, %v1329, %v1331
  %v1338 = vsel %vm1334, %v1331, %v1333
  %v1343 = vsel %vm1299, %v1335, 0.0
  %v1344 = vsel %vm1300, %v1336, 0.0
  %v1345 = vsel %vm1301, %v1337, 0.0
  %v1346 = vsel %vm1302, %v1338, 0.0
  %v1351 = vcombine.low %v1343, %v1344
  %v1352 = vcombine.low %v1345, %v1346
  %v1354 = vunpack.c.l.s4 1966171168
  %v1355 = vunpack.c.0.s8 %v1354
  %v1356 = vlaneseq
  %v1357 = vshrl.u32 %v1356, 7
  %v1358 = vsub.s32 %v1355, %v1357
  %v1359 = vrot.slane %v1351, %v1358
  %v1361 = vunpack.c.l.s4 1966171168
  %v1362 = vunpack.c.0.s8 %v1361
  %v1363 = vlaneseq
  %v1364 = vshrl.u32 %v1363, 7
  %v1365 = vsub.s32 %v1362, %v1364
  %v1366 = vrot.slane %v1352, %v1365
  %v1367 = vcombine.low %v1359, %v1366
  %v1369 = vunpack.c.l.s4 1966171168
  %v1370 = vunpack.c.0.s8 %v1369
  %v1371 = vlaneseq
  %v1372 = vshrl.u32 %v1371, 7
  %v1373 = vsub.s32 %v1370, %v1372
  %v1374 = vrot.slane %v1367, %v1373
  %s1376 = scalar_lea.vmem [#allocation4], 38
  %1377 = vst.msk [vmem:[%s1376] ss:$8 sm:$0xf] %vm242, %v1374
  %1378 = vst.msk [vmem:[%s1376] ss:$8 sm:$0x0] %vm242, %v1374
  %v1379 = vld [vmem:[#allocation2] sm:$0x1f]
  %vm1380 = vmand %vm106, %vm130
  %vm1381 = vmand %vm107, %vm131
  %vm1382 = vmand %vm108, %vm132
  %vm1383 = vmand %vm109, %vm133
  %v1385 = vlaneseq
  %v1386 = vshrl.u32 %v1385, 7
  %v1387 = vsub.s32 0, %v1386
  %v1388 = vrot.slane %v1379, %v1387
  %v1389 = vlaneseq
  %v1390 = vshrl.u32 %v1389, 7
  %v1391 = vsub.s32 1, %v1390
  %v1392 = vrot.slane %v1379, %v1391
  %v1393 = vlaneseq
  %v1394 = vshrl.u32 %v1393, 7
  %v1395 = vsub.s32 2, %v1394
  %v1396 = vrot.slane %v1379, %v1395
  %v1397 = vlaneseq
  %v1398 = vshrl.u32 %v1397, 7
  %v1399 = vsub.s32 3, %v1398
  %v1400 = vrot.slane %v1379, %v1399
  %v1401 = vlaneseq
  %v1402 = vshrl.u32 %v1401, 7
  %v1403 = vsub.s32 4, %v1402
  %v1404 = vrot.slane %v1379, %v1403
  %1405 = vrot.lane.b32.xlu0 %v1388, 80
  %v1406 = vpop.permute.xlu0 %1405
  %1407 = vrot.lane.b32.xlu0 %v1392, 80
  %v1408 = vpop.permute.xlu0 %1407
  %1409 = vrot.lane.b32.xlu0 %v1396, 80
  %v1410 = vpop.permute.xlu0 %1409
  %1411 = vrot.lane.b32.xlu0 %v1400, 80
  %v1412 = vpop.permute.xlu0 %1411
  %1413 = vrot.lane.b32.xlu0 %v1404, 80
  %v1414 = vpop.permute.xlu0 %1413
  %vm1415 = vcmask 654336
  %v1416 = vsel %vm1415, %v1406, %v1408
  %v1417 = vsel %vm1415, %v1408, %v1410
  %v1418 = vsel %vm1415, %v1410, %v1412
  %v1419 = vsel %vm1415, %v1412, %v1414
  %v1424 = vsel %vm1380, %v1416, 0.0
  %v1425 = vsel %vm1381, %v1417, 0.0
  %v1426 = vsel %vm1382, %v1418, 0.0
  %v1427 = vsel %vm1383, %v1419, 0.0
  %v1432 = vcombine.low %v1424, %v1425
  %v1433 = vcombine.low %v1426, %v1427
  %v1435 = vunpack.c.l.s4 1966171168
  %v1436 = vunpack.c.0.s8 %v1435
  %v1437 = vlaneseq
  %v1438 = vshrl.u32 %v1437, 7
  %v1439 = vsub.s32 %v1436, %v1438
  %v1440 = vrot.slane %v1432, %v1439
  %v1442 = vunpack.c.l.s4 1966171168
  %v1443 = vunpack.c.0.s8 %v1442
  %v1444 = vlaneseq
  %v1445 = vshrl.u32 %v1444, 7
  %v1446 = vsub.s32 %v1443, %v1445
  %v1447 = vrot.slane %v1433, %v1446
  %v1448 = vcombine.low %v1440, %v1447
  %v1450 = vunpack.c.l.s4 1966171168
  %v1451 = vunpack.c.0.s8 %v1450
  %v1452 = vlaneseq
  %v1453 = vshrl.u32 %v1452, 7
  %v1454 = vsub.s32 %v1451, %v1453
  %v1455 = vrot.slane %v1448, %v1454
  %s1457 = scalar_lea.vmem [#allocation4], 39
  %1458 = vst.msk [vmem:[%s1457] ss:$8 sm:$0xf] %vm242, %v1455
  %1459 = vst.msk [vmem:[%s1457] ss:$8 sm:$0x0] %vm242, %v1455
  %v1460 = vld [vmem:[#allocation2] sm:$0x1f]
  %vm1461 = vmand %vm106, %vm142
  %vm1462 = vmand %vm107, %vm143
  %vm1463 = vmand %vm108, %vm144
  %vm1464 = vmand %vm109, %vm145
  %v1466 = vlaneseq
  %v1467 = vshrl.u32 %v1466, 7
  %v1468 = vsub.s32 0, %v1467
  %v1469 = vrot.slane %v1460, %v1468
  %v1470 = vlaneseq
  %v1471 = vshrl.u32 %v1470, 7
  %v1472 = vsub.s32 1, %v1471
  %v1473 = vrot.slane %v1460, %v1472
  %v1474 = vlaneseq
  %v1475 = vshrl.u32 %v1474, 7
  %v1476 = vsub.s32 2, %v1475
  %v1477 = vrot.slane %v1460, %v1476
  %v1478 = vlaneseq
  %v1479 = vshrl.u32 %v1478, 7
  %v1480 = vsub.s32 3, %v1479
  %v1481 = vrot.slane %v1460, %v1480
  %v1482 = vlaneseq
  %v1483 = vshrl.u32 %v1482, 7
  %v1484 = vsub.s32 4, %v1483
  %v1485 = vrot.slane %v1460, %v1484
  %1486 = vrot.lane.b32.xlu0 %v1469, 79
  %v1487 = vpop.permute.xlu0 %1486
  %1488 = vrot.lane.b32.xlu0 %v1473, 79
  %v1489 = vpop.permute.xlu0 %1488
  %1490 = vrot.lane.b32.xlu0 %v1477, 79
  %v1491 = vpop.permute.xlu0 %1490
  %1492 = vrot.lane.b32.xlu0 %v1481, 79
  %v1493 = vpop.permute.xlu0 %1492
  %1494 = vrot.lane.b32.xlu0 %v1485, 79
  %v1495 = vpop.permute.xlu0 %1494
  %vm1496 = vcmask 646144
  %v1497 = vsel %vm1496, %v1487, %v1489
  %v1498 = vsel %vm1496, %v1489, %v1491
  %v1499 = vsel %vm1496, %v1491, %v1493
  %v1500 = vsel %vm1496, %v1493, %v1495
  %v1505 = vsel %vm1461, %v1497, 0.0
  %v1506 = vsel %vm1462, %v1498, 0.0
  %v1507 = vsel %vm1463, %v1499, 0.0
  %v1508 = vsel %vm1464, %v1500, 0.0
  %v1513 = vcombine.low %v1505, %v1506
  %v1514 = vcombine.low %v1507, %v1508
  %v1516 = vunpack.c.l.s4 1966171168
  %v1517 = vunpack.c.0.s8 %v1516
  %v1518 = vlaneseq
  %v1519 = vshrl.u32 %v1518, 7
  %v1520 = vsub.s32 %v1517, %v1519
  %v1521 = vrot.slane %v1513, %v1520
  %v1523 = vunpack.c.l.s4 1966171168
  %v1524 = vunpack.c.0.s8 %v1523
  %v1525 = vlaneseq
  %v1526 = vshrl.u32 %v1525, 7
  %v1527 = vsub.s32 %v1524, %v1526
  %v1528 = vrot.slane %v1514, %v1527
  %v1529 = vcombine.low %v1521, %v1528
  %v1531 = vunpack.c.l.s4 1966171168
  %v1532 = vunpack.c.0.s8 %v1531
  %v1533 = vlaneseq
  %v1534 = vshrl.u32 %v1533, 7
  %v1535 = vsub.s32 %v1532, %v1534
  %v1536 = vrot.slane %v1529, %v1535
  %s1538 = scalar_lea.vmem [#allocation4], 64
  %1539 = vst.msk [vmem:[%s1538] ss:$8 sm:$0xf] %vm242, %v1536
  %1540 = vst.msk [vmem:[%s1538] ss:$8 sm:$0x0] %vm242, %v1536
  %v1541 = vld [vmem:[#allocation2] sm:$0x1f]
  %vm1542 = vmand %vm106, %vm154
  %vm1543 = vmand %vm107, %vm155
  %vm1544 = vmand %vm108, %vm156
  %vm1545 = vmand %vm109, %vm157
  %v1547 = vlaneseq
  %v1548 = vshrl.u32 %v1547, 7
  %v1549 = vsub.s32 0, %v1548
  %v1550 = vrot.slane %v1541, %v1549
  %v1551 = vlaneseq
  %v1552 = vshrl.u32 %v1551, 7
  %v1553 = vsub.s32 1, %v1552
  %v1554 = vrot.slane %v1541, %v1553
  %v1555 = vlaneseq
  %v1556 = vshrl.u32 %v1555, 7
  %v1557 = vsub.s32 2, %v1556
  %v1558 = vrot.slane %v1541, %v1557
  %v1559 = vlaneseq
  %v1560 = vshrl.u32 %v1559, 7
  %v1561 = vsub.s32 3, %v1560
  %v1562 = vrot.slane %v1541, %v1561
  %v1563 = vlaneseq
  %v1564 = vshrl.u32 %v1563, 7
  %v1565 = vsub.s32 4, %v1564
  %v1566 = vrot.slane %v1541, %v1565
  %1567 = vrot.lane.b32.xlu0 %v1550, 78
  %v1568 = vpop.permute.xlu0 %1567
  %1569 = vrot.lane.b32.xlu0 %v1554, 78
  %v1570 = vpop.permute.xlu0 %1569
  %1571 = vrot.lane.b32.xlu0 %v1558, 78
  %v1572 = vpop.permute.xlu0 %1571
  %1573 = vrot.lane.b32.xlu0 %v1562, 78
  %v1574 = vpop.permute.xlu0 %1573
  %1575 = vrot.lane.b32.xlu0 %v1566, 78
  %v1576 = vpop.permute.xlu0 %1575
  %vm1577 = vcmask 637952
  %v1578 = vsel %vm1577, %v1568, %v1570
  %v1579 = vsel %vm1577, %v1570, %v1572
  %v1580 = vsel %vm1577, %v1572, %v1574
  %v1581 = vsel %vm1577, %v1574, %v1576
  %v1586 = vsel %vm1542, %v1578, 0.0
  %v1587 = vsel %vm1543, %v1579, 0.0
  %v1588 = vsel %vm1544, %v1580, 0.0
  %v1589 = vsel %vm1545, %v1581, 0.0
  %v1594 = vcombine.low %v1586, %v1587
  %v1595 = vcombine.low %v1588, %v1589
  %v1597 = vunpack.c.l.s4 1966171168
  %v1598 = vunpack.c.0.s8 %v1597
  %v1599 = vlaneseq
  %v1600 = vshrl.u32 %v1599, 7
  %v1601 = vsub.s32 %v1598, %v1600
  %v1602 = vrot.slane %v1594, %v1601
  %v1604 = vunpack.c.l.s4 1966171168
  %v1605 = vunpack.c.0.s8 %v1604
  %v1606 = vlaneseq
  %v1607 = vshrl.u32 %v1606, 7
  %v1608 = vsub.s32 %v1605, %v1607
  %v1609 = vrot.slane %v1595, %v1608
  %v1610 = vcombine.low %v1602, %v1609
  %v1612 = vunpack.c.l.s4 1966171168
  %v1613 = vunpack.c.0.s8 %v1612
  %v1614 = vlaneseq
  %v1615 = vshrl.u32 %v1614, 7
  %v1616 = vsub.s32 %v1613, %v1615
  %v1617 = vrot.slane %v1610, %v1616
  %s1619 = scalar_lea.vmem [#allocation4], 65
  %1620 = vst.msk [vmem:[%s1619] ss:$8 sm:$0xf] %vm242, %v1617
  %1621 = vst.msk [vmem:[%s1619] ss:$8 sm:$0x0] %vm242, %v1617
  %v1622 = vld [vmem:[#allocation2] sm:$0x1f]
  %vm1623 = vmand %vm106, %vm166
  %vm1624 = vmand %vm107, %vm167
  %vm1625 = vmand %vm108, %vm168
  %vm1626 = vmand %vm109, %vm169
  %v1628 = vlaneseq
  %v1629 = vshrl.u32 %v1628, 7
  %v1630 = vsub.s32 0, %v1629
  %v1631 = vrot.slane %v1622, %v1630
  %v1632 = vlaneseq
  %v1633 = vshrl.u32 %v1632, 7
  %v1634 = vsub.s32 1, %v1633
  %v1635 = vrot.slane %v1622, %v1634
  %v1636 = vlaneseq
  %v1637 = vshrl.u32 %v1636, 7
  %v1638 = vsub.s32 2, %v1637
  %v1639 = vrot.slane %v1622, %v1638
  %v1640 = vlaneseq
  %v1641 = vshrl.u32 %v1640, 7
  %v1642 = vsub.s32 3, %v1641
  %v1643 = vrot.slane %v1622, %v1642
  %v1644 = vlaneseq
  %v1645 = vshrl.u32 %v1644, 7
  %v1646 = vsub.s32 4, %v1645
  %v1647 = vrot.slane %v1622, %v1646
  %1648 = vrot.lane.b32.xlu0 %v1631, 77
  %v1649 = vpop.permute.xlu0 %1648
  %1650 = vrot.lane.b32.xlu0 %v1635, 77
  %v1651 = vpop.permute.xlu0 %1650
  %1652 = vrot.lane.b32.xlu0 %v1639, 77
  %v1653 = vpop.permute.xlu0 %1652
  %1654 = vrot.lane.b32.xlu0 %v1643, 77
  %v1655 = vpop.permute.xlu0 %1654
  %1656 = vrot.lane.b32.xlu0 %v1647, 77
  %v1657 = vpop.permute.xlu0 %1656
  %vm1658 = vcmask 629760
  %v1659 = vsel %vm1658, %v1649, %v1651
  %v1660 = vsel %vm1658, %v1651, %v1653
  %v1661 = vsel %vm1658, %v1653, %v1655
  %v1662 = vsel %vm1658, %v1655, %v1657
  %v1667 = vsel %vm1623, %v1659, 0.0
  %v1668 = vsel %vm1624, %v1660, 0.0
  %v1669 = vsel %vm1625, %v1661, 0.0
  %v1670 = vsel %vm1626, %v1662, 0.0
  %v1675 = vcombine.low %v1667, %v1668
  %v1676 = vcombine.low %v1669, %v1670
  %v1678 = vunpack.c.l.s4 1966171168
  %v1679 = vunpack.c.0.s8 %v1678
  %v1680 = vlaneseq
  %v1681 = vshrl.u32 %v1680, 7
  %v1682 = vsub.s32 %v1679, %v1681
  %v1683 = vrot.slane %v1675, %v1682
  %v1685 = vunpack.c.l.s4 1966171168
  %v1686 = vunpack.c.0.s8 %v1685
  %v1687 = vlaneseq
  %v1688 = vshrl.u32 %v1687, 7
  %v1689 = vsub.s32 %v1686, %v1688
  %v1690 = vrot.slane %v1676, %v1689
  %v1691 = vcombine.low %v1683, %v1690
  %v1693 = vunpack.c.l.s4 1966171168
  %v1694 = vunpack.c.0.s8 %v1693
  %v1695 = vlaneseq
  %v1696 = vshrl.u32 %v1695, 7
  %v1697 = vsub.s32 %v1694, %v1696
  %v1698 = vrot.slane %v1691, %v1697
  %s1700 = scalar_lea.vmem [#allocation4], 66
  %1701 = vst.msk [vmem:[%s1700] ss:$8 sm:$0xf] %vm242, %v1698
  %1702 = vst.msk [vmem:[%s1700] ss:$8 sm:$0x0] %vm242, %v1698
  %v1703 = vld [vmem:[#allocation2] sm:$0x1f]
  %vm1704 = vmand %vm106, %vm178
  %vm1705 = vmand %vm107, %vm179
  %vm1706 = vmand %vm108, %vm180
  %vm1707 = vmand %vm109, %vm181
  %v1709 = vlaneseq
  %v1710 = vshrl.u32 %v1709, 7
  %v1711 = vsub.s32 0, %v1710
  %v1712 = vrot.slane %v1703, %v1711
  %v1713 = vlaneseq
  %v1714 = vshrl.u32 %v1713, 7
  %v1715 = vsub.s32 1, %v1714
  %v1716 = vrot.slane %v1703, %v1715
  %v1717 = vlaneseq
  %v1718 = vshrl.u32 %v1717, 7
  %v1719 = vsub.s32 2, %v1718
  %v1720 = vrot.slane %v1703, %v1719
  %v1721 = vlaneseq
  %v1722 = vshrl.u32 %v1721, 7
  %v1723 = vsub.s32 3, %v1722
  %v1724 = vrot.slane %v1703, %v1723
  %v1725 = vlaneseq
  %v1726 = vshrl.u32 %v1725, 7
  %v1727 = vsub.s32 4, %v1726
  %v1728 = vrot.slane %v1703, %v1727
  %1729 = vrot.lane.b32.xlu0 %v1712, 76
  %v1730 = vpop.permute.xlu0 %1729
  %1731 = vrot.lane.b32.xlu0 %v1716, 76
  %v1732 = vpop.permute.xlu0 %1731
  %1733 = vrot.lane.b32.xlu0 %v1720, 76
  %v1734 = vpop.permute.xlu0 %1733
  %1735 = vrot.lane.b32.xlu0 %v1724, 76
  %v1736 = vpop.permute.xlu0 %1735
  %1737 = vrot.lane.b32.xlu0 %v1728, 76
  %v1738 = vpop.permute.xlu0 %1737
  %vm1739 = vcmask 621568
  %v1740 = vsel %vm1739, %v1730, %v1732
  %v1741 = vsel %vm1739, %v1732, %v1734
  %v1742 = vsel %vm1739, %v1734, %v1736
  %v1743 = vsel %vm1739, %v1736, %v1738
  %v1748 = vsel %vm1704, %v1740, 0.0
  %v1749 = vsel %vm1705, %v1741, 0.0
  %v1750 = vsel %vm1706, %v1742, 0.0
  %v1751 = vsel %vm1707, %v1743, 0.0
  %v1756 = vcombine.low %v1748, %v1749
  %v1757 = vcombine.low %v1750, %v1751
  %v1759 = vunpack.c.l.s4 1966171168
  %v1760 = vunpack.c.0.s8 %v1759
  %v1761 = vlaneseq
  %v1762 = vshrl.u32 %v1761, 7
  %v1763 = vsub.s32 %v1760, %v1762
  %v1764 = vrot.slane %v1756, %v1763
  %v1766 = vunpack.c.l.s4 1966171168
  %v1767 = vunpack.c.0.s8 %v1766
  %v1768 = vlaneseq
  %v1769 = vshrl.u32 %v1768, 7
  %v1770 = vsub.s32 %v1767, %v1769
  %v1771 = vrot.slane %v1757, %v1770
  %v1772 = vcombine.low %v1764, %v1771
  %v1774 = vunpack.c.l.s4 1966171168
  %v1775 = vunpack.c.0.s8 %v1774
  %v1776 = vlaneseq
  %v1777 = vshrl.u32 %v1776, 7
  %v1778 = vsub.s32 %v1775, %v1777
  %v1779 = vrot.slane %v1772, %v1778
  %s1781 = scalar_lea.vmem [#allocation4], 67
  %1782 = vst.msk [vmem:[%s1781] ss:$8 sm:$0xf] %vm242, %v1779
  %1783 = vst.msk [vmem:[%s1781] ss:$8 sm:$0x0] %vm242, %v1779
  %v1784 = vld [vmem:[#allocation2] sm:$0x1f]
  %vm1785 = vmand %vm118, %vm130
  %vm1786 = vmand %vm119, %vm131
  %vm1787 = vmand %vm120, %vm132
  %vm1788 = vmand %vm121, %vm133
  %v1790 = vlaneseq
  %v1791 = vshrl.u32 %v1790, 7
  %v1792 = vsub.s32 0, %v1791
  %v1793 = vrot.slane %v1784, %v1792
  %v1794 = vlaneseq
  %v1795 = vshrl.u32 %v1794, 7
  %v1796 = vsub.s32 1, %v1795
  %v1797 = vrot.slane %v1784, %v1796
  %v1798 = vlaneseq
  %v1799 = vshrl.u32 %v1798, 7
  %v1800 = vsub.s32 2, %v1799
  %v1801 = vrot.slane %v1784, %v1800
  %v1802 = vlaneseq
  %v1803 = vshrl.u32 %v1802, 7
  %v1804 = vsub.s32 3, %v1803
  %v1805 = vrot.slane %v1784, %v1804
  %v1806 = vlaneseq
  %v1807 = vshrl.u32 %v1806, 7
  %v1808 = vsub.s32 4, %v1807
  %v1809 = vrot.slane %v1784, %v1808
  %1810 = vrot.lane.b32.xlu0 %v1793, 64
  %v1811 = vpop.permute.xlu0 %1810
  %1812 = vrot.lane.b32.xlu0 %v1797, 64
  %v1813 = vpop.permute.xlu0 %1812
  %1814 = vrot.lane.b32.xlu0 %v1801, 64
  %v1815 = vpop.permute.xlu0 %1814
  %1816 = vrot.lane.b32.xlu0 %v1805, 64
  %v1817 = vpop.permute.xlu0 %1816
  %1818 = vrot.lane.b32.xlu0 %v1809, 64
  %v1819 = vpop.permute.xlu0 %1818
  %vm1820 = vcmask 523264
  %v1821 = vsel %vm1820, %v1811, %v1813
  %v1822 = vsel %vm1820, %v1813, %v1815
  %v1823 = vsel %vm1820, %v1815, %v1817
  %v1824 = vsel %vm1820, %v1817, %v1819
  %v1829 = vsel %vm1785, %v1821, 0.0
  %v1830 = vsel %vm1786, %v1822, 0.0
  %v1831 = vsel %vm1787, %v1823, 0.0
  %v1832 = vsel %vm1788, %v1824, 0.0
  %v1837 = vcombine.low %v1829, %v1830
  %v1838 = vcombine.low %v1831, %v1832
  %v1840 = vunpack.c.l.s4 1966171168
  %v1841 = vunpack.c.0.s8 %v1840
  %v1842 = vlaneseq
  %v1843 = vshrl.u32 %v1842, 7
  %v1844 = vsub.s32 %v1841, %v1843
  %v1845 = vrot.slane %v1837, %v1844
  %v1847 = vunpack.c.l.s4 1966171168
  %v1848 = vunpack.c.0.s8 %v1847
  %v1849 = vlaneseq
  %v1850 = vshrl.u32 %v1849, 7
  %v1851 = vsub.s32 %v1848, %v1850
  %v1852 = vrot.slane %v1838, %v1851
  %v1853 = vcombine.low %v1845, %v1852
  %v1855 = vunpack.c.l.s4 1966171168
  %v1856 = vunpack.c.0.s8 %v1855
  %v1857 = vlaneseq
  %v1858 = vshrl.u32 %v1857, 7
  %v1859 = vsub.s32 %v1856, %v1858
  %v1860 = vrot.slane %v1853, %v1859
  %s1862 = scalar_lea.vmem [#allocation4], 68
  %1863 = vst.msk [vmem:[%s1862] ss:$8 sm:$0xf] %vm242, %v1860
  %1864 = vst.msk [vmem:[%s1862] ss:$8 sm:$0x0] %vm242, %v1860
  %v1865 = vld [vmem:[#allocation2] sm:$0x1f]
  %vm1866 = vmand %vm118, %vm142
  %vm1867 = vmand %vm119, %vm143
  %vm1868 = vmand %vm120, %vm144
  %vm1869 = vmand %vm121, %vm145
  %v1871 = vlaneseq
  %v1872 = vshrl.u32 %v1871, 7
  %v1873 = vsub.s32 0, %v1872
  %v1874 = vrot.slane %v1865, %v1873
  %v1875 = vlaneseq
  %v1876 = vshrl.u32 %v1875, 7
  %v1877 = vsub.s32 1, %v1876
  %v1878 = vrot.slane %v1865, %v1877
  %v1879 = vlaneseq
  %v1880 = vshrl.u32 %v1879, 7
  %v1881 = vsub.s32 2, %v1880
  %v1882 = vrot.slane %v1865, %v1881
  %v1883 = vlaneseq
  %v1884 = vshrl.u32 %v1883, 7
  %v1885 = vsub.s32 3, %v1884
  %v1886 = vrot.slane %v1865, %v1885
  %v1887 = vlaneseq
  %v1888 = vshrl.u32 %v1887, 7
  %v1889 = vsub.s32 4, %v1888
  %v1890 = vrot.slane %v1865, %v1889
  %1891 = vrot.lane.b32.xlu0 %v1874, 63
  %v1892 = vpop.permute.xlu0 %1891
  %1893 = vrot.lane.b32.xlu0 %v1878, 63
  %v1894 = vpop.permute.xlu0 %1893
  %1895 = vrot.lane.b32.xlu0 %v1882, 63
  %v1896 = vpop.permute.xlu0 %1895
  %1897 = vrot.lane.b32.xlu0 %v1886, 63
  %v1898 = vpop.permute.xlu0 %1897
  %1899 = vrot.lane.b32.xlu0 %v1890, 63
  %v1900 = vpop.permute.xlu0 %1899
  %vm1901 = vcmask 515072
  %v1902 = vsel %vm1901, %v1892, %v1894
  %v1903 = vsel %vm1901, %v1894, %v1896
  %v1904 = vsel %vm1901, %v1896, %v1898
  %v1905 = vsel %vm1901, %v1898, %v1900
  %v1910 = vsel %vm1866, %v1902, 0.0
  %v1911 = vsel %vm1867, %v1903, 0.0
  %v1912 = vsel %vm1868, %v1904, 0.0
  %v1913 = vsel %vm1869, %v1905, 0.0
  %v1918 = vcombine.low %v1910, %v1911
  %v1919 = vcombine.low %v1912, %v1913
  %v1921 = vunpack.c.l.s4 1966171168
  %v1922 = vunpack.c.0.s8 %v1921
  %v1923 = vlaneseq
  %v1924 = vshrl.u32 %v1923, 7
  %v1925 = vsub.s32 %v1922, %v1924
  %v1926 = vrot.slane %v1918, %v1925
  %v1928 = vunpack.c.l.s4 1966171168
  %v1929 = vunpack.c.0.s8 %v1928
  %v1930 = vlaneseq
  %v1931 = vshrl.u32 %v1930, 7
  %v1932 = vsub.s32 %v1929, %v1931
  %v1933 = vrot.slane %v1919, %v1932
  %v1934 = vcombine.low %v1926, %v1933
  %v1936 = vunpack.c.l.s4 1966171168
  %v1937 = vunpack.c.0.s8 %v1936
  %v1938 = vlaneseq
  %v1939 = vshrl.u32 %v1938, 7
  %v1940 = vsub.s32 %v1937, %v1939
  %v1941 = vrot.slane %v1934, %v1940
  %s1943 = scalar_lea.vmem [#allocation4], 69
  %1944 = vst.msk [vmem:[%s1943] ss:$8 sm:$0xf] %vm242, %v1941
  %1945 = vst.msk [vmem:[%s1943] ss:$8 sm:$0x0] %vm242, %v1941
  %v1946 = vld [vmem:[#allocation2] sm:$0x1f]
  %vm1947 = vmand %vm118, %vm154
  %vm1948 = vmand %vm119, %vm155
  %vm1949 = vmand %vm120, %vm156
  %vm1950 = vmand %vm121, %vm157
  %v1952 = vlaneseq
  %v1953 = vshrl.u32 %v1952, 7
  %v1954 = vsub.s32 0, %v1953
  %v1955 = vrot.slane %v1946, %v1954
  %v1956 = vlaneseq
  %v1957 = vshrl.u32 %v1956, 7
  %v1958 = vsub.s32 1, %v1957
  %v1959 = vrot.slane %v1946, %v1958
  %v1960 = vlaneseq
  %v1961 = vshrl.u32 %v1960, 7
  %v1962 = vsub.s32 2, %v1961
  %v1963 = vrot.slane %v1946, %v1962
  %v1964 = vlaneseq
  %v1965 = vshrl.u32 %v1964, 7
  %v1966 = vsub.s32 3, %v1965
  %v1967 = vrot.slane %v1946, %v1966
  %v1968 = vlaneseq
  %v1969 = vshrl.u32 %v1968, 7
  %v1970 = vsub.s32 4, %v1969
  %v1971 = vrot.slane %v1946, %v1970
  %1972 = vrot.lane.b32.xlu0 %v1955, 62
  %v1973 = vpop.permute.xlu0 %1972
  %1974 = vrot.lane.b32.xlu0 %v1959, 62
  %v1975 = vpop.permute.xlu0 %1974
  %1976 = vrot.lane.b32.xlu0 %v1963, 62
  %v1977 = vpop.permute.xlu0 %1976
  %1978 = vrot.lane.b32.xlu0 %v1967, 62
  %v1979 = vpop.permute.xlu0 %1978
  %1980 = vrot.lane.b32.xlu0 %v1971, 62
  %v1981 = vpop.permute.xlu0 %1980
  %vm1982 = vcmask 506880
  %v1983 = vsel %vm1982, %v1973, %v1975
  %v1984 = vsel %vm1982, %v1975, %v1977
  %v1985 = vsel %vm1982, %v1977, %v1979
  %v1986 = vsel %vm1982, %v1979, %v1981
  %v1991 = vsel %vm1947, %v1983, 0.0
  %v1992 = vsel %vm1948, %v1984, 0.0
  %v1993 = vsel %vm1949, %v1985, 0.0
  %v1994 = vsel %vm1950, %v1986, 0.0
  %v1999 = vcombine.low %v1991, %v1992
  %v2000 = vcombine.low %v1993, %v1994
  %v2002 = vunpack.c.l.s4 1966171168
  %v2003 = vunpack.c.0.s8 %v2002
  %v2004 = vlaneseq
  %v2005 = vshrl.u32 %v2004, 7
  %v2006 = vsub.s32 %v2003, %v2005
  %v2007 = vrot.slane %v1999, %v2006
  %v2009 = vunpack.c.l.s4 1966171168
  %v2010 = vunpack.c.0.s8 %v2009
  %v2011 = vlaneseq
  %v2012 = vshrl.u32 %v2011, 7
  %v2013 = vsub.s32 %v2010, %v2012
  %v2014 = vrot.slane %v2000, %v2013
  %v2015 = vcombine.low %v2007, %v2014
  %v2017 = vunpack.c.l.s4 1966171168
  %v2018 = vunpack.c.0.s8 %v2017
  %v2019 = vlaneseq
  %v2020 = vshrl.u32 %v2019, 7
  %v2021 = vsub.s32 %v2018, %v2020
  %v2022 = vrot.slane %v2015, %v2021
  %s2024 = scalar_lea.vmem [#allocation4], 70
  %2025 = vst.msk [vmem:[%s2024] ss:$8 sm:$0xf] %vm242, %v2022
  %2026 = vst.msk [vmem:[%s2024] ss:$8 sm:$0x0] %vm242, %v2022
  %v2027 = vld [vmem:[#allocation2] sm:$0x1f]
  %vm2028 = vmand %vm118, %vm166
  %vm2029 = vmand %vm119, %vm167
  %vm2030 = vmand %vm120, %vm168
  %vm2031 = vmand %vm121, %vm169
  %v2033 = vlaneseq
  %v2034 = vshrl.u32 %v2033, 7
  %v2035 = vsub.s32 0, %v2034
  %v2036 = vrot.slane %v2027, %v2035
  %v2037 = vlaneseq
  %v2038 = vshrl.u32 %v2037, 7
  %v2039 = vsub.s32 1, %v2038
  %v2040 = vrot.slane %v2027, %v2039
  %v2041 = vlaneseq
  %v2042 = vshrl.u32 %v2041, 7
  %v2043 = vsub.s32 2, %v2042
  %v2044 = vrot.slane %v2027, %v2043
  %v2045 = vlaneseq
  %v2046 = vshrl.u32 %v2045, 7
  %v2047 = vsub.s32 3, %v2046
  %v2048 = vrot.slane %v2027, %v2047
  %v2049 = vlaneseq
  %v2050 = vshrl.u32 %v2049, 7
  %v2051 = vsub.s32 4, %v2050
  %v2052 = vrot.slane %v2027, %v2051
  %2053 = vrot.lane.b32.xlu0 %v2036, 61
  %v2054 = vpop.permute.xlu0 %2053
  %2055 = vrot.lane.b32.xlu0 %v2040, 61
  %v2056 = vpop.permute.xlu0 %2055
  %2057 = vrot.lane.b32.xlu0 %v2044, 61
  %v2058 = vpop.permute.xlu0 %2057
  %2059 = vrot.lane.b32.xlu0 %v2048, 61
  %v2060 = vpop.permute.xlu0 %2059
  %2061 = vrot.lane.b32.xlu0 %v2052, 61
  %v2062 = vpop.permute.xlu0 %2061
  %vm2063 = vcmask 498688
  %v2064 = vsel %vm2063, %v2054, %v2056
  %v2065 = vsel %vm2063, %v2056, %v2058
  %v2066 = vsel %vm2063, %v2058, %v2060
  %v2067 = vsel %vm2063, %v2060, %v2062
  %v2072 = vsel %vm2028, %v2064, 0.0
  %v2073 = vsel %vm2029, %v2065, 0.0
  %v2074 = vsel %vm2030, %v2066, 0.0
  %v2075 = vsel %vm2031, %v2067, 0.0
  %v2080 = vcombine.low %v2072, %v2073
  %v2081 = vcombine.low %v2074, %v2075
  %v2083 = vunpack.c.l.s4 1966171168
  %v2084 = vunpack.c.0.s8 %v2083
  %v2085 = vlaneseq
  %v2086 = vshrl.u32 %v2085, 7
  %v2087 = vsub.s32 %v2084, %v2086
  %v2088 = vrot.slane %v2080, %v2087
  %v2090 = vunpack.c.l.s4 1966171168
  %v2091 = vunpack.c.0.s8 %v2090
  %v2092 = vlaneseq
  %v2093 = vshrl.u32 %v2092, 7
  %v2094 = vsub.s32 %v2091, %v2093
  %v2095 = vrot.slane %v2081, %v2094
  %v2096 = vcombine.low %v2088, %v2095
  %v2098 = vunpack.c.l.s4 1966171168
  %v2099 = vunpack.c.0.s8 %v2098
  %v2100 = vlaneseq
  %v2101 = vshrl.u32 %v2100, 7
  %v2102 = vsub.s32 %v2099, %v2101
  %v2103 = vrot.slane %v2096, %v2102
  %s2105 = scalar_lea.vmem [#allocation4], 71
  %2106 = vst.msk [vmem:[%s2105] ss:$8 sm:$0xf] %vm242, %v2103
  %2107 = vst.msk [vmem:[%s2105] ss:$8 sm:$0x0] %vm242, %v2103
  %v2108 = vld [vmem:[#allocation2] sm:$0x1f]
  %vm2109 = vmand %vm118, %vm178
  %vm2110 = vmand %vm119, %vm179
  %vm2111 = vmand %vm120, %vm180
  %vm2112 = vmand %vm121, %vm181
  %v2114 = vlaneseq
  %v2115 = vshrl.u32 %v2114, 7
  %v2116 = vsub.s32 0, %v2115
  %v2117 = vrot.slane %v2108, %v2116
  %v2118 = vlaneseq
  %v2119 = vshrl.u32 %v2118, 7
  %v2120 = vsub.s32 1, %v2119
  %v2121 = vrot.slane %v2108, %v2120
  %v2122 = vlaneseq
  %v2123 = vshrl.u32 %v2122, 7
  %v2124 = vsub.s32 2, %v2123
  %v2125 = vrot.slane %v2108, %v2124
  %v2126 = vlaneseq
  %v2127 = vshrl.u32 %v2126, 7
  %v2128 = vsub.s32 3, %v2127
  %v2129 = vrot.slane %v2108, %v2128
  %v2130 = vlaneseq
  %v2131 = vshrl.u32 %v2130, 7
  %v2132 = vsub.s32 4, %v2131
  %v2133 = vrot.slane %v2108, %v2132
  %2134 = vrot.lane.b32.xlu0 %v2117, 60
  %v2135 = vpop.permute.xlu0 %2134
  %2136 = vrot.lane.b32.xlu0 %v2121, 60
  %v2137 = vpop.permute.xlu0 %2136
  %2138 = vrot.lane.b32.xlu0 %v2125, 60
  %v2139 = vpop.permute.xlu0 %2138
  %2140 = vrot.lane.b32.xlu0 %v2129, 60
  %v2141 = vpop.permute.xlu0 %2140
  %2142 = vrot.lane.b32.xlu0 %v2133, 60
  %v2143 = vpop.permute.xlu0 %2142
  %vm2144 = vcmask 490496
  %v2145 = vsel %vm2144, %v2135, %v2137
  %v2146 = vsel %vm2144, %v2137, %v2139
  %v2147 = vsel %vm2144, %v2139, %v2141
  %v2148 = vsel %vm2144, %v2141, %v2143
  %v2153 = vsel %vm2109, %v2145, 0.0
  %v2154 = vsel %vm2110, %v2146, 0.0
  %v2155 = vsel %vm2111, %v2147, 0.0
  %v2156 = vsel %vm2112, %v2148, 0.0
  %v2161 = vcombine.low %v2153, %v2154
  %v2162 = vcombine.low %v2155, %v2156
  %v2164 = vunpack.c.l.s4 1966171168
  %v2165 = vunpack.c.0.s8 %v2164
  %v2166 = vlaneseq
  %v2167 = vshrl.u32 %v2166, 7
  %v2168 = vsub.s32 %v2165, %v2167
  %v2169 = vrot.slane %v2161, %v2168
  %v2171 = vunpack.c.l.s4 1966171168
  %v2172 = vunpack.c.0.s8 %v2171
  %v2173 = vlaneseq
  %v2174 = vshrl.u32 %v2173, 7
  %v2175 = vsub.s32 %v2172, %v2174
  %v2176 = vrot.slane %v2162, %v2175
  %v2177 = vcombine.low %v2169, %v2176
  %v2179 = vunpack.c.l.s4 1966171168
  %v2180 = vunpack.c.0.s8 %v2179
  %v2181 = vlaneseq
  %v2182 = vshrl.u32 %v2181, 7
  %v2183 = vsub.s32 %v2180, %v2182
  %v2184 = vrot.slane %v2177, %v2183
  %s2186 = scalar_lea.vmem [#allocation4], 96
  %2187 = vst.msk [vmem:[%s2186] ss:$8 sm:$0xf] %vm242, %v2184
  %2188 = vst.msk [vmem:[%s2186] ss:$8 sm:$0x0] %vm242, %v2184
  %v2189 = vld [vmem:[%s1] sm:$0xf]
  %v2190 = vld [vmem:[#allocation4] sm:$0xff]
  %v2191 = vld [vmem:[#allocation4 + $0x8] sm:$0xff]
  %v2192 = vld [vmem:[#allocation4 + $0x10] sm:$0xff]
  %v2193 = vld [vmem:[#allocation4 + $0x18] sm:$0xff]
  %v2194 = vld [vmem:[#allocation4 + $0x20] sm:$0xff]
  %v2195 = vld [vmem:[#allocation4 + $0x28] sm:$0xff]
  %v2196 = vld [vmem:[#allocation4 + $0x30] sm:$0xff]
  %v2197 = vld [vmem:[#allocation4 + $0x38] sm:$0xff]
  %v2198 = vld [vmem:[#allocation4 + $0x40] sm:$0xff]
  %v2199 = vld [vmem:[#allocation4 + $0x48] sm:$0xff]
  %v2200 = vld [vmem:[#allocation4 + $0x50] sm:$0xff]
  %v2201 = vld [vmem:[#allocation4 + $0x58] sm:$0xff]
  %v2202 = vld [vmem:[#allocation4 + $0x60] sm:$0x1]
  %v2203 = vld [vmem:[#allocation4 + $0x68] sm:$0x1]
  %v2204 = vld [vmem:[#allocation4 + $0x70] sm:$0x1]
  %v2205 = vld [vmem:[#allocation4 + $0x78] sm:$0x1]
  %vm2206 = vcmask 203776
  %v2208 = vsel %vm2206, %v2189, 0
  %vm2210 = vcmask 1040384
  %v2212 = vsel %vm2210, %v2202, 0
  %v2215 = vsel %vm2210, %v2203, 0
  %v2218 = vsel %vm2210, %v2204, 0
  %v2221 = vsel %vm2210, %v2205, 0
  %2223 = vmatprep.subr.mxu0 0.0
  %2224 = vmatpush1.msra.mxu0 0.0
  %2225 = vmatprep.subr.mxu0 0.0
  %2226 = vmatpush1.msra.mxu0 0.0
  %2227 = vmatprep.subr.mxu0 0.0
  %2228 = vmatpush1.msra.mxu0 0.0
  %2229 = vmatprep.subr.mxu0 0.0
  %2230 = vmatpush1.msra.mxu0 0.0
  %2231 = vmatprep.subr.mxu0 0.0
  %2232 = vmatpush1.msra.mxu0 0.0
  %2233 = vmatprep.subr.mxu0 0.0
  %2234 = vmatpush1.msra.mxu0 0.0
  %2235 = vmatprep.subr.mxu0 0.0
  %2236 = vmatpush1.msra.mxu0 0.0
  %2237 = vmatprep.subr.mxu0 0.0
  %2238 = vmatpush1.msra.mxu0 0.0
  %2239 = vmatprep.subr.mxu0 0.0
  %2240 = vmatpush1.msra.mxu0 0.0
  %2241 = vmatprep.subr.mxu0 0.0
  %2242 = vmatpush1.msra.mxu0 0.0
  %2243 = vmatprep.subr.mxu0 0.0
  %2244 = vmatpush1.msra.mxu0 0.0
  %2245 = vmatprep.subr.mxu0 0.0
  %2246 = vmatpush1.msra.mxu0 0.0
  %2247 = vmatprep.subr.mxu0 %v2215
  %2248 = vmatpush1.msra.mxu0 %v2212
  %2249 = vmatprep.subr.mxu0 %v2199
  %2250 = vmatpush1.msra.mxu0 %v2198
  %2251 = vmatprep.subr.mxu0 %v2195
  %2252 = vmatpush1.msra.mxu0 %v2194
  %2253 = vmatprep.subr.mxu0 %v2191
  %2254 = vmatpush1.msra.mxu0 %v2190
  %2255 = vmatprep.subr.mxu0 0.0
  %2256 = vmatpush2.msra.mxu0 0.0
  %2257 = vmatprep.subr.mxu0 0.0
  %2258 = vmatpush2.msra.mxu0 0.0
  %2259 = vmatprep.subr.mxu0 0.0
  %2260 = vmatpush2.msra.mxu0 0.0
  %2261 = vmatprep.subr.mxu0 0.0
  %2262 = vmatpush2.msra.mxu0 0.0
  %2263 = vmatprep.subr.mxu0 0.0
  %2264 = vmatpush2.msra.mxu0 0.0
  %2265 = vmatprep.subr.mxu0 0.0
  %2266 = vmatpush2.msra.mxu0 0.0
  %2267 = vmatprep.subr.mxu0 0.0
  %2268 = vmatpush2.msra.mxu0 0.0
  %2269 = vmatprep.subr.mxu0 0.0
  %2270 = vmatpush2.msra.mxu0 0.0
  %2271 = vmatprep.subr.mxu0 0.0
  %2272 = vmatpush2.msra.mxu0 0.0
  %2273 = vmatprep.subr.mxu0 0.0
  %2274 = vmatpush2.msra.mxu0 0.0
  %2275 = vmatprep.subr.mxu0 0.0
  %2276 = vmatpush2.msra.mxu0 0.0
  %2277 = vmatprep.subr.mxu0 0.0
  %2278 = vmatpush2.msra.mxu0 0.0
  %2279 = vmatprep.subr.mxu0 0.0
  %2280 = vmatpush2.msra.mxu0 0.0
  %2281 = vmatprep.subr.mxu0 0.0
  %2282 = vmatpush2.msra.mxu0 0.0
  %2283 = vmatprep.subr.mxu0 0.0
  %2284 = vmatpush2.msra.mxu0 0.0
  %2285 = vmatprep.subr.mxu0 0.0
  %2286 = vmatpush2.msra.mxu0 0.0
  %2287 = vmatprep.mubr.f32.mxu0 0.0
  %2288 = vmatmul.mubr.f32.gmra.mxu0 %v2208
  %v2289 = vpop.f32.mrf.mxu0
  %v2290 = vadd.f32 0.0, %v2289
  %v2291 = vpop.f32.mrf.mxu0
  %v2292 = vadd.f32 0.0, %v2291
  %2293 = vdwg.mxu0
  %2294 = vmatprep.subr.mxu0 0.0
  %2295 = vmatpush1.msra.mxu0 0.0
  %2296 = vmatprep.subr.mxu0 0.0
  %2297 = vmatpush1.msra.mxu0 0.0
  %2298 = vmatprep.subr.mxu0 0.0
  %2299 = vmatpush1.msra.mxu0 0.0
  %2300 = vmatprep.subr.mxu0 0.0
  %2301 = vmatpush1.msra.mxu0 0.0
  %2302 = vmatprep.subr.mxu0 0.0
  %2303 = vmatpush1.msra.mxu0 0.0
  %2304 = vmatprep.subr.mxu0 0.0
  %2305 = vmatpush1.msra.mxu0 0.0
  %2306 = vmatprep.subr.mxu0 0.0
  %2307 = vmatpush1.msra.mxu0 0.0
  %2308 = vmatprep.subr.mxu0 0.0
  %2309 = vmatpush1.msra.mxu0 0.0
  %2310 = vmatprep.subr.mxu0 0.0
  %2311 = vmatpush1.msra.mxu0 0.0
  %2312 = vmatprep.subr.mxu0 0.0
  %2313 = vmatpush1.msra.mxu0 0.0
  %2314 = vmatprep.subr.mxu0 0.0
  %2315 = vmatpush1.msra.mxu0 0.0
  %2316 = vmatprep.subr.mxu0 0.0
  %2317 = vmatpush1.msra.mxu0 0.0
  %2318 = vmatprep.subr.mxu0 %v2221
  %2319 = vmatpush1.msra.mxu0 %v2218
  %2320 = vmatprep.subr.mxu0 %v2201
  %2321 = vmatpush1.msra.mxu0 %v2200
  %2322 = vmatprep.subr.mxu0 %v2197
  %2323 = vmatpush1.msra.mxu0 %v2196
  %2324 = vmatprep.subr.mxu0 %v2193
  %2325 = vmatpush1.msra.mxu0 %v2192
  %2326 = vmatprep.subr.mxu0 0.0
  %2327 = vmatpush2.msra.mxu0 0.0
  %2328 = vmatprep.subr.mxu0 0.0
  %2329 = vmatpush2.msra.mxu0 0.0
  %2330 = vmatprep.subr.mxu0 0.0
  %2331 = vmatpush2.msra.mxu0 0.0
  %2332 = vmatprep.subr.mxu0 0.0
  %2333 = vmatpush2.msra.mxu0 0.0
  %2334 = vmatprep.subr.mxu0 0.0
  %2335 = vmatpush2.msra.mxu0 0.0
  %2336 = vmatprep.subr.mxu0 0.0
  %2337 = vmatpush2.msra.mxu0 0.0
  %2338 = vmatprep.subr.mxu0 0.0
  %2339 = vmatpush2.msra.mxu0 0.0
  %2340 = vmatprep.subr.mxu0 0.0
  %2341 = vmatpush2.msra.mxu0 0.0
  %2342 = vmatprep.subr.mxu0 0.0
  %2343 = vmatpush2.msra.mxu0 0.0
  %2344 = vmatprep.subr.mxu0 0.0
  %2345 = vmatpush2.msra.mxu0 0.0
  %2346 = vmatprep.subr.mxu0 0.0
  %2347 = vmatpush2.msra.mxu0 0.0
  %2348 = vmatprep.subr.mxu0 0.0
  %2349 = vmatpush2.msra.mxu0 0.0
  %2350 = vmatprep.subr.mxu0 0.0
  %2351 = vmatpush2.msra.mxu0 0.0
  %2352 = vmatprep.subr.mxu0 0.0
  %2353 = vmatpush2.msra.mxu0 0.0
  %2354 = vmatprep.subr.mxu0 0.0
  %2355 = vmatpush2.msra.mxu0 0.0
  %2356 = vmatprep.subr.mxu0 0.0
  %2357 = vmatpush2.msra.mxu0 0.0
  %2358 = vmatprep.mubr.f32.mxu0 0.0
  %2359 = vmatmul.mubr.f32.gmra.mxu0 %v2208
  %v2360 = vpop.f32.mrf.mxu0
  %v2361 = vadd.f32 0.0, %v2360
  %v2362 = vpop.f32.mrf.mxu0
  %v2363 = vadd.f32 0.0, %v2362
  %2364 = vdwg.mxu0
  %v2365 = vld [vmem:[%s4] sm:$0xf]
  %v2366 = vld [vmem:[%s5] sm:$0xf]
  %vm2367 = vcmask 1043456
  %v2368 = vsel %vm2367, %v2290, 0.0
  %v2369 = vsel %vm2367, %v2292, 0.0
  %v2370 = vadd.f32 %v2368, %v2369
  %v2371 = vsel %vm2367, %v2361, 0.0
  %v2372 = vadd.f32 %v2370, %v2371
  %v2373 = vsel %vm2367, %v2363, 0.0
  %v2374 = vadd.f32 %v2372, %v2373
  %2375 = vadd.xlane.f32.xlu0 %v2374
  %v2376 = vpop.xlane.xlu0 %2375
  %v2377 = vmul.f32 %v2376, 0.001953125
  %v2378 = vmul.f32 %v2290, %v2290
  %v2379 = vmul.f32 %v2292, %v2292
  %v2380 = vmul.f32 %v2361, %v2361
  %v2381 = vmul.f32 %v2363, %v2363
  %v2382 = vsel %vm2367, %v2378, 0.0
  %v2383 = vsel %vm2367, %v2379, 0.0
  %v2384 = vadd.f32 %v2382, %v2383
  %v2385 = vsel %vm2367, %v2380, 0.0
  %v2386 = vadd.f32 %v2384, %v2385
  %v2387 = vsel %vm2367, %v2381, 0.0
  %v2388 = vadd.f32 %v2386, %v2387
  %2389 = vadd.xlane.f32.xlu0 %v2388
  %v2390 = vpop.xlane.xlu0 %2389
  %v2391 = vmul.f32 %v2390, 0.001953125
  %v2392 = vmul.f32 %v2377, %v2377
  %v2393 = vsub.f32 %v2391, %v2392
  %v2394 = vmax.f32 %v2393, 0.0
  %v2395 = vadd.f32 %v2394, 1e-05
  %v2396 = vrsqrt.pop %v2395
  %v2397 = vmul.f32 %v2396, %v2365
  %v2398 = vsub.f32 %v2290, %v2377
  %v2399 = vsub.f32 %v2292, %v2377
  %v2400 = vsub.f32 %v2361, %v2377
  %v2401 = vsub.f32 %v2363, %v2377
  %2403 = vset.pattern.permute.xlu0 0
  %2404 = vperm.xlu0 %2403, %v2397
  %v2405 = vpop.permute.xlu0 %2404
  %v2407 = vmul.f32 %v2398, %v2405
  %v2408 = vmul.f32 %v2399, %v2405
  %v2409 = vmul.f32 %v2400, %v2405
  %v2410 = vmul.f32 %v2401, %v2405
  %2412 = vset.pattern.permute.xlu0 0
  %2413 = vperm.xlu0 %2412, %v2366
  %v2414 = vpop.permute.xlu0 %2413
  %v2416 = vadd.f32 %v2407, %v2414
  %v2417 = vadd.f32 %v2408, %v2414
  %v2418 = vadd.f32 %v2409, %v2414
  %v2419 = vadd.f32 %v2410, %v2414
  %v2420 = vmax.f32 %v2416, 0.0
  %v2421 = vmax.f32 %v2417, 0.0
  %v2422 = vmax.f32 %v2418, 0.0
  %v2423 = vmax.f32 %v2419, 0.0
  %vm2424 = vcmask 134144
  %2425 = vst.msk [vmem:[#allocation3 + $0x10] sm:$0xf] %vm2424, 0.0
  %v2430 = vcombine.low %v2420, %v2421
  %v2431 = vcombine.low %v2422, %v2423
  %2434 = vst [vmem:[#allocation3] sm:$0xff] %v2430
  %2435 = vst [vmem:[#allocation3 + $0x8] sm:$0xff] %v2431
  %v2436 = vshra.s32 %v46, 3
  %v2437 = vand.u32 %v46, 7
  %v2438 = vshll.u32 %v2436, 5
  %v2439 = vshll.u32 %v2437, 1
  %v2440 = vadd.s32 %v2438, %v2439
  %v2441 = vlaneseq
  %v2442 = vshrl.u32 %v2441, 7
  %v2443 = vadd.s32 %v2442, 8
  %v2444 = vadd.s32 %v2442, 16
  %v2445 = vadd.s32 %v2442, 24
  %v2446 = vadd.s32 %v2442, 32
  %v2447 = vadd.s32 %v2442, 40
  %v2448 = vadd.s32 %v2442, 48
  %v2449 = vadd.s32 %v2442, 56
  %v2450 = vadd.s32 %v2442, 64
  %v2451 = vadd.s32 %v2442, 72
  %v2452 = vadd.s32 %v2442, 80
  %v2453 = vadd.s32 %v2442, 88
  %v2454 = vadd.s32 %v2442, 96
  %v2455 = vadd.s32 %v2442, 104
  %v2456 = vadd.s32 %v2442, 112
  %v2457 = vadd.s32 %v2442, 120
  %v2458 = vadd.s32 %v2442, 128
  %v2459 = vadd.s32 %v2442, 136
  %v2460 = vadd.s32 %v2442, 144
  %v2461 = vadd.s32 %v2442, 152
  %v2462 = vadd.s32 %v2442, 160
  %v2463 = vadd.s32 %v2442, 168
  %v2464 = vadd.s32 %v2442, 176
  %v2465 = vadd.s32 %v2442, 184
  %v2466 = vadd.s32 %v2442, 192
  %v2467 = vadd.s32 %v2442, 200
  %v2468 = vadd.s32 %v2442, 208
  %v2469 = vadd.s32 %v2442, 216
  %v2470 = vadd.s32 %v2442, 224
  %v2471 = vadd.s32 %v2442, 232
  %v2472 = vadd.s32 %v2442, 240
  %v2473 = vadd.s32 %v2442, 248
  %vm2474 = vcmp.eq.s32.totalorder %v2442, %v2440
  %vm2475 = vcmp.eq.s32.totalorder %v2443, %v2440
  %vm2476 = vcmp.eq.s32.totalorder %v2444, %v2440
  %vm2477 = vcmp.eq.s32.totalorder %v2445, %v2440
  %vm2478 = vcmp.eq.s32.totalorder %v2446, %v2440
  %vm2479 = vcmp.eq.s32.totalorder %v2447, %v2440
  %vm2480 = vcmp.eq.s32.totalorder %v2448, %v2440
  %vm2481 = vcmp.eq.s32.totalorder %v2449, %v2440
  %vm2482 = vcmp.eq.s32.totalorder %v2450, %v2440
  %vm2483 = vcmp.eq.s32.totalorder %v2451, %v2440
  %vm2484 = vcmp.eq.s32.totalorder %v2452, %v2440
  %vm2485 = vcmp.eq.s32.totalorder %v2453, %v2440
  %vm2486 = vcmp.eq.s32.totalorder %v2454, %v2440
  %vm2487 = vcmp.eq.s32.totalorder %v2455, %v2440
  %vm2488 = vcmp.eq.s32.totalorder %v2456, %v2440
  %vm2489 = vcmp.eq.s32.totalorder %v2457, %v2440
  %vm2490 = vcmp.eq.s32.totalorder %v2458, %v2440
  %vm2491 = vcmp.eq.s32.totalorder %v2459, %v2440
  %vm2492 = vcmp.eq.s32.totalorder %v2460, %v2440
  %vm2493 = vcmp.eq.s32.totalorder %v2461, %v2440
  %vm2494 = vcmp.eq.s32.totalorder %v2462, %v2440
  %vm2495 = vcmp.eq.s32.totalorder %v2463, %v2440
  %vm2496 = vcmp.eq.s32.totalorder %v2464, %v2440
  %vm2497 = vcmp.eq.s32.totalorder %v2465, %v2440
  %vm2498 = vcmp.eq.s32.totalorder %v2466, %v2440
  %vm2499 = vcmp.eq.s32.totalorder %v2467, %v2440
  %vm2500 = vcmp.eq.s32.totalorder %v2468, %v2440
  %vm2501 = vcmp.eq.s32.totalorder %v2469, %v2440
  %vm2502 = vcmp.eq.s32.totalorder %v2470, %v2440
  %vm2503 = vcmp.eq.s32.totalorder %v2471, %v2440
  %vm2504 = vcmp.eq.s32.totalorder %v2472, %v2440
  %vm2505 = vcmp.eq.s32.totalorder %v2473, %v2440
  %v2506 = vsel %vm2474, 1.0, 0.0
  %v2507 = vsel %vm2475, 1.0, 0.0
  %v2508 = vsel %vm2476, 1.0, 0.0
  %v2509 = vsel %vm2477, 1.0, 0.0
  %v2510 = vsel %vm2478, 1.0, 0.0
  %v2511 = vsel %vm2479, 1.0, 0.0
  %v2512 = vsel %vm2480, 1.0, 0.0
  %v2513 = vsel %vm2481, 1.0, 0.0
  %v2514 = vsel %vm2482, 1.0, 0.0
  %v2515 = vsel %vm2483, 1.0, 0.0
  %v2516 = vsel %vm2484, 1.0, 0.0
  %v2517 = vsel %vm2485, 1.0, 0.0
  %v2518 = vsel %vm2486, 1.0, 0.0
  %v2519 = vsel %vm2487, 1.0, 0.0
  %v2520 = vsel %vm2488, 1.0, 0.0
  %v2521 = vsel %vm2489, 1.0, 0.0
  %v2522 = vsel %vm2490, 1.0, 0.0
  %v2523 = vsel %vm2491, 1.0, 0.0
  %v2524 = vsel %vm2492, 1.0, 0.0
  %v2525 = vsel %vm2493, 1.0, 0.0
  %v2526 = vsel %vm2494, 1.0, 0.0
  %v2527 = vsel %vm2495, 1.0, 0.0
  %v2528 = vsel %vm2496, 1.0, 0.0
  %v2529 = vsel %vm2497, 1.0, 0.0
  %v2530 = vsel %vm2498, 1.0, 0.0
  %v2531 = vsel %vm2499, 1.0, 0.0
  %v2532 = vsel %vm2500, 1.0, 0.0
  %v2533 = vsel %vm2501, 1.0, 0.0
  %v2534 = vsel %vm2502, 1.0, 0.0
  %v2535 = vsel %vm2503, 1.0, 0.0
  %v2536 = vsel %vm2504, 1.0, 0.0
  %v2537 = vsel %vm2505, 1.0, 0.0
  %vm2538 = vcmask 68608
  %2539 = vst.msk [vmem:[#allocation5] sm:$0xf] %vm2538, 0.0
  %vm2540 = vcmask 142408
  %2541 = vst.msk [vmem:[#allocation5 + $0x4] sm:$0xf] %vm2540, 0.0
  %v2542 = vld [vmem:[#allocation3] sm:$0xff]
  %v2543 = vld [vmem:[#allocation3 + $0x8] sm:$0xf]
  %2546 = vrot.lane.b32.xlu0 %v2542, 127
  %v2547 = vpop.permute.xlu0 %2546
  %2548 = vrot.lane.b32.xlu0 %v2543, 127
  %v2549 = vpop.permute.xlu0 %2548
  %v2550 = vrot.slane %v2547, 4
  %v2551 = vrot.slane %v2549, 4
  %v2552 = vsel %vm2367, %v2550, %v2551
  %v2553 = vsel %vm281, %v2547, %v2552
  %v2555 = vmax.f32 %v2542, %v2553
  %v2557 = vmax.f32 %v2543, %v2549
  %2560 = vrot.lane.b32.xlu0 %v2555, 112
  %v2561 = vpop.permute.xlu0 %2560
  %2562 = vrot.lane.b32.xlu0 %v2557, 112
  %v2563 = vpop.permute.xlu0 %2562
  %v2564 = vrot.slane %v2561, 4
  %v2565 = vrot.slane %v2563, 4
  %v2566 = vsel %vm2367, %v2564, %v2565
  %v2567 = vsel %vm605, %v2561, %v2566
  %v2569 = vmax.f32 %v2555, %v2567
  %v2571 = vcombine.high %v2569, %v2569
  %2573 = vmatprep.subr.mxu0 0.0
  %2574 = vmatpush1.msra.mxu0 %v2521
  %2575 = vmatprep.subr.mxu0 0.0
  %2576 = vmatpush1.msra.mxu0 %v2520
  %2577 = vmatprep.subr.mxu0 0.0
  %2578 = vmatpush1.msra.mxu0 %v2519
  %2579 = vmatprep.subr.mxu0 0.0
  %2580 = vmatpush1.msra.mxu0 %v2518
  %2581 = vmatprep.subr.mxu0 0.0
  %2582 = vmatpush1.msra.mxu0 %v2517
  %2583 = vmatprep.subr.mxu0 0.0
  %2584 = vmatpush1.msra.mxu0 %v2516
  %2585 = vmatprep.subr.mxu0 0.0
  %2586 = vmatpush1.msra.mxu0 %v2515
  %2587 = vmatprep.subr.mxu0 0.0
  %2588 = vmatpush1.msra.mxu0 %v2514
  %2589 = vmatprep.subr.mxu0 0.0
  %2590 = vmatpush1.msra.mxu0 %v2513
  %2591 = vmatprep.subr.mxu0 0.0
  %2592 = vmatpush1.msra.mxu0 %v2512
  %2593 = vmatprep.subr.mxu0 0.0
  %2594 = vmatpush1.msra.mxu0 %v2511
  %2595 = vmatprep.subr.mxu0 0.0
  %2596 = vmatpush1.msra.mxu0 %v2510
  %2597 = vmatprep.subr.mxu0 0.0
  %2598 = vmatpush1.msra.mxu0 %v2509
  %2599 = vmatprep.subr.mxu0 0.0
  %2600 = vmatpush1.msra.mxu0 %v2508
  %2601 = vmatprep.subr.mxu0 0.0
  %2602 = vmatpush1.msra.mxu0 %v2507
  %2603 = vmatprep.subr.mxu0 0.0
  %2604 = vmatpush1.msra.mxu0 %v2506
  %2605 = vmatprep.subr.mxu0 0.0
  %2606 = vmatpush2.msra.mxu0 %v2537
  %2607 = vmatprep.subr.mxu0 0.0
  %2608 = vmatpush2.msra.mxu0 %v2536
  %2609 = vmatprep.subr.mxu0 0.0
  %2610 = vmatpush2.msra.mxu0 %v2535
  %2611 = vmatprep.subr.mxu0 0.0
  %2612 = vmatpush2.msra.mxu0 %v2534
  %2613 = vmatprep.subr.mxu0 0.0
  %2614 = vmatpush2.msra.mxu0 %v2533
  %2615 = vmatprep.subr.mxu0 0.0
  %2616 = vmatpush2.msra.mxu0 %v2532
  %2617 = vmatprep.subr.mxu0 0.0
  %2618 = vmatpush2.msra.mxu0 %v2531
  %2619 = vmatprep.subr.mxu0 0.0
  %2620 = vmatpush2.msra.mxu0 %v2530
  %2621 = vmatprep.subr.mxu0 0.0
  %2622 = vmatpush2.msra.mxu0 %v2529
  %2623 = vmatprep.subr.mxu0 0.0
  %2624 = vmatpush2.msra.mxu0 %v2528
  %2625 = vmatprep.subr.mxu0 0.0
  %2626 = vmatpush2.msra.mxu0 %v2527
  %2627 = vmatprep.subr.mxu0 0.0
  %2628 = vmatpush2.msra.mxu0 %v2526
  %2629 = vmatprep.subr.mxu0 0.0
  %2630 = vmatpush2.msra.mxu0 %v2525
  %2631 = vmatprep.subr.mxu0 0.0
  %2632 = vmatpush2.msra.mxu0 %v2524
  %2633 = vmatprep.subr.mxu0 0.0
  %2634 = vmatpush2.msra.mxu0 %v2523
  %2635 = vmatprep.subr.mxu0 0.0
  %2636 = vmatpush2.msra.mxu0 %v2522
  %2637 = vmatprep.mubr.f32.mxu0 %v2571
  %2638 = vmatmul.mubr.f32.gmra.mxu0 %v2569
  %v2639 = vpop.f32.mrf.mxu0
  %v2640 = vadd.f32 0.0, %v2639
  %v2641 = vpop.f32.mrf.mxu0
  %2642 = vdwg.mxu0
  %vm2643 = vcmask 519168
  %v2644 = vsel %vm2643, %v2640, 0.0
  %2645 = vadd.xlane.f32.xlu0 %v2644
  %v2646 = vpop.xlane.xlu0 %2645
  %v2647 = vmul.f32 %v2646, 0.015625
  %vm2648 = vcmask 68672
  %2649 = vst.msk [vmem:[%s6] sm:$0xf] %vm2648, %v2647
  %2651 = vrot.lane.b32.xlu0 %v2640, 9
  %v2652 = vpop.permute.xlu0 %2651
  %vm2654 = vcmask 592968
  %2655 = vst.msk [vmem:[#allocation5] sm:$0xf] %vm2654, %v2652
  %v2656 = vld [vmem:[#allocation3 + $0x8] sm:$0xff]
  %v2657 = vld [vmem:[#allocation3 + $0x10] sm:$0xf]
  %2660 = vrot.lane.b32.xlu0 %v2656, 127
  %v2661 = vpop.permute.xlu0 %2660
  %2662 = vrot.lane.b32.xlu0 %v2657, 127
  %v2663 = vpop.permute.xlu0 %2662
  %v2664 = vrot.slane %v2661, 4
  %v2665 = vrot.slane %v2663, 4
  %v2666 = vsel %vm2367, %v2664, %v2665
  %v2667 = vsel %vm281, %v2661, %v2666
  %v2669 = vmax.f32 %v2656, %v2667
  %v2671 = vmax.f32 %v2657, %v2663
  %2674 = vrot.lane.b32.xlu0 %v2669, 112
  %v2675 = vpop.permute.xlu0 %2674
  %2676 = vrot.lane.b32.xlu0 %v2671, 112
  %v2677 = vpop.permute.xlu0 %2676
  %v2678 = vrot.slane %v2675, 4
  %v2679 = vrot.slane %v2677, 4
  %v2680 = vsel %vm2367, %v2678, %v2679
  %v2681 = vsel %vm605, %v2675, %v2680
  %v2683 = vmax.f32 %v2669, %v2681
  %v2685 = vcombine.high %v2683, %v2683
  %2687 = vmatprep.subr.mxu0 0.0
  %2688 = vmatpush1.msra.mxu0 %v2521
  %2689 = vmatprep.subr.mxu0 0.0
  %2690 = vmatpush1.msra.mxu0 %v2520
  %2691 = vmatprep.subr.mxu0 0.0
  %2692 = vmatpush1.msra.mxu0 %v2519
  %2693 = vmatprep.subr.mxu0 0.0
  %2694 = vmatpush1.msra.mxu0 %v2518
  %2695 = vmatprep.subr.mxu0 0.0
  %2696 = vmatpush1.msra.mxu0 %v2517
  %2697 = vmatprep.subr.mxu0 0.0
  %2698 = vmatpush1.msra.mxu0 %v2516
  %2699 = vmatprep.subr.mxu0 0.0
  %2700 = vmatpush1.msra.mxu0 %v2515
  %2701 = vmatprep.subr.mxu0 0.0
  %2702 = vmatpush1.msra.mxu0 %v2514
  %2703 = vmatprep.subr.mxu0 0.0
  %2704 = vmatpush1.msra.mxu0 %v2513
  %2705 = vmatprep.subr.mxu0 0.0
  %2706 = vmatpush1.msra.mxu0 %v2512
  %2707 = vmatprep.subr.mxu0 0.0
  %2708 = vmatpush1.msra.mxu0 %v2511
  %2709 = vmatprep.subr.mxu0 0.0
  %2710 = vmatpush1.msra.mxu0 %v2510
  %2711 = vmatprep.subr.mxu0 0.0
  %2712 = vmatpush1.msra.mxu0 %v2509
  %2713 = vmatprep.subr.mxu0 0.0
  %2714 = vmatpush1.msra.mxu0 %v2508
  %2715 = vmatprep.subr.mxu0 0.0
  %2716 = vmatpush1.msra.mxu0 %v2507
  %2717 = vmatprep.subr.mxu0 0.0
  %2718 = vmatpush1.msra.mxu0 %v2506
  %2719 = vmatprep.subr.mxu0 0.0
  %2720 = vmatpush2.msra.mxu0 %v2537
  %2721 = vmatprep.subr.mxu0 0.0
  %2722 = vmatpush2.msra.mxu0 %v2536
  %2723 = vmatprep.subr.mxu0 0.0
  %2724 = vmatpush2.msra.mxu0 %v2535
  %2725 = vmatprep.subr.mxu0 0.0
  %2726 = vmatpush2.msra.mxu0 %v2534
  %2727 = vmatprep.subr.mxu0 0.0
  %2728 = vmatpush2.msra.mxu0 %v2533
  %2729 = vmatprep.subr.mxu0 0.0
  %2730 = vmatpush2.msra.mxu0 %v2532
  %2731 = vmatprep.subr.mxu0 0.0
  %2732 = vmatpush2.msra.mxu0 %v2531
  %2733 = vmatprep.subr.mxu0 0.0
  %2734 = vmatpush2.msra.mxu0 %v2530
  %2735 = vmatprep.subr.mxu0 0.0
  %2736 = vmatpush2.msra.mxu0 %v2529
  %2737 = vmatprep.subr.mxu0 0.0
  %2738 = vmatpush2.msra.mxu0 %v2528
  %2739 = vmatprep.subr.mxu0 0.0
  %2740 = vmatpush2.msra.mxu0 %v2527
  %2741 = vmatprep.subr.mxu0 0.0
  %2742 = vmatpush2.msra.mxu0 %v2526
  %2743 = vmatprep.subr.mxu0 0.0
  %2744 = vmatpush2.msra.mxu0 %v2525
  %2745 = vmatprep.subr.mxu0 0.0
  %2746 = vmatpush2.msra.mxu0 %v2524
  %2747 = vmatprep.subr.mxu0 0.0
  %2748 = vmatpush2.msra.mxu0 %v2523
  %2749 = vmatprep.subr.mxu0 0.0
  %2750 = vmatpush2.msra.mxu0 %v2522
  %2751 = vmatprep.mubr.f32.mxu0 %v2685
  %2752 = vmatmul.mubr.f32.gmra.mxu0 %v2683
  %v2753 = vpop.f32.mrf.mxu0
  %v2754 = vadd.f32 0.0, %v2753
  %v2755 = vpop.f32.mrf.mxu0
  %2756 = vdwg.mxu0
  %v2757 = vsel %vm2643, %v2754, 0.0
  %2758 = vadd.xlane.f32.xlu0 %v2757
  %v2759 = vpop.xlane.xlu0 %2758
  %v2760 = vmul.f32 %v2759, 0.015625
  %vm2761 = vcmask 76872
  %2762 = vst.msk [vmem:[%s6] sm:$0xf] %vm2761, %v2760
  %2764 = vrot.lane.b32.xlu0 %v2754, 73
  %v2765 = vpop.permute.xlu0 %2764
  %v2766 = vrot.slane %v2765, 4
  %vm2767 = vcmask 596992
  %v2768 = vsel %vm2767, %v2766, %v2765
  %vm2770 = vcmask 1044040
  %vm2771 = vcmask 72708
  %vm2772 = vmor %vm2771, %vm2770
  %2773 = vst.msk [vmem:[#allocation5] sm:$0xff] %vm2772, %v2768
  %v2774 = vand.u32 %v46, 63
  %v2775 = vshra.s32 %v2774, 3
  %vm2776 = vcmp.ge.s32.totalorder %v2775, 1
  %vm2777 = vcmp.le.s32.totalorder %v2775, 8
  %vm2778 = vmand %vm2776, %vm2777
  %vm2779 = vcmp.ge.s32.totalorder %v2775, 0
  %vm2780 = vcmp.le.s32.totalorder %v2775, 7
  %vm2781 = vmand %vm2779, %vm2780
  %vm2782 = vcmp.ge.s32.totalorder %v2775, 4294967295
  %vm2783 = vcmp.le.s32.totalorder %v2775, 6
  %vm2784 = vmand %vm2782, %vm2783
  %vm2785 = vcmp.ge.s32.totalorder %v2437, 1
  %vm2786 = vcmp.le.s32.totalorder %v2437, 8
  %vm2787 = vmand %vm2785, %vm2786
  %vm2788 = vcmp.ge.s32.totalorder %v2437, 0
  %vm2789 = vcmp.le.s32.totalorder %v2437, 7
  %vm2790 = vmand %vm2788, %vm2789
  %vm2791 = vcmp.ge.s32.totalorder %v2437, 4294967295
  %vm2792 = vcmp.le.s32.totalorder %v2437, 6
  %vm2793 = vmand %vm2791, %vm2792
  %v2794 = vld [vmem:[#allocation5] sm:$0xf]
  %vm2795 = vmand %vm2778, %vm2787
  %v2796 = vsel %vm2795, 1, 0
  %vm2797 = vcmp.eq.s32.totalorder %v2796, 1
  %v2798 = vsel %vm2797, %v2794, 0.0
  %2799 = vst [vmem:[#allocation7] sm:$0xf] %v2798
  %v2800 = vld [vmem:[#allocation5] sm:$0xff]
  %vm2801 = vmand %vm2778, %vm2790
  %v2802 = vsel %vm2801, 1, 0
  %vm2803 = vcmp.eq.s32.totalorder %v2802, 1
  %v2805 = vcombine.high %v2800, %v2800
  %2806 = vrot.lane.b32.xlu0 %v2800, 127
  %v2807 = vpop.permute.xlu0 %2806
  %2808 = vrot.lane.b32.xlu0 %v2805, 127
  %v2809 = vpop.permute.xlu0 %2808
  %v2810 = vsel %vm281, %v2807, %v2809
  %v2812 = vsel %vm2803, %v2810, 0.0
  %2813 = vst [vmem:[#allocation7 + $0x4] sm:$0xf] %v2812
  %v2814 = vld [vmem:[#allocation5] sm:$0xff]
  %vm2815 = vmand %vm2778, %vm2793
  %v2816 = vsel %vm2815, 1, 0
  %vm2817 = vcmp.eq.s32.totalorder %v2816, 1
  %v2819 = vcombine.high %v2814, %v2814
  %2820 = vrot.lane.b32.xlu0 %v2814, 126
  %v2821 = vpop.permute.xlu0 %2820
  %2822 = vrot.lane.b32.xlu0 %v2819, 126
  %v2823 = vpop.permute.xlu0 %2822
  %v2824 = vsel %vm362, %v2821, %v2823
  %v2826 = vsel %vm2817, %v2824, 0.0
  %2827 = vst [vmem:[#allocation7 + $0x8] sm:$0xf] %v2826
  %v2828 = vld [vmem:[#allocation5] sm:$0xff]
  %vm2829 = vmand %vm2781, %vm2787
  %v2830 = vsel %vm2829, 1, 0
  %vm2831 = vcmp.eq.s32.totalorder %v2830, 1
  %v2833 = vcombine.high %v2828, %v2828
  %2834 = vrot.lane.b32.xlu0 %v2828, 120
  %v2835 = vpop.permute.xlu0 %2834
  %2836 = vrot.lane.b32.xlu0 %v2833, 120
  %v2837 = vpop.permute.xlu0 %2836
  %vm2838 = vcmask 982016
  %v2839 = vsel %vm2838, %v2835, %v2837
  %v2841 = vsel %vm2831, %v2839, 0.0
  %2842 = vst [vmem:[#allocation7 + $0xc] sm:$0xf] %v2841
  %v2843 = vld [vmem:[#allocation5] sm:$0xff]
  %vm2844 = vmand %vm2781, %vm2790
  %v2845 = vsel %vm2844, 1, 0
  %vm2846 = vcmp.eq.s32.totalorder %v2845, 1
  %v2848 = vcombine.high %v2843, %v2843
  %2849 = vrot.lane.b32.xlu0 %v2843, 119
  %v2850 = vpop.permute.xlu0 %2849
  %2851 = vrot.lane.b32.xlu0 %v2848, 119
  %v2852 = vpop.permute.xlu0 %2851
  %vm2853 = vcmask 973824
  %v2854 = vsel %vm2853, %v2850, %v2852
  %v2856 = vsel %vm2846, %v2854, 0.0
  %2857 = vst [vmem:[#allocation7 + $0x10] sm:$0xf] %v2856
  %v2858 = vld [vmem:[#allocation5] sm:$0xff]
  %vm2859 = vmand %vm2781, %vm2793
  %v2860 = vsel %vm2859, 1, 0
  %vm2861 = vcmp.eq.s32.totalorder %v2860, 1
  %v2863 = vcombine.high %v2858, %v2858
  %2864 = vrot.lane.b32.xlu0 %v2858, 118
  %v2865 = vpop.permute.xlu0 %2864
  %2866 = vrot.lane.b32.xlu0 %v2863, 118
  %v2867 = vpop.permute.xlu0 %2866
  %vm2868 = vcmask 965632
  %v2869 = vsel %vm2868, %v2865, %v2867
  %v2871 = vsel %vm2861, %v2869, 0.0
  %2872 = vst [vmem:[#allocation7 + $0x14] sm:$0xf] %v2871
  %v2873 = vld [vmem:[#allocation5] sm:$0xff]
  %vm2874 = vmand %vm2784, %vm2787
  %v2875 = vsel %vm2874, 1, 0
  %vm2876 = vcmp.eq.s32.totalorder %v2875, 1
  %v2878 = vcombine.high %v2873, %v2873
  %2879 = vrot.lane.b32.xlu0 %v2873, 112
  %v2880 = vpop.permute.xlu0 %2879
  %2881 = vrot.lane.b32.xlu0 %v2878, 112
  %v2882 = vpop.permute.xlu0 %2881
  %v2883 = vsel %vm605, %v2880, %v2882
  %v2885 = vsel %vm2876, %v2883, 0.0
  %2886 = vst [vmem:[#allocation7 + $0x18] sm:$0xf] %v2885
  %v2887 = vld [vmem:[#allocation5] sm:$0xff]
  %vm2888 = vmand %vm2784, %vm2790
  %v2889 = vsel %vm2888, 1, 0
  %vm2890 = vcmp.eq.s32.totalorder %v2889, 1
  %v2892 = vcombine.high %v2887, %v2887
  %2893 = vrot.lane.b32.xlu0 %v2887, 111
  %v2894 = vpop.permute.xlu0 %2893
  %2895 = vrot.lane.b32.xlu0 %v2892, 111
  %v2896 = vpop.permute.xlu0 %2895
  %v2897 = vsel %vm686, %v2894, %v2896
  %v2899 = vsel %vm2890, %v2897, 0.0
  %2900 = vst [vmem:[#allocation7 + $0x1c] sm:$0xf] %v2899
  %v2901 = vld [vmem:[#allocation5] sm:$0xff]
  %vm2902 = vmand %vm2784, %vm2793
  %v2903 = vsel %vm2902, 1, 0
  %vm2904 = vcmp.eq.s32.totalorder %v2903, 1
  %v2906 = vcombine.high %v2901, %v2901
  %2907 = vrot.lane.b32.xlu0 %v2901, 110
  %v2908 = vpop.permute.xlu0 %2907
  %2909 = vrot.lane.b32.xlu0 %v2906, 110
  %v2910 = vpop.permute.xlu0 %2909
  %v2911 = vsel %vm767, %v2908, %v2910
  %v2913 = vsel %vm2904, %v2911, 0.0
  %2914 = vst [vmem:[#allocation7 + $0x20] sm:$0xf] %v2913
  %v2915 = vld [vmem:[%s2] sm:$0xff]
  %v2916 = vld [vmem:[#allocation7] sm:$0xff]
  %v2917 = vld [vmem:[#allocation7 + $0x8] sm:$0xff]
  %v2918 = vld [vmem:[#allocation7 + $0x10] sm:$0xff]
  %v2919 = vld [vmem:[#allocation7 + $0x18] sm:$0xff]
  %v2920 = vld [vmem:[#allocation7 + $0x20] sm:$0xf]
  %vm2921 = vcmask 293888
  %v2923 = vsel %vm2921, %v2915, 0
  %v2926 = vsel %vm2367, %v2920, 0
  %2928 = vmatprep.subr.mxu0 0.0
  %2929 = vmatpush1.msra.mxu0 0.0
  %2930 = vmatprep.subr.mxu0 0.0
  %2931 = vmatpush1.msra.mxu0 0.0
  %2932 = vmatprep.subr.mxu0 0.0
  %2933 = vmatpush1.msra.mxu0 0.0
  %2934 = vmatprep.subr.mxu0 0.0
  %2935 = vmatpush1.msra.mxu0 0.0
  %2936 = vmatprep.subr.mxu0 0.0
  %2937 = vmatpush1.msra.mxu0 0.0
  %2938 = vmatprep.subr.mxu0 0.0
  %2939 = vmatpush1.msra.mxu0 0.0
  %2940 = vmatprep.subr.mxu0 0.0
  %2941 = vmatpush1.msra.mxu0 0.0
  %2942 = vmatprep.subr.mxu0 0.0
  %2943 = vmatpush1.msra.mxu0 0.0
  %2944 = vmatprep.subr.mxu0 0.0
  %2945 = vmatpush1.msra.mxu0 0.0
  %2946 = vmatprep.subr.mxu0 0.0
  %2947 = vmatpush1.msra.mxu0 0.0
  %2948 = vmatprep.subr.mxu0 0.0
  %2949 = vmatpush1.msra.mxu0 0.0
  %2950 = vmatprep.subr.mxu0 0.0
  %2951 = vmatpush1.msra.mxu0 %v2926
  %2952 = vmatprep.subr.mxu0 0.0
  %2953 = vmatpush1.msra.mxu0 %v2919
  %2954 = vmatprep.subr.mxu0 0.0
  %2955 = vmatpush1.msra.mxu0 %v2918
  %2956 = vmatprep.subr.mxu0 0.0
  %2957 = vmatpush1.msra.mxu0 %v2917
  %2958 = vmatprep.subr.mxu0 0.0
  %2959 = vmatpush1.msra.mxu0 %v2916
  %2960 = vmatprep.subr.mxu0 0.0
  %2961 = vmatpush2.msra.mxu0 0.0
  %2962 = vmatprep.subr.mxu0 0.0
  %2963 = vmatpush2.msra.mxu0 0.0
  %2964 = vmatprep.subr.mxu0 0.0
  %2965 = vmatpush2.msra.mxu0 0.0
  %2966 = vmatprep.subr.mxu0 0.0
  %2967 = vmatpush2.msra.mxu0 0.0
  %2968 = vmatprep.subr.mxu0 0.0
  %2969 = vmatpush2.msra.mxu0 0.0
  %2970 = vmatprep.subr.mxu0 0.0
  %2971 = vmatpush2.msra.mxu0 0.0
  %2972 = vmatprep.subr.mxu0 0.0
  %2973 = vmatpush2.msra.mxu0 0.0
  %2974 = vmatprep.subr.mxu0 0.0
  %2975 = vmatpush2.msra.mxu0 0.0
  %2976 = vmatprep.subr.mxu0 0.0
  %2977 = vmatpush2.msra.mxu0 0.0
  %2978 = vmatprep.subr.mxu0 0.0
  %2979 = vmatpush2.msra.mxu0 0.0
  %2980 = vmatprep.subr.mxu0 0.0
  %2981 = vmatpush2.msra.mxu0 0.0
  %2982 = vmatprep.subr.mxu0 0.0
  %2983 = vmatpush2.msra.mxu0 0.0
  %2984 = vmatprep.subr.mxu0 0.0
  %2985 = vmatpush2.msra.mxu0 0.0
  %2986 = vmatprep.subr.mxu0 0.0
  %2987 = vmatpush2.msra.mxu0 0.0
  %2988 = vmatprep.subr.mxu0 0.0
  %2989 = vmatpush2.msra.mxu0 0.0
  %2990 = vmatprep.subr.mxu0 0.0
  %2991 = vmatpush2.msra.mxu0 0.0
  %2992 = vmatprep.mubr.f32.mxu0 0.0
  %2993 = vmatmul.mubr.f32.gmra.mxu0 %v2923
  %v2994 = vpop.f32.mrf.mxu0
  %v2995 = vadd.f32 0.0, %v2994
  %v2996 = vpop.f32.mrf.mxu0
  %2997 = vdwg.mxu0
  %v2998 = vld [vmem:[%s4 + $0x4] sm:$0xff]
  %v2999 = vld [vmem:[%s5 + $0x4] sm:$0xff]
  %3000 = vadd.xlane.f32.xlu0 %v2995
  %v3001 = vpop.xlane.xlu0 %3000
  %v3002 = vmul.f32 %v3001, 0.0078125
  %v3003 = vmul.f32 %v2995, %v2995
  %3004 = vadd.xlane.f32.xlu0 %v3003
  %v3005 = vpop.xlane.xlu0 %3004
  %v3006 = vmul.f32 %v3005, 0.0078125
  %v3007 = vmul.f32 %v3002, %v3002
  %v3008 = vsub.f32 %v3006, %v3007
  %v3009 = vmax.f32 %v3008, 0.0
  %v3010 = vadd.f32 %v3009, 1e-05
  %v3011 = vrsqrt.pop %v3010
  %v3012 = vmul.f32 %v3011, %v2998
  %v3013 = vsub.f32 %v2995, %v3002
  %3015 = vset.pattern.permute.xlu0 0
  %3016 = vperm.xlu0 %3015, %v3012
  %v3017 = vpop.permute.xlu0 %3016
  %v3019 = vmul.f32 %v3013, %v3017
  %3021 = vset.pattern.permute.xlu0 0
  %3022 = vperm.xlu0 %3021, %v2999
  %v3023 = vpop.permute.xlu0 %3022
  %v3025 = vadd.f32 %v3019, %v3023
  %v3026 = vmax.f32 %v3025, 0.0
  %vm3027 = vcmask 72704
  %3028 = vst.msk [vmem:[#allocation6 + $0x8] sm:$0xff] %vm3027, 0.0
  %3029 = vst [vmem:[#allocation6] sm:$0xff] %v3026
  %v3030 = vshra.s32 %v46, 2
  %v3031 = vand.u32 %v46, 3
  %v3032 = vshll.u32 %v3030, 4
  %v3033 = vshll.u32 %v3031, 1
  %v3034 = vadd.s32 %v3032, %v3033
  %vm3035 = vcmp.eq.s32.totalorder %v2442, %v3034
  %vm3036 = vcmp.eq.s32.totalorder %v2443, %v3034
  %vm3037 = vcmp.eq.s32.totalorder %v2444, %v3034
  %vm3038 = vcmp.eq.s32.totalorder %v2445, %v3034
  %vm3039 = vcmp.eq.s32.totalorder %v2446, %v3034
  %vm3040 = vcmp.eq.s32.totalorder %v2447, %v3034
  %vm3041 = vcmp.eq.s32.totalorder %v2448, %v3034
  %vm3042 = vcmp.eq.s32.totalorder %v2449, %v3034
  %v3043 = vsel %vm3035, 1.0, 0.0
  %v3044 = vsel %vm3036, 1.0, 0.0
  %v3045 = vsel %vm3037, 1.0, 0.0
  %v3046 = vsel %vm3038, 1.0, 0.0
  %v3047 = vsel %vm3039, 1.0, 0.0
  %v3048 = vsel %vm3040, 1.0, 0.0
  %v3049 = vsel %vm3041, 1.0, 0.0
  %v3050 = vsel %vm3042, 1.0, 0.0
  %vm3051 = vcmask 39936
  %3052 = vst.msk [vmem:[#allocation8] sm:$0xff] %vm3051, 0.0
  %vm3053 = vcmask 343336
  %3054 = vst.msk [vmem:[#allocation8] sm:$0xff] %vm3053, 0.0
  %v3055 = vld [vmem:[#allocation6] sm:$0xff]
  %3057 = vrot.lane.b32.xlu0 %v3055, 127
  %v3058 = vpop.permute.xlu0 %3057
  %v3060 = vmax.f32 %v3055, %v3058
  %3062 = vrot.lane.b32.xlu0 %v3060, 120
  %v3063 = vpop.permute.xlu0 %3062
  %v3065 = vmax.f32 %v3060, %v3063
  %v3067 = vsel %vm1820, %v3065, 0
  %3069 = vmatprep.subr.mxu0 0.0
  %3070 = vmatpush1.msra.mxu0 0.0
  %3071 = vmatprep.subr.mxu0 0.0
  %3072 = vmatpush1.msra.mxu0 0.0
  %3073 = vmatprep.subr.mxu0 0.0
  %3074 = vmatpush1.msra.mxu0 0.0
  %3075 = vmatprep.subr.mxu0 0.0
  %3076 = vmatpush1.msra.mxu0 0.0
  %3077 = vmatprep.subr.mxu0 0.0
  %3078 = vmatpush1.msra.mxu0 0.0
  %3079 = vmatprep.subr.mxu0 0.0
  %3080 = vmatpush1.msra.mxu0 0.0
  %3081 = vmatprep.subr.mxu0 0.0
  %3082 = vmatpush1.msra.mxu0 0.0
  %3083 = vmatprep.subr.mxu0 0.0
  %3084 = vmatpush1.msra.mxu0 0.0
  %3085 = vmatprep.subr.mxu0 0.0
  %3086 = vmatpush1.msra.mxu0 %v3050
  %3087 = vmatprep.subr.mxu0 0.0
  %3088 = vmatpush1.msra.mxu0 %v3049
  %3089 = vmatprep.subr.mxu0 0.0
  %3090 = vmatpush1.msra.mxu0 %v3048
  %3091 = vmatprep.subr.mxu0 0.0
  %3092 = vmatpush1.msra.mxu0 %v3047
  %3093 = vmatprep.subr.mxu0 0.0
  %3094 = vmatpush1.msra.mxu0 %v3046
  %3095 = vmatprep.subr.mxu0 0.0
  %3096 = vmatpush1.msra.mxu0 %v3045
  %3097 = vmatprep.subr.mxu0 0.0
  %3098 = vmatpush1.msra.mxu0 %v3044
  %3099 = vmatprep.subr.mxu0 0.0
  %3100 = vmatpush1.msra.mxu0 %v3043
  %3101 = vmatprep.subr.mxu0 0.0
  %3102 = vmatpush2.msra.mxu0 0.0
  %3103 = vmatprep.subr.mxu0 0.0
  %3104 = vmatpush2.msra.mxu0 0.0
  %3105 = vmatprep.subr.mxu0 0.0
  %3106 = vmatpush2.msra.mxu0 0.0
  %3107 = vmatprep.subr.mxu0 0.0
  %3108 = vmatpush2.msra.mxu0 0.0
  %3109 = vmatprep.subr.mxu0 0.0
  %3110 = vmatpush2.msra.mxu0 0.0
  %3111 = vmatprep.subr.mxu0 0.0
  %3112 = vmatpush2.msra.mxu0 0.0
  %3113 = vmatprep.subr.mxu0 0.0
  %3114 = vmatpush2.msra.mxu0 0.0
  %3115 = vmatprep.subr.mxu0 0.0
  %3116 = vmatpush2.msra.mxu0 0.0
  %3117 = vmatprep.subr.mxu0 0.0
  %3118 = vmatpush2.msra.mxu0 0.0
  %3119 = vmatprep.subr.mxu0 0.0
  %3120 = vmatpush2.msra.mxu0 0.0
  %3121 = vmatprep.subr.mxu0 0.0
  %3122 = vmatpush2.msra.mxu0 0.0
  %3123 = vmatprep.subr.mxu0 0.0
  %3124 = vmatpush2.msra.mxu0 0.0
  %3125 = vmatprep.subr.mxu0 0.0
  %3126 = vmatpush2.msra.mxu0 0.0
  %3127 = vmatprep.subr.mxu0 0.0
  %3128 = vmatpush2.msra.mxu0 0.0
  %3129 = vmatprep.subr.mxu0 0.0
  %3130 = vmatpush2.msra.mxu0 0.0
  %3131 = vmatprep.subr.mxu0 0.0
  %3132 = vmatpush2.msra.mxu0 0.0
  %3133 = vmatprep.mubr.f32.mxu0 0.0
  %3134 = vmatmul.mubr.f32.gmra.mxu0 %v3067
  %v3135 = vpop.f32.mrf.mxu0
  %v3136 = vadd.f32 0.0, %v3135
  %v3137 = vpop.f32.mrf.mxu0
  %3138 = vdwg.mxu0
  %vm3139 = vcmask 130048
  %v3140 = vsel %vm3139, %v3136, 0.0
  %3141 = vadd.xlane.f32.xlu0 %v3140
  %v3142 = vpop.xlane.xlu0 %3141
  %v3143 = vmul.f32 %v3142, 0.0625
  %vm3144 = vcmask 89168
  %3145 = vst.msk [vmem:[%s6] sm:$0xff] %vm3144, %v3143
  %3147 = vrot.lane.b32.xlu0 %v3136, 5
  %v3148 = vpop.permute.xlu0 %3147
  %vm3150 = vcmask 171048
  %3151 = vst.msk [vmem:[#allocation8] sm:$0xff] %vm3150, %v3148
  %v3152 = vld [vmem:[#allocation6] sm:$0xff]
  %v3153 = vld [vmem:[#allocation6 + $0x8] sm:$0xff]
  %3156 = vrot.lane.b32.xlu0 %v3152, 127
  %v3157 = vpop.permute.xlu0 %3156
  %3158 = vrot.lane.b32.xlu0 %v3153, 127
  %v3159 = vpop.permute.xlu0 %3158
  %v3160 = vsel %vm281, %v3157, %v3159
  %v3162 = vmax.f32 %v3152, %v3160
  %v3164 = vmax.f32 %v3153, %v3159
  %3167 = vrot.lane.b32.xlu0 %v3162, 120
  %v3168 = vpop.permute.xlu0 %3167
  %3169 = vrot.lane.b32.xlu0 %v3164, 120
  %v3170 = vpop.permute.xlu0 %3169
  %v3171 = vsel %vm2838, %v3168, %v3170
  %v3173 = vmax.f32 %v3162, %v3171
  %3175 = vrot.lane.b32.xlu0 %v3173, 64
  %v3176 = vpop.permute.xlu0 %3175
  %v3177 = vsel %vm1820, %v3176, 0
  %3179 = vmatprep.subr.mxu0 0.0
  %3180 = vmatpush1.msra.mxu0 0.0
  %3181 = vmatprep.subr.mxu0 0.0
  %3182 = vmatpush1.msra.mxu0 0.0
  %3183 = vmatprep.subr.mxu0 0.0
  %3184 = vmatpush1.msra.mxu0 0.0
  %3185 = vmatprep.subr.mxu0 0.0
  %3186 = vmatpush1.msra.mxu0 0.0
  %3187 = vmatprep.subr.mxu0 0.0
  %3188 = vmatpush1.msra.mxu0 0.0
  %3189 = vmatprep.subr.mxu0 0.0
  %3190 = vmatpush1.msra.mxu0 0.0
  %3191 = vmatprep.subr.mxu0 0.0
  %3192 = vmatpush1.msra.mxu0 0.0
  %3193 = vmatprep.subr.mxu0 0.0
  %3194 = vmatpush1.msra.mxu0 0.0
  %3195 = vmatprep.subr.mxu0 0.0
  %3196 = vmatpush1.msra.mxu0 %v3050
  %3197 = vmatprep.subr.mxu0 0.0
  %3198 = vmatpush1.msra.mxu0 %v3049
  %3199 = vmatprep.subr.mxu0 0.0
  %3200 = vmatpush1.msra.mxu0 %v3048
  %3201 = vmatprep.subr.mxu0 0.0
  %3202 = vmatpush1.msra.mxu0 %v3047
  %3203 = vmatprep.subr.mxu0 0.0
  %3204 = vmatpush1.msra.mxu0 %v3046
  %3205 = vmatprep.subr.mxu0 0.0
  %3206 = vmatpush1.msra.mxu0 %v3045
  %3207 = vmatprep.subr.mxu0 0.0
  %3208 = vmatpush1.msra.mxu0 %v3044
  %3209 = vmatprep.subr.mxu0 0.0
  %3210 = vmatpush1.msra.mxu0 %v3043
  %3211 = vmatprep.subr.mxu0 0.0
  %3212 = vmatpush2.msra.mxu0 0.0
  %3213 = vmatprep.subr.mxu0 0.0
  %3214 = vmatpush2.msra.mxu0 0.0
  %3215 = vmatprep.subr.mxu0 0.0
  %3216 = vmatpush2.msra.mxu0 0.0
  %3217 = vmatprep.subr.mxu0 0.0
  %3218 = vmatpush2.msra.mxu0 0.0
  %3219 = vmatprep.subr.mxu0 0.0
  %3220 = vmatpush2.msra.mxu0 0.0
  %3221 = vmatprep.subr.mxu0 0.0
  %3222 = vmatpush2.msra.mxu0 0.0
  %3223 = vmatprep.subr.mxu0 0.0
  %3224 = vmatpush2.msra.mxu0 0.0
  %3225 = vmatprep.subr.mxu0 0.0
  %3226 = vmatpush2.msra.mxu0 0.0
  %3227 = vmatprep.subr.mxu0 0.0
  %3228 = vmatpush2.msra.mxu0 0.0
  %3229 = vmatprep.subr.mxu0 0.0
  %3230 = vmatpush2.msra.mxu0 0.0
  %3231 = vmatprep.subr.mxu0 0.0
  %3232 = vmatpush2.msra.mxu0 0.0
  %3233 = vmatprep.subr.mxu0 0.0
  %3234 = vmatpush2.msra.mxu0 0.0
  %3235 = vmatprep.subr.mxu0 0.0
  %3236 = vmatpush2.msra.mxu0 0.0
  %3237 = vmatprep.subr.mxu0 0.0
  %3238 = vmatpush2.msra.mxu0 0.0
  %3239 = vmatprep.subr.mxu0 0.0
  %3240 = vmatpush2.msra.mxu0 0.0
  %3241 = vmatprep.subr.mxu0 0.0
  %3242 = vmatpush2.msra.mxu0 0.0
  %3243 = vmatprep.mubr.f32.mxu0 0.0
  %3244 = vmatmul.mubr.f32.gmra.mxu0 %v3177
  %v3245 = vpop.f32.mrf.mxu0
  %v3246 = vadd.f32 0.0, %v3245
  %v3247 = vpop.f32.mrf.mxu0
  %3248 = vdwg.mxu0
  %v3249 = vsel %vm3139, %v3246, 0.0
  %3250 = vadd.xlane.f32.xlu0 %v3249
  %v3251 = vpop.xlane.xlu0 %3250
  %v3252 = vmul.f32 %v3251, 0.0625
  %vm3253 = vcmask 97368
  %3254 = vst.msk [vmem:[%s6] sm:$0xff] %vm3253, %v3252
  %3256 = vrot.lane.b32.xlu0 %v3246, 21
  %v3257 = vpop.permute.xlu0 %3256
  %vm3259 = vcmask 302248
  %3260 = vst.msk [vmem:[#allocation8] sm:$0xff] %vm3259, %v3257
  %v3261 = vshra.s32 %v50, 2
  %vm3262 = vcmp.ge.s32.totalorder %v3261, 1
  %vm3263 = vcmp.le.s32.totalorder %v3261, 4
  %vm3264 = vmand %vm3262, %vm3263
  %vm3265 = vcmp.ge.s32.totalorder %v3261, 0
  %vm3266 = vcmp.le.s32.totalorder %v3261, 3
  %vm3267 = vmand %vm3265, %vm3266
  %vm3268 = vcmp.ge.s32.totalorder %v3261, 4294967295
  %vm3269 = vcmp.le.s32.totalorder %v3261, 2
  %vm3270 = vmand %vm3268, %vm3269
  %vm3271 = vcmp.ge.s32.totalorder %v3031, 1
  %vm3272 = vcmp.le.s32.totalorder %v3031, 4
  %vm3273 = vmand %vm3271, %vm3272
  %vm3274 = vcmp.ge.s32.totalorder %v3031, 0
  %vm3275 = vcmp.le.s32.totalorder %v3031, 3
  %vm3276 = vmand %vm3274, %vm3275
  %vm3277 = vcmp.ge.s32.totalorder %v3031, 4294967295
  %vm3278 = vcmp.le.s32.totalorder %v3031, 2
  %vm3279 = vmand %vm3277, %vm3278
  %v3280 = vld [vmem:[#allocation8] sm:$0xff]
  %vm3281 = vmand %vm3264, %vm3273
  %v3282 = vsel %vm3281, 1, 0
  %vm3283 = vcmp.eq.s32.totalorder %v3282, 1
  %v3284 = vsel %vm3283, %v3280, 0.0
  %vm3285 = vcmask 261120
  %3286 = vst.msk [vmem:[#allocation10] sm:$0xff] %vm3285, %v3284
  %v3287 = vld [vmem:[#allocation8] sm:$0xff]
  %vm3288 = vmand %vm3264, %vm3276
  %v3289 = vsel %vm3288, 1, 0
  %vm3290 = vcmp.eq.s32.totalorder %v3289, 1
  %3292 = vrot.lane.b32.xlu0 %v3287, 127
  %v3293 = vpop.permute.xlu0 %3292
  %v3295 = vsel %vm3290, %v3293, 0.0
  %3296 = vst.msk [vmem:[#allocation10 + $0x8] sm:$0xff] %vm3285, %v3295
  %v3297 = vld [vmem:[#allocation8] sm:$0xff]
  %vm3298 = vmand %vm3264, %vm3279
  %v3299 = vsel %vm3298, 1, 0
  %vm3300 = vcmp.eq.s32.totalorder %v3299, 1
  %3302 = vrot.lane.b32.xlu0 %v3297, 126
  %v3303 = vpop.permute.xlu0 %3302
  %v3305 = vsel %vm3300, %v3303, 0.0
  %3306 = vst.msk [vmem:[#allocation10 + $0x10] sm:$0xff] %vm3285, %v3305
  %v3307 = vld [vmem:[#allocation8] sm:$0xff]
  %vm3308 = vmand %vm3267, %vm3273
  %v3309 = vsel %vm3308, 1, 0
  %vm3310 = vcmp.eq.s32.totalorder %v3309, 1
  %3312 = vrot.lane.b32.xlu0 %v3307, 124
  %v3313 = vpop.permute.xlu0 %3312
  %v3315 = vsel %vm3310, %v3313, 0.0
  %3316 = vst.msk [vmem:[#allocation10 + $0x18] sm:$0xff] %vm3285, %v3315
  %v3317 = vld [vmem:[#allocation8] sm:$0xff]
  %vm3318 = vmand %vm3267, %vm3276
  %v3319 = vsel %vm3318, 1, 0
  %vm3320 = vcmp.eq.s32.totalorder %v3319, 1
  %3322 = vrot.lane.b32.xlu0 %v3317, 123
  %v3323 = vpop.permute.xlu0 %3322
  %v3325 = vsel %vm3320, %v3323, 0.0
  %3326 = vst.msk [vmem:[#allocation10 + $0x20] sm:$0xff] %vm3285, %v3325
  %v3327 = vld [vmem:[#allocation8] sm:$0xff]
  %vm3328 = vmand %vm3267, %vm3279
  %v3329 = vsel %vm3328, 1, 0
  %vm3330 = vcmp.eq.s32.totalorder %v3329, 1
  %3332 = vrot.lane.b32.xlu0 %v3327, 122
  %v3333 = vpop.permute.xlu0 %3332
  %v3335 = vsel %vm3330, %v3333, 0.0
  %3336 = vst.msk [vmem:[#allocation10 + $0x28] sm:$0xff] %vm3285, %v3335
  %v3337 = vld [vmem:[#allocation8] sm:$0xff]
  %vm3338 = vmand %vm3270, %vm3273
  %v3339 = vsel %vm3338, 1, 0
  %vm3340 = vcmp.eq.s32.totalorder %v3339, 1
  %3342 = vrot.lane.b32.xlu0 %v3337, 120
  %v3343 = vpop.permute.xlu0 %3342
  %v3345 = vsel %vm3340, %v3343, 0.0
  %3346 = vst.msk [vmem:[#allocation10 + $0x30] sm:$0xff] %vm3285, %v3345
  %v3347 = vld [vmem:[#allocation8] sm:$0xff]
  %vm3348 = vmand %vm3270, %vm3276
  %v3349 = vsel %vm3348, 1, 0
  %vm3350 = vcmp.eq.s32.totalorder %v3349, 1
  %3352 = vrot.lane.b32.xlu0 %v3347, 119
  %v3353 = vpop.permute.xlu0 %3352
  %v3355 = vsel %vm3350, %v3353, 0.0
  %3356 = vst.msk [vmem:[#allocation10 + $0x38] sm:$0xff] %vm3285, %v3355
  %v3357 = vld [vmem:[#allocation8] sm:$0xff]
  %vm3358 = vmand %vm3270, %vm3279
  %v3359 = vsel %vm3358, 1, 0
  %vm3360 = vcmp.eq.s32.totalorder %v3359, 1
  %3362 = vrot.lane.b32.xlu0 %v3357, 118
  %v3363 = vpop.permute.xlu0 %3362
  %v3365 = vsel %vm3360, %v3363, 0.0
  %3366 = vst.msk [vmem:[#allocation10 + $0x40] sm:$0xff] %vm3285, %v3365
  %v3367 = vld [vmem:[%s3] sm:$0xff]
  %v3368 = vld [vmem:[%s3 + $0x8] sm:$0xff]
  %v3369 = vld [vmem:[#allocation10] sm:$0xff]
  %v3370 = vld [vmem:[#allocation10 + $0x8] sm:$0xff]
  %v3371 = vld [vmem:[#allocation10 + $0x10] sm:$0xff]
  %v3372 = vld [vmem:[#allocation10 + $0x18] sm:$0xff]
  %v3373 = vld [vmem:[#allocation10 + $0x20] sm:$0xff]
  %v3374 = vld [vmem:[#allocation10 + $0x28] sm:$0xff]
  %v3375 = vld [vmem:[#allocation10 + $0x30] sm:$0xff]
  %v3376 = vld [vmem:[#allocation10 + $0x38] sm:$0xff]
  %v3377 = vld [vmem:[#allocation10 + $0x40] sm:$0xff]
  %vm3378 = vcmask 588800
  %v3380 = vsel %vm3378, %v3367, 0
  %v3383 = vsel %vm3378, %v3368, 0
  %3385 = vmatprep.subr.mxu0 0.0
  %3386 = vmatpush1.msra.mxu0 0.0
  %3387 = vmatprep.subr.mxu0 0.0
  %3388 = vmatpush1.msra.mxu0 0.0
  %3389 = vmatprep.subr.mxu0 0.0
  %3390 = vmatpush1.msra.mxu0 0.0
  %3391 = vmatprep.subr.mxu0 0.0
  %3392 = vmatpush1.msra.mxu0 0.0
  %3393 = vmatprep.subr.mxu0 0.0
  %3394 = vmatpush1.msra.mxu0 0.0
  %3395 = vmatprep.subr.mxu0 0.0
  %3396 = vmatpush1.msra.mxu0 0.0
  %3397 = vmatprep.subr.mxu0 0.0
  %3398 = vmatpush1.msra.mxu0 0.0
  %3399 = vmatprep.subr.mxu0 0.0
  %3400 = vmatpush1.msra.mxu0 %v3377
  %3401 = vmatprep.subr.mxu0 0.0
  %3402 = vmatpush1.msra.mxu0 %v3376
  %3403 = vmatprep.subr.mxu0 0.0
  %3404 = vmatpush1.msra.mxu0 %v3375
  %3405 = vmatprep.subr.mxu0 0.0
  %3406 = vmatpush1.msra.mxu0 %v3374
  %3407 = vmatprep.subr.mxu0 0.0
  %3408 = vmatpush1.msra.mxu0 %v3373
  %3409 = vmatprep.subr.mxu0 0.0
  %3410 = vmatpush1.msra.mxu0 %v3372
  %3411 = vmatprep.subr.mxu0 0.0
  %3412 = vmatpush1.msra.mxu0 %v3371
  %3413 = vmatprep.subr.mxu0 0.0
  %3414 = vmatpush1.msra.mxu0 %v3370
  %3415 = vmatprep.subr.mxu0 0.0
  %3416 = vmatpush1.msra.mxu0 %v3369
  %3417 = vmatprep.subr.mxu0 0.0
  %3418 = vmatpush2.msra.mxu0 0.0
  %3419 = vmatprep.subr.mxu0 0.0
  %3420 = vmatpush2.msra.mxu0 0.0
  %3421 = vmatprep.subr.mxu0 0.0
  %3422 = vmatpush2.msra.mxu0 0.0
  %3423 = vmatprep.subr.mxu0 0.0
  %3424 = vmatpush2.msra.mxu0 0.0
  %3425 = vmatprep.subr.mxu0 0.0
  %3426 = vmatpush2.msra.mxu0 0.0
  %3427 = vmatprep.subr.mxu0 0.0
  %3428 = vmatpush2.msra.mxu0 0.0
  %3429 = vmatprep.subr.mxu0 0.0
  %3430 = vmatpush2.msra.mxu0 0.0
  %3431 = vmatprep.subr.mxu0 0.0
  %3432 = vmatpush2.msra.mxu0 0.0
  %3433 = vmatprep.subr.mxu0 0.0
  %3434 = vmatpush2.msra.mxu0 0.0
  %3435 = vmatprep.subr.mxu0 0.0
  %3436 = vmatpush2.msra.mxu0 0.0
  %3437 = vmatprep.subr.mxu0 0.0
  %3438 = vmatpush2.msra.mxu0 0.0
  %3439 = vmatprep.subr.mxu0 0.0
  %3440 = vmatpush2.msra.mxu0 0.0
  %3441 = vmatprep.subr.mxu0 0.0
  %3442 = vmatpush2.msra.mxu0 0.0
  %3443 = vmatprep.subr.mxu0 0.0
  %3444 = vmatpush2.msra.mxu0 0.0
  %3445 = vmatprep.subr.mxu0 0.0
  %3446 = vmatpush2.msra.mxu0 0.0
  %3447 = vmatprep.subr.mxu0 0.0
  %3448 = vmatpush2.msra.mxu0 0.0
  %3449 = vmatprep.mubr.f32.mxu0 0.0
  %3450 = vmatmul.mubr.f32.gmra.mxu0 %v3380
  %v3451 = vpop.f32.mrf.mxu0
  %v3452 = vadd.f32 0.0, %v3451
  %v3453 = vpop.f32.mrf.mxu0
  %3454 = vmatprep.mubr.f32.mxu0 0.0
  %3455 = vmatmul.mubr.f32.gmra.mxu0 %v3383
  %v3456 = vpop.f32.mrf.mxu0
  %v3457 = vadd.f32 0.0, %v3456
  %v3458 = vpop.f32.mrf.mxu0
  %3459 = vdwg.mxu0
  %v3460 = vld [vmem:[%s4 + $0xc] sm:$0xff]
  %v3461 = vld [vmem:[%s4 + $0x14] sm:$0xff]
  %v3462 = vld [vmem:[%s5 + $0xc] sm:$0xff]
  %v3463 = vld [vmem:[%s5 + $0x14] sm:$0xff]
  %v3464 = vsel %vm3285, %v3452, 0.0
  %3465 = vadd.xlane.f32.xlu0 %v3464
  %v3466 = vpop.xlane.xlu0 %3465
  %v3467 = vsel %vm3285, %v3457, 0.0
  %3468 = vadd.xlane.f32.xlu0 %v3467
  %v3469 = vpop.xlane.xlu0 %3468
  %v3470 = vmul.f32 %v3466, 0.03125
  %v3471 = vmul.f32 %v3469, 0.03125
  %v3472 = vmul.f32 %v3452, %v3452
  %v3473 = vmul.f32 %v3457, %v3457
  %v3474 = vsel %vm3285, %v3472, 0.0
  %3475 = vadd.xlane.f32.xlu0 %v3474
  %v3476 = vpop.xlane.xlu0 %3475
  %v3477 = vsel %vm3285, %v3473, 0.0
  %3478 = vadd.xlane.f32.xlu0 %v3477
  %v3479 = vpop.xlane.xlu0 %3478
  %v3480 = vmul.f32 %v3476, 0.03125
  %v3481 = vmul.f32 %v3479, 0.03125
  %v3482 = vmul.f32 %v3470, %v3470
  %v3483 = vmul.f32 %v3471, %v3471
  %v3484 = vsub.f32 %v3480, %v3482
  %v3485 = vsub.f32 %v3481, %v3483
  %v3486 = vmax.f32 %v3484, 0.0
  %v3487 = vmax.f32 %v3485, 0.0
  %v3488 = vadd.f32 %v3486, 1e-05
  %v3489 = vadd.f32 %v3487, 1e-05
  %v3490 = vrsqrt.pop %v3488
  %v3491 = vrsqrt.pop %v3489
  %v3492 = vmul.f32 %v3490, %v3460
  %v3493 = vmul.f32 %v3491, %v3461
  %v3494 = vsub.f32 %v3452, %v3470
  %v3495 = vsub.f32 %v3457, %v3471
  %3497 = vset.pattern.permute.xlu0 0
  %3498 = vperm.xlu0 %3497, %v3492
  %v3499 = vpop.permute.xlu0 %3498
  %3502 = vset.pattern.permute.xlu0 0
  %3503 = vperm.xlu0 %3502, %v3493
  %v3504 = vpop.permute.xlu0 %3503
  %v3506 = vmul.f32 %v3494, %v3499
  %v3507 = vmul.f32 %v3495, %v3504
  %3509 = vset.pattern.permute.xlu0 0
  %3510 = vperm.xlu0 %3509, %v3462
  %v3511 = vpop.permute.xlu0 %3510
  %3514 = vset.pattern.permute.xlu0 0
  %3515 = vperm.xlu0 %3514, %v3463
  %v3516 = vpop.permute.xlu0 %3515
  %v3518 = vadd.f32 %v3506, %v3511
  %v3519 = vadd.f32 %v3507, %v3516
  %v3520 = vmax.f32 %v3518, 0.0
  %v3521 = vmax.f32 %v3519, 0.0
  %vm3522 = vcmask 302336
  %3523 = vst.msk [vmem:[#allocation9] sm:$0xff] %vm3522, 0.0
  %3524 = vst.msk [vmem:[#allocation9 + $0x8] sm:$0xff] %vm3522, 0.0
  %3525 = vst.msk [vmem:[#allocation9] sm:$0xff] %vm3285, %v3520
  %3526 = vst.msk [vmem:[#allocation9 + $0x8] sm:$0xff] %vm3285, %v3521
  %v3527 = vshra.s32 %v46, 1
  %v3528 = vand.u32 %v46, 1
  %v3529 = vshll.u32 %v3527, 3
  %v3530 = vshll.u32 %v3528, 1
  %v3531 = vadd.s32 %v3529, %v3530
  %vm3532 = vcmp.eq.s32.totalorder %v2442, %v3531
  %vm3533 = vcmp.eq.s32.totalorder %v2443, %v3531
  %v3534 = vsel %vm3532, 1.0, 0.0
  %v3535 = vsel %vm3533, 1.0, 0.0
  %v3536 = vld [vmem:[#allocation9] sm:$0xff]
  %v3537 = vld [vmem:[#allocation9 + $0x8] sm:$0xff]
  %3540 = vrot.lane.b32.xlu0 %v3536, 127
  %v3541 = vpop.permute.xlu0 %3540
  %3542 = vrot.lane.b32.xlu0 %v3537, 127
  %v3543 = vpop.permute.xlu0 %3542
  %v3546 = vmax.f32 %v3536, %v3541
  %v3547 = vmax.f32 %v3537, %v3543
  %3550 = vrot.lane.b32.xlu0 %v3546, 124
  %v3551 = vpop.permute.xlu0 %3550
  %3552 = vrot.lane.b32.xlu0 %v3547, 124
  %v3553 = vpop.permute.xlu0 %3552
  %v3556 = vmax.f32 %v3546, %v3551
  %v3557 = vmax.f32 %v3547, %v3553
  %v3559 = vsel %vm3139, %v3556, 0
  %v3562 = vsel %vm3139, %v3557, 0
  %3564 = vmatprep.subr.mxu0 0.0
  %3565 = vmatpush1.msra.mxu0 0.0
  %3566 = vmatprep.subr.mxu0 0.0
  %3567 = vmatpush1.msra.mxu0 0.0
  %3568 = vmatprep.subr.mxu0 0.0
  %3569 = vmatpush1.msra.mxu0 0.0
  %3570 = vmatprep.subr.mxu0 0.0
  %3571 = vmatpush1.msra.mxu0 0.0
  %3572 = vmatprep.subr.mxu0 0.0
  %3573 = vmatpush1.msra.mxu0 0.0
  %3574 = vmatprep.subr.mxu0 0.0
  %3575 = vmatpush1.msra.mxu0 0.0
  %3576 = vmatprep.subr.mxu0 0.0
  %3577 = vmatpush1.msra.mxu0 0.0
  %3578 = vmatprep.subr.mxu0 0.0
  %3579 = vmatpush1.msra.mxu0 0.0
  %3580 = vmatprep.subr.mxu0 0.0
  %3581 = vmatpush1.msra.mxu0 0.0
  %3582 = vmatprep.subr.mxu0 0.0
  %3583 = vmatpush1.msra.mxu0 0.0
  %3584 = vmatprep.subr.mxu0 0.0
  %3585 = vmatpush1.msra.mxu0 0.0
  %3586 = vmatprep.subr.mxu0 0.0
  %3587 = vmatpush1.msra.mxu0 0.0
  %3588 = vmatprep.subr.mxu0 0.0
  %3589 = vmatpush1.msra.mxu0 0.0
  %3590 = vmatprep.subr.mxu0 0.0
  %3591 = vmatpush1.msra.mxu0 0.0
  %3592 = vmatprep.subr.mxu0 0.0
  %3593 = vmatpush1.msra.mxu0 %v3535
  %3594 = vmatprep.subr.mxu0 0.0
  %3595 = vmatpush1.msra.mxu0 %v3534
  %3596 = vmatprep.subr.mxu0 0.0
  %3597 = vmatpush2.msra.mxu0 0.0
  %3598 = vmatprep.subr.mxu0 0.0
  %3599 = vmatpush2.msra.mxu0 0.0
  %3600 = vmatprep.subr.mxu0 0.0
  %3601 = vmatpush2.msra.mxu0 0.0
  %3602 = vmatprep.subr.mxu0 0.0
  %3603 = vmatpush2.msra.mxu0 0.0
  %3604 = vmatprep.subr.mxu0 0.0
  %3605 = vmatpush2.msra.mxu0 0.0
  %3606 = vmatprep.subr.mxu0 0.0
  %3607 = vmatpush2.msra.mxu0 0.0
  %3608 = vmatprep.subr.mxu0 0.0
  %3609 = vmatpush2.msra.mxu0 0.0
  %3610 = vmatprep.subr.mxu0 0.0
  %3611 = vmatpush2.msra.mxu0 0.0
  %3612 = vmatprep.subr.mxu0 0.0
  %3613 = vmatpush2.msra.mxu0 0.0
  %3614 = vmatprep.subr.mxu0 0.0
  %3615 = vmatpush2.msra.mxu0 0.0
  %3616 = vmatprep.subr.mxu0 0.0
  %3617 = vmatpush2.msra.mxu0 0.0
  %3618 = vmatprep.subr.mxu0 0.0
  %3619 = vmatpush2.msra.mxu0 0.0
  %3620 = vmatprep.subr.mxu0 0.0
  %3621 = vmatpush2.msra.mxu0 0.0
  %3622 = vmatprep.subr.mxu0 0.0
  %3623 = vmatpush2.msra.mxu0 0.0
  %3624 = vmatprep.subr.mxu0 0.0
  %3625 = vmatpush2.msra.mxu0 0.0
  %3626 = vmatprep.subr.mxu0 0.0
  %3627 = vmatpush2.msra.mxu0 0.0
  %3628 = vmatprep.mubr.f32.mxu0 0.0
  %3629 = vmatmul.mubr.f32.gmra.mxu0 %v3559
  %v3630 = vpop.f32.mrf.mxu0
  %v3631 = vadd.f32 0.0, %v3630
  %v3632 = vpop.f32.mrf.mxu0
  %3633 = vmatprep.mubr.f32.mxu0 0.0
  %3634 = vmatmul.mubr.f32.gmra.mxu0 %v3562
  %v3635 = vpop.f32.mrf.mxu0
  %v3636 = vadd.f32 0.0, %v3635
  %v3637 = vpop.f32.mrf.mxu0
  %3638 = vdwg.mxu0
  %vm3639 = vcmask 31744
  %v3640 = vsel %vm3639, %v3631, 0.0
  %3641 = vadd.xlane.f32.xlu0 %v3640
  %v3642 = vpop.xlane.xlu0 %3641
  %v3643 = vsel %vm3639, %v3636, 0.0
  %3644 = vadd.xlane.f32.xlu0 %v3643
  %v3645 = vpop.xlane.xlu0 %3644
  %v3646 = vmul.f32 %v3642, 0.25
  %v3647 = vmul.f32 %v3645, 0.25
  %vm3648 = vcmask 105568
  %3649 = vst.msk [vmem:[%s6] sm:$0xff] %vm3648, %v3646
  %3650 = vst.msk [vmem:[%s6 + $0x8] sm:$0xff] %vm3648, %v3647
  %3651 = vst.msk [vmem:[%s6] sm:$0xff] %vm3639, %v3631
  %3652 = vst.msk [vmem:[%s6 + $0x8] sm:$0xff] %vm3639, %v3636
  %v3653 = vld [vmem:[#allocation9] sm:$0xff]
  %v3654 = vld [vmem:[#allocation9 + $0x8] sm:$0xff]
  %3657 = vrot.lane.b32.xlu0 %v3653, 127
  %v3658 = vpop.permute.xlu0 %3657
  %3659 = vrot.lane.b32.xlu0 %v3654, 127
  %v3660 = vpop.permute.xlu0 %3659
  %v3663 = vmax.f32 %v3653, %v3658
  %v3664 = vmax.f32 %v3654, %v3660
  %3667 = vrot.lane.b32.xlu0 %v3663, 124
  %v3668 = vpop.permute.xlu0 %3667
  %3669 = vrot.lane.b32.xlu0 %v3664, 124
  %v3670 = vpop.permute.xlu0 %3669
  %v3673 = vmax.f32 %v3663, %v3668
  %v3674 = vmax.f32 %v3664, %v3670
  %3677 = vrot.lane.b32.xlu0 %v3673, 112
  %v3678 = vpop.permute.xlu0 %3677
  %3679 = vrot.lane.b32.xlu0 %v3674, 112
  %v3680 = vpop.permute.xlu0 %3679
  %v3681 = vsel %vm3139, %v3678, 0
  %v3683 = vsel %vm3139, %v3680, 0
  %3685 = vmatprep.subr.mxu0 0.0
  %3686 = vmatpush1.msra.mxu0 0.0
  %3687 = vmatprep.subr.mxu0 0.0
  %3688 = vmatpush1.msra.mxu0 0.0
  %3689 = vmatprep.subr.mxu0 0.0
  %3690 = vmatpush1.msra.mxu0 0.0
  %3691 = vmatprep.subr.mxu0 0.0
  %3692 = vmatpush1.msra.mxu0 0.0
  %3693 = vmatprep.subr.mxu0 0.0
  %3694 = vmatpush1.msra.mxu0 0.0
  %3695 = vmatprep.subr.mxu0 0.0
  %3696 = vmatpush1.msra.mxu0 0.0
  %3697 = vmatprep.subr.mxu0 0.0
  %3698 = vmatpush1.msra.mxu0 0.0
  %3699 = vmatprep.subr.mxu0 0.0
  %3700 = vmatpush1.msra.mxu0 0.0
  %3701 = vmatprep.subr.mxu0 0.0
  %3702 = vmatpush1.msra.mxu0 0.0
  %3703 = vmatprep.subr.mxu0 0.0
  %3704 = vmatpush1.msra.mxu0 0.0
  %3705 = vmatprep.subr.mxu0 0.0
  %3706 = vmatpush1.msra.mxu0 0.0
  %3707 = vmatprep.subr.mxu0 0.0
  %3708 = vmatpush1.msra.mxu0 0.0
  %3709 = vmatprep.subr.mxu0 0.0
  %3710 = vmatpush1.msra.mxu0 0.0
  %3711 = vmatprep.subr.mxu0 0.0
  %3712 = vmatpush1.msra.mxu0 0.0
  %3713 = vmatprep.subr.mxu0 0.0
  %3714 = vmatpush1.msra.mxu0 %v3535
  %3715 = vmatprep.subr.mxu0 0.0
  %3716 = vmatpush1.msra.mxu0 %v3534
  %3717 = vmatprep.subr.mxu0 0.0
  %3718 = vmatpush2.msra.mxu0 0.0
  %3719 = vmatprep.subr.mxu0 0.0
  %3720 = vmatpush2.msra.mxu0 0.0
  %3721 = vmatprep.subr.mxu0 0.0
  %3722 = vmatpush2.msra.mxu0 0.0
  %3723 = vmatprep.subr.mxu0 0.0
  %3724 = vmatpush2.msra.mxu0 0.0
  %3725 = vmatprep.subr.mxu0 0.0
  %3726 = vmatpush2.msra.mxu0 0.0
  %3727 = vmatprep.subr.mxu0 0.0
  %3728 = vmatpush2.msra.mxu0 0.0
  %3729 = vmatprep.subr.mxu0 0.0
  %3730 = vmatpush2.msra.mxu0 0.0
  %3731 = vmatprep.subr.mxu0 0.0
  %3732 = vmatpush2.msra.mxu0 0.0
  %3733 = vmatprep.subr.mxu0 0.0
  %3734 = vmatpush2.msra.mxu0 0.0
  %3735 = vmatprep.subr.mxu0 0.0
  %3736 = vmatpush2.msra.mxu0 0.0
  %3737 = vmatprep.subr.mxu0 0.0
  %3738 = vmatpush2.msra.mxu0 0.0
  %3739 = vmatprep.subr.mxu0 0.0
  %3740 = vmatpush2.msra.mxu0 0.0
  %3741 = vmatprep.subr.mxu0 0.0
  %3742 = vmatpush2.msra.mxu0 0.0
  %3743 = vmatprep.subr.mxu0 0.0
  %3744 = vmatpush2.msra.mxu0 0.0
  %3745 = vmatprep.subr.mxu0 0.0
  %3746 = vmatpush2.msra.mxu0 0.0
  %3747 = vmatprep.subr.mxu0 0.0
  %3748 = vmatpush2.msra.mxu0 0.0
  %3749 = vmatprep.mubr.f32.mxu0 0.0
  %3750 = vmatmul.mubr.f32.gmra.mxu0 %v3681
  %v3751 = vpop.f32.mrf.mxu0
  %v3752 = vadd.f32 0.0, %v3751
  %v3753 = vpop.f32.mrf.mxu0
  %3754 = vmatprep.mubr.f32.mxu0 0.0
  %3755 = vmatmul.mubr.f32.gmra.mxu0 %v3683
  %v3756 = vpop.f32.mrf.mxu0
  %v3757 = vadd.f32 0.0, %v3756
  %v3758 = vpop.f32.mrf.mxu0
  %3759 = vdwg.mxu0
  %v3760 = vsel %vm3639, %v3752, 0.0
  %3761 = vadd.xlane.f32.xlu0 %v3760
  %v3762 = vpop.xlane.xlu0 %3761
  %v3763 = vsel %vm3639, %v3757, 0.0
  %3764 = vadd.xlane.f32.xlu0 %v3763
  %v3765 = vpop.xlane.xlu0 %3764
  %v3766 = vmul.f32 %v3762, 0.25
  %v3767 = vmul.f32 %v3765, 0.25
  %vm3768 = vcmask 113768
  %3769 = vst.msk [vmem:[%s6] sm:$0xff] %vm3768, %v3766
  %3770 = vst.msk [vmem:[%s6 + $0x8] sm:$0xff] %vm3768, %v3767
  %3773 = vrot.lane.b32.xlu0 %v3752, 4
  %v3774 = vpop.permute.xlu0 %3773
  %3775 = vrot.lane.b32.xlu0 %v3757, 4
  %v3776 = vpop.permute.xlu0 %3775
  %vm3779 = vcmask 64544
  %3780 = vst.msk [vmem:[%s6] sm:$0xff] %vm3779, %v3774
  %3781 = vst.msk [vmem:[%s6 + $0x8] sm:$0xff] %vm3779, %v3776
  // Predicated region
  $region26: #{_lambda_.1} parent=0 // pred_check
    _
  $region27: #{_lambda_.1} parent=0 // pred_check_branch
    %3783 = sbr.rel (0) target = $region29
  $region28: #{_lambda_.1} parent=0 // pred_region
    _
  $region29: #{_lambda_.1} parent=0 // pred_fallthru
    _
  // Predicated region
  $region30: #{_lambda_.1} parent=0 // pred_check
    _
  $region31: #{_lambda_.1} parent=0 // pred_check_branch
    %3785 = sbr.rel (0) target = $region33
  $region32: #{_lambda_.1} parent=0 // pred_region
    _
  $region33: #{_lambda_.1} parent=0 // pred_fallthru
    _

</llo_original>
